<compile_context>
chip_gen: v6e
topology: v6e:2x2x1
jax: 0.10.0
libtpu: 0.0.40
codegen_flags: <defaults>
</compile_context>

<pallas_src>
import functools

import jax
import jax.numpy as jnp
import numpy as np
from jax.experimental import pallas as pl
from jax.experimental.pallas import tpu as pltpu


MARGIN = 128  # lane halo used by the in-kernel tap windows (requires Wo + 3 <= 128)


# ----------------------------------------------------------------------------- helpers
def _ceil_div(a, b):
    return -(-a // b)


def _vmem_capacity():
    try:
        info = pltpu.get_tpu_info()
        return int(getattr(info, "vmem_capacity_bytes", 64 * 1024 * 1024))
    except Exception:
        return 64 * 1024 * 1024  # conservative (v7x-sized) fallback


def _pick_tile_m(lp, cin, cout, itemsize=2):
    """Largest lane tile whose per-call VMEM footprint fits comfortably on this part."""
    budget = _vmem_capacity() // 2
    for tm in (1024, 512, 256, 128):
        lt = (2 + _ceil_div(lp, tm)) * tm
        resident = 2 * 2 * (cin + cout) * lt * itemsize            # resident inputs, 2 bufs
        per_tile = (9 * max(cin, cout) + 3 * (cin + cout) + 2) * tm * 4
        if resident + per_tile <= budget:
            return tm
    return 128


def _pallas_args(flops, nbytes):
    cap = _vmem_capacity()
    return dict(
        compiler_params=pltpu.CompilerParams(
            dimension_semantics=("parallel",),
            vmem_limit_bytes=min(cap * 3 // 4, 100 * 1024 * 1024)),
        cost_estimate=pl.CostEstimate(flops=int(flops), transcendentals=0,
                                      bytes_accessed=int(nbytes)),
    )


def _to_canonical(x, tile_m, lt, dtype):
    """(C, N, Ho, Wo) -> (C, LT): zero-pad spatial by 1, flatten (n, h, w) onto lanes and
    place the data at column offset tile_m (one whole zero margin tile on the left)."""
    c, n, ho, wo = x.shape
    xp = jnp.pad(x.astype(dtype), ((0, 0), (0, 0), (1, 1), (1, 1)))
    flat = xp.reshape(c, n * (ho + 2) * (wo + 2))
    lp = flat.shape[1]
    return jnp.pad(flat, ((0, 0), (tile_m, lt - tile_m - lp)))


def _from_canonical(y, tile_m, n, ho, wo):
    """(C, LT) -> (N, C, Ho, Wo): drop margins, padded borders and dead columns."""
    c = y.shape[0]
    hop, wop = ho + 2, wo + 2
    lp = n * hop * wop
    img = y[:, tile_m:tile_m + lp].reshape(c, n, hop, wop)[:, :, 1:1 + ho, 1:1 + wo]
    return jnp.transpose(img, (1, 0, 2, 3))


def _im2col_canonical(x_cf, stride, ho, wo, tile_m, lt, dtype):
    """x_cf: (C, N, H, W) -> (9*C, LT) im2col patches in the canonical output layout.
    Only used for the strided conv1 (stride != 1)."""
    xp = jnp.pad(x_cf, ((0, 0), (0, 0), (1, 1), (1, 1)))
    taps = []
    for kh in range(3):
        for kw in range(3):
            t = xp[:, :, kh:kh + stride * ho:stride, kw:kw + stride * wo:stride]
            taps.append(_to_canonical(t, tile_m, lt, dtype))
    return jnp.concatenate(taps, axis=0)


def fold_bn(bn, eps=1e-5):
    """Fold eval-mode BatchNorm into per-channel scale / bias."""
    scale = bn["gamma"] / jnp.sqrt(bn["var"] + eps)
    bias = bn["beta"] - bn["mean"] * scale
    return scale, bias


def _w3x3_taps(w, scale, dtype):
    """(Cout, Cin, 3, 3) -> (9, Cout, Cin) with the BN scale folded in (f32 fold, bf16 cast)."""
    cout, cin = w.shape[0], w.shape[1]
    wt = jnp.transpose(w, (2, 3, 0, 1)).reshape(9, cout, cin)
    return (wt * scale[None, :, None]).astype(dtype)


def _w3x3_mat(w, scale, dtype):
    """(Cout, Cin, 3, 3) -> (Cout, 9*Cin), K ordered (kh, kw, cin), BN scale folded in."""
    cout = w.shape[0]
    wm = jnp.transpose(w, (0, 2, 3, 1)).reshape(cout, -1)
    return (scale[:, None] * wm).astype(dtype)


# ----------------------------------------------------------------------------- kernels
def _accumulate_taps(x_ref, w_ref, i, *, wp, tile_m):
    """Nine shifted-tap MXU dots from the resident canonical input for output tile i."""
    c0 = pl.multiple_of(i * tile_m - MARGIN, MARGIN)
    win = x_ref[:, pl.ds(c0, tile_m + 2 * MARGIN)]        # aligned dynamic lane window
    acc = None
    for kh in range(3):
        for kw in range(3):
            off = MARGIN + (kh - 1) * wp + (kw - 1)       # static in-vreg lane shift
            tap = win[:, off:off + tile_m]
            part = jnp.dot(w_ref[kh * 3 + kw], tap, preferred_element_type=jnp.float32)
            acc = part if acc is None else acc + part
    return acc


def _conv1_s1_kernel(x_ref, w_ref, b_ref, m_ref, o_ref, *, wp, tile_m):
    """Stride-1 conv1: 3x3 conv (scale-folded) + bias + ReLU, masked to the valid layout."""
    i = pl.program_id(0)
    edge = jnp.logical_or(i == 0, i == pl.num_programs(0) - 1)

    @pl.when(edge)
    def _():
        o_ref[...] = jnp.zeros_like(o_ref)

    @pl.when(jnp.logical_not(edge))
    def _():
        y = _accumulate_taps(x_ref, w_ref, i, wp=wp, tile_m=tile_m)
        y = jnp.maximum(y + b_ref[...], 0.0)
        o_ref[...] = (y * m_ref[...]).astype(o_ref.dtype)


def _conv2_identity_kernel(y1_ref, x_ref, w_ref, b_ref, o_ref, *, wp, tile_m):
    """conv2 + BN2 with the identity residual added in-kernel, then final ReLU."""
    i = pl.program_id(0)
    edge = jnp.logical_or(i == 0, i == pl.num_programs(0) - 1)

    @pl.when(edge)
    def _():
        o_ref[...] = jnp.zeros_like(o_ref)

    @pl.when(jnp.logical_not(edge))
    def _():
        y = _accumulate_taps(y1_ref, w_ref, i, wp=wp, tile_m=tile_m)
        c0 = pl.multiple_of(i * tile_m, MARGIN)
        res = x_ref[:, pl.ds(c0, tile_m)].astype(jnp.float32)
        o_ref[...] = jnp.maximum(y + b_ref[...] + res, 0.0).astype(o_ref.dtype)


def _conv2_proj_kernel(y1_ref, xs_ref, w_ref, ws_ref, b_ref, o_ref, *, wp, tile_m):
    """conv2 + BN2 with the 1x1 projection shortcut (+BNs) accumulated into the same
    f32 accumulator (tenth dot), then combined bias and final ReLU."""
    i = pl.program_id(0)
    edge = jnp.logical_or(i == 0, i == pl.num_programs(0) - 1)

    @pl.when(edge)
    def _():
        o_ref[...] = jnp.zeros_like(o_ref)

    @pl.when(jnp.logical_not(edge))
    def _():
        y = _accumulate_taps(y1_ref, w_ref, i, wp=wp, tile_m=tile_m)
        y = y + jnp.dot(ws_ref[...], xs_ref[...], preferred_element_type=jnp.float32)
        o_ref[...] = jnp.maximum(y + b_ref[...], 0.0).astype(o_ref.dtype)


def _conv1_s2_kernel(p_ref, w_ref, b_ref, m_ref, o_ref):
    """Strided conv1 via streamed im2col patches (scale-folded weights), bias, ReLU, mask."""
    y = jnp.dot(w_ref[...], p_ref[...], preferred_element_type=jnp.float32)
    y = jnp.maximum(y + b_ref[...], 0.0)
    o_ref[...] = (y * m_ref[...]).astype(o_ref.dtype)


# ----------------------------------------------------------------------------- wrappers
def conv1_s1(x_can, w_taps, bias, mask, *, wp, tile_m, out_dtype):
    cin, lt = x_can.shape
    cout = w_taps.shape[1]
    nt = lt // tile_m
    flops = 2 * 9 * cin * cout * lt
    nbytes = (x_can.size * x_can.dtype.itemsize + w_taps.size * w_taps.dtype.itemsize
              + mask.size * mask.dtype.itemsize + cout * lt * jnp.dtype(out_dtype).itemsize)
    return pl.pallas_call(
        functools.partial(_conv1_s1_kernel, wp=wp, tile_m=tile_m),
        out_shape=jax.ShapeDtypeStruct((cout, lt), out_dtype),
        grid_spec=pltpu.PrefetchScalarGridSpec(
            num_scalar_prefetch=0,
            grid=(nt,),
            in_specs=[
                pl.BlockSpec((cin, lt), lambda i: (0, 0)),         # resident input (read once)
                pl.BlockSpec((9, cout, cin), lambda i: (0, 0, 0)),  # scale-folded tap weights
                pl.BlockSpec((cout, 1), lambda i: (0, 0)),          # folded BN bias
                pl.BlockSpec((1, tile_m), lambda i: (0, i)),        # validity mask tile
            ],
            out_specs=pl.BlockSpec((cout, tile_m), lambda i: (0, i)),
        ),
        **_pallas_args(flops, nbytes),
    )(x_can, w_taps, bias, mask)


def conv1_s2(patches, w_mat, bias, mask, *, tile_m, out_dtype):
    k, lt = patches.shape
    cout = w_mat.shape[0]
    nt = lt // tile_m
    flops = 2 * k * cout * lt
    nbytes = (patches.size * patches.dtype.itemsize + w_mat.size * w_mat.dtype.itemsize
              + mask.size * mask.dtype.itemsize + cout * lt * jnp.dtype(out_dtype).itemsize)
    return pl.pallas_call(
        _conv1_s2_kernel,
        out_shape=jax.ShapeDtypeStruct((cout, lt), out_dtype),
        grid_spec=pltpu.PrefetchScalarGridSpec(
            num_scalar_prefetch=0,
            grid=(nt,),
            in_specs=[
                pl.BlockSpec((k, tile_m), lambda i: (0, i)),        # streamed im2col patches
                pl.BlockSpec((cout, k), lambda i: (0, 0)),
                pl.BlockSpec((cout, 1), lambda i: (0, 0)),
                pl.BlockSpec((1, tile_m), lambda i: (0, i)),
            ],
            out_specs=pl.BlockSpec((cout, tile_m), lambda i: (0, i)),
        ),
        **_pallas_args(flops, nbytes),
    )(patches, w_mat, bias, mask)


def conv2_identity(y1_can, x_can, w_taps, bias, *, wp, tile_m, out_dtype):
    cout, lt = y1_can.shape
    nt = lt // tile_m
    flops = 2 * 9 * cout * cout * lt
    nbytes = (y1_can.size + x_can.size + w_taps.size) * 2 + cout * lt * 2
    return pl.pallas_call(
        functools.partial(_conv2_identity_kernel, wp=wp, tile_m=tile_m),
        out_shape=jax.ShapeDtypeStruct((cout, lt), out_dtype),
        grid_spec=pltpu.PrefetchScalarGridSpec(
            num_scalar_prefetch=0,
            grid=(nt,),
            in_specs=[
                pl.BlockSpec((cout, lt), lambda i: (0, 0)),         # resident y1
                pl.BlockSpec((cout, lt), lambda i: (0, 0)),         # resident x (identity residual)
                pl.BlockSpec((9, cout, cout), lambda i: (0, 0, 0)),
                pl.BlockSpec((cout, 1), lambda i: (0, 0)),
            ],
            out_specs=pl.BlockSpec((cout, tile_m), lambda i: (0, i)),
        ),
        **_pallas_args(flops, nbytes),
    )(y1_can, x_can, w_taps, bias)


def conv2_proj(y1_can, xs_can, w_taps, ws_mat, bias, *, wp, tile_m, out_dtype):
    cout, lt = y1_can.shape
    cin = xs_can.shape[0]
    nt = lt // tile_m
    flops = 2 * (9 * cout + cin) * cout * lt
    nbytes = (y1_can.size + xs_can.size + w_taps.size + ws_mat.size) * 2 + cout * lt * 2
    return pl.pallas_call(
        functools.partial(_conv2_proj_kernel, wp=wp, tile_m=tile_m),
        out_shape=jax.ShapeDtypeStruct((cout, lt), out_dtype),
        grid_spec=pltpu.PrefetchScalarGridSpec(
            num_scalar_prefetch=0,
            grid=(nt,),
            in_specs=[
                pl.BlockSpec((cout, lt), lambda i: (0, 0)),         # resident y1
                pl.BlockSpec((cin, tile_m), lambda i: (0, i)),      # strided x tile (1x1 shortcut)
                pl.BlockSpec((9, cout, cout), lambda i: (0, 0, 0)),
                pl.BlockSpec((cout, cin), lambda i: (0, 0)),        # scale-folded 1x1 weights
                pl.BlockSpec((cout, 1), lambda i: (0, 0)),          # combined bias (b2 + bs)
            ],
            out_specs=pl.BlockSpec((cout, tile_m), lambda i: (0, i)),
        ),
        **_pallas_args(flops, nbytes),
    )(y1_can, xs_can, w_taps, ws_mat, bias)


# ----------------------------------------------------------------------------- forward
def residual_forward(x_nchw, params, *, stride, compute_dtype=jnp.bfloat16):
    """Forward pass of the Residual module (eval semantics), NCHW f32 in / out."""
    n, cin, h, w = x_nchw.shape
    cout = params["w1"].shape[0]
    ho = (h + 2 - 3) // stride + 1
    wo = (w + 2 - 3) // stride + 1
    hop, wop = ho + 2, wo + 2
    assert wop + 1 <= MARGIN, "image width too large for the fixed 128-lane halo"
    # TODO(synk): support W > 125 by enlarging the halo margin / window width.

    lp = n * hop * wop
    tile_m = _pick_tile_m(lp, cin, cout)
    nt = 2 + _ceil_div(lp, tile_m)
    lt = nt * tile_m

    x_cf = jnp.transpose(x_nchw, (1, 0, 2, 3)).astype(jnp.float32)   # (Cin, N, H, W)

    s1, b1 = fold_bn(params["bn1"])
    s2, b2 = fold_bn(params["bn2"])
    b1 = b1.reshape(cout, 1).astype(jnp.float32)
    mask = _to_canonical(jnp.ones((1, n, ho, wo), jnp.float32), tile_m, lt, compute_dtype)

    # --- conv1 (3x3, stride) + BN1 + ReLU  (Dropout = identity in eval mode)
    x_can = None
    if stride == 1:
        x_can = _to_canonical(x_cf, tile_m, lt, compute_dtype)
        w1t = _w3x3_taps(params["w1"], s1, compute_dtype)
        y1 = conv1_s1(x_can, w1t, b1, mask, wp=wop, tile_m=tile_m, out_dtype=compute_dtype)
    else:
        patches = _im2col_canonical(x_cf, stride, ho, wo, tile_m, lt, compute_dtype)
        w1m = _w3x3_mat(params["w1"], s1, compute_dtype)
        y1 = conv1_s2(patches, w1m, b1, mask, tile_m=tile_m, out_dtype=compute_dtype)

    # --- conv2 (3x3, 1) + BN2, fused with the shortcut branch, residual add and final ReLU
    w2t = _w3x3_taps(params["w2"], s2, compute_dtype)
    use_proj = (stride != 1) or (cin != cout)
    if use_proj:
        ss, bs = fold_bn(params["bns"])
        ws = (ss[:, None] * params["ws"].reshape(cout, cin)).astype(compute_dtype)
        b_comb = (b2 + bs).reshape(cout, 1).astype(jnp.float32)
        xs_can = _to_canonical(x_cf[:, :, ::stride, ::stride], tile_m, lt, compute_dtype)
        out = conv2_proj(y1, xs_can, w2t, ws, b_comb, wp=wop, tile_m=tile_m,
                         out_dtype=compute_dtype)
    else:
        b2r = b2.reshape(cout, 1).astype(jnp.float32)
        out = conv2_identity(y1, x_can, w2t, b2r, wp=wop, tile_m=tile_m,
                             out_dtype=compute_dtype)

    return _from_canonical(out, tile_m, n, ho, wo).astype(jnp.float32)


# ----------------------------------------------------------------------------- reference
def reference_forward(x_nchw, params, *, stride):
    """Pure-JAX (XLA, f32 HIGHEST precision) reference for correctness checking."""
    def conv(x, w, s, pad):
        return jax.lax.conv_general_dilated(
            x, w, window_strides=(s, s), padding=[(pad, pad), (pad, pad)],
            dimension_numbers=("NCHW", "OIHW", "NCHW"),
            precision=jax.lax.Precision.HIGHEST)

    def bn(x, p, eps=1e-5):
        sc = p["gamma"] / jnp.sqrt(p["var"] + eps)
        bi = p["beta"] - p["mean"] * sc
        return x * sc[None, :, None, None] + bi[None, :, None, None]

    r = jax.nn.relu(bn(conv(x_nchw, params["w1"], stride, 1), params["bn1"]))
    r = bn(conv(r, params["w2"], 1, 1), params["bn2"])
    if stride != 1 or x_nchw.shape[1] != params["w1"].shape[0]:
        sc = bn(conv(x_nchw, params["ws"], stride, 0), params["bns"])
    else:
        sc = x_nchw
    return jax.nn.relu(r + sc)


# ----------------------------------------------------------------------------- params
def init_params(key, in_channels, out_channels, *, with_shortcut):
    ks = jax.random.split(key, 6)

    def bn_params(k):
        k1, k2, k3, k4 = jax.random.split(k, 4)
        return {
            "gamma": 1.0 + 0.1 * jax.random.normal(k1, (out_channels,), jnp.float32),
            "beta": 0.1 * jax.random.normal(k2, (out_channels,), jnp.float32),
            "mean": 0.1 * jax.random.normal(k3, (out_channels,), jnp.float32),
            "var": 1.0 + 0.1 * jnp.abs(jax.random.normal(k4, (out_channels,), jnp.float32)),
        }

    params = {
        "w1": 0.1 * jax.random.normal(ks[0], (out_channels, in_channels, 3, 3), jnp.float32),
        "bn1": bn_params(ks[1]),
        "w2": 0.1 * jax.random.normal(ks[2], (out_channels, out_channels, 3, 3), jnp.float32),
        "bn2": bn_params(ks[3]),
    }
    if with_shortcut:
        params["ws"] = 0.1 * jax.random.normal(ks[4], (out_channels, in_channels, 1, 1),
                                               jnp.float32)
        params["bns"] = bn_params(ks[5])
    return params


# ----------------------------------------------------------------------------- main
if __name__ == "__main__":
    key = jax.random.PRNGKey(0)

    def run_case(case_key, in_c, out_c, stride, N=2, H=16, W=16):
        k_x, k_p = jax.random.split(case_key)
        x = jax.random.normal(k_x, (N, in_c, H, W), jnp.float32)
        params = init_params(k_p, in_c, out_c,
                             with_shortcut=(stride != 1 or in_c != out_c))
        fwd = jax.jit(functools.partial(residual_forward, stride=stride))
        out = fwd(x, params)
        jax.block_until_ready(out)
        ref = reference_forward(x, params, stride=stride)
        # tolerance reflects bf16 MXU inputs / bf16 streaming vs the f32-HIGHEST reference
        np.testing.assert_allclose(np.asarray(out), np.asarray(ref), rtol=2e-2, atol=2e-2)

    k1, k2 = jax.random.split(key)
    run_case(k1, 4, 8, 2)   # downsampling block: in-kernel conv2 + fused 1x1 shortcut
    run_case(k2, 8, 8, 1)   # identity block: in-kernel conv1 and conv2, fused residual add
    print("KERNEL_OK")
</pallas_src>

<mosaic_0001>
module attributes {stable_mosaic.version = 11 : i64} {
  func.func @_conv1_s2_kernel(%arg0: i32, %arg1: memref<36x1024xbf16, #tpu.memory_space<vmem>>, %arg2: memref<8x36xbf16, #tpu.memory_space<vmem>>, %arg3: memref<8x1xf32, #tpu.memory_space<vmem>>, %arg4: memref<1x1024xbf16, #tpu.memory_space<vmem>>, %arg5: memref<8x1024xbf16, #tpu.memory_space<vmem>>) attributes {dimension_semantics = [#tpu.dimension_semantics<parallel>], iteration_bounds = array<i64: 3>, scalar_prefetch = 0 : i64, scratch_operands = 0 : i64, tpu.core_type = #tpu.core_type<tc>, window_params = [{transform_indices = @transform_0, window_bounds = array<i64: 36, 1024>}, {pipeline_mode = #tpu.pipeline_mode<synchronous>, transform_indices = @transform_1, window_bounds = array<i64: 8, 36>}, {pipeline_mode = #tpu.pipeline_mode<synchronous>, transform_indices = @transform_2, window_bounds = array<i64: 8, 1>}, {transform_indices = @transform_3, window_bounds = array<i64: 1, 1024>}, {transform_indices = @transform_4, window_bounds = array<i64: 8, 1024>}]} {
    %c0 = arith.constant 0 : index
    %c0_0 = arith.constant 0 : index
    %0 = vector.load %arg2[%c0, %c0_0] : memref<8x36xbf16, #tpu.memory_space<vmem>>, vector<8x36xbf16>
    %c0_1 = arith.constant 0 : index
    %c0_2 = arith.constant 0 : index
    %1 = vector.load %arg1[%c0_1, %c0_2] : memref<36x1024xbf16, #tpu.memory_space<vmem>>, vector<36x1024xbf16>
    %cst = arith.constant dense<0.000000e+00> : vector<8x1024xf32>
    %2 = tpu.matmul %0, %1, %cst {dimension_numbers = #tpu.dot_dimension_numbers<[1], [0], [0], [1], [0, 0, 1, 1], [], []>} : vector<8x36xbf16>, vector<36x1024xbf16>, vector<8x1024xf32> -> vector<8x1024xf32>
    %c0_3 = arith.constant 0 : index
    %c0_4 = arith.constant 0 : index
    %3 = vector.load %arg3[%c0_3, %c0_4] : memref<8x1xf32, #tpu.memory_space<vmem>>, vector<8x1xf32>
    %4 = vector.broadcast %3 : vector<8x1xf32> to vector<8x1024xf32>
    %5 = arith.addf %2, %4 : vector<8x1024xf32>
    %cst_5 = arith.constant 0.000000e+00 : f32
    %6 = vector.broadcast %cst_5 : f32 to vector<8x1024xf32>
    %7 = arith.maximumf %5, %6 : vector<8x1024xf32>
    %c0_6 = arith.constant 0 : index
    %c0_7 = arith.constant 0 : index
    %8 = vector.load %arg4[%c0_6, %c0_7] : memref<1x1024xbf16, #tpu.memory_space<vmem>>, vector<1x1024xbf16>
    %9 = arith.extf %8 : vector<1x1024xbf16> to vector<1x1024xf32>
    %10 = vector.broadcast %9 : vector<1x1024xf32> to vector<8x1024xf32>
    %11 = arith.mulf %7, %10 : vector<8x1024xf32>
    %12 = arith.truncf %11 : vector<8x1024xf32> to vector<8x1024xbf16>
    %c0_8 = arith.constant 0 : index
    %c0_9 = arith.constant 0 : index
    %13 = vector.load %arg5[%c0_8, %c0_9] : memref<8x1024xbf16, #tpu.memory_space<vmem>>, vector<8x1024xbf16>
    tpu.vector_store %arg5[%c0_8, %c0_9], %12 {strides = array<i32>} : memref<8x1024xbf16, #tpu.memory_space<vmem>>, vector<8x1024xbf16>,
    return
  }
  func.func @transform_0(%arg0: i32) -> (i32, i32) {
    %c0_i32 = arith.constant 0 : i32
    %c0_i32_0 = arith.constant 0 : i32
    return %c0_i32, %arg0 : i32, i32
  }
  func.func @transform_1(%arg0: i32) -> (i32, i32) {
    %c0_i32 = arith.constant 0 : i32
    %c0_i32_0 = arith.constant 0 : i32
    %c0_i32_1 = arith.constant 0 : i32
    return %c0_i32, %c0_i32_0 : i32, i32
  }
  func.func @transform_2(%arg0: i32) -> (i32, i32) {
    %c0_i32 = arith.constant 0 : i32
    %c0_i32_0 = arith.constant 0 : i32
    %c0_i32_1 = arith.constant 0 : i32
    return %c0_i32, %c0_i32_0 : i32, i32
  }
  func.func @transform_3(%arg0: i32) -> (i32, i32) {
    %c0_i32 = arith.constant 0 : i32
    %c0_i32_0 = arith.constant 0 : i32
    return %c0_i32, %arg0 : i32, i32
  }
  func.func @transform_4(%arg0: i32) -> (i32, i32) {
    %c0_i32 = arith.constant 0 : i32
    %c0_i32_0 = arith.constant 0 : i32
    return %c0_i32, %arg0 : i32, i32
  }
}

module attributes {stable_mosaic.version = 11 : i64} {
  func.func @_conv2_proj_kernel(%arg0: i32, %arg1: memref<8x3072xbf16, #tpu.memory_space<vmem>>, %arg2: memref<4x1024xbf16, #tpu.memory_space<vmem>>, %arg3: memref<9x8x8xbf16, #tpu.memory_space<vmem>>, %arg4: memref<8x4xbf16, #tpu.memory_space<vmem>>, %arg5: memref<8x1xf32, #tpu.memory_space<vmem>>, %arg6: memref<8x1024xbf16, #tpu.memory_space<vmem>>) attributes {dimension_semantics = [#tpu.dimension_semantics<parallel>], iteration_bounds = array<i64: 3>, scalar_prefetch = 0 : i64, scratch_operands = 0 : i64, tpu.core_type = #tpu.core_type<tc>, window_params = [{pipeline_mode = #tpu.pipeline_mode<synchronous>, transform_indices = @transform_0, window_bounds = array<i64: 8, 3072>}, {transform_indices = @transform_1, window_bounds = array<i64: 4, 1024>}, {pipeline_mode = #tpu.pipeline_mode<synchronous>, transform_indices = @transform_2, window_bounds = array<i64: 9, 8, 8>}, {pipeline_mode = #tpu.pipeline_mode<synchronous>, transform_indices = @transform_3, window_bounds = array<i64: 8, 4>}, {pipeline_mode = #tpu.pipeline_mode<synchronous>, transform_indices = @transform_4, window_bounds = array<i64: 8, 1>}, {transform_indices = @transform_5, window_bounds = array<i64: 8, 1024>}]} {
    %c0_i32 = arith.constant 0 : i32
    %0 = arith.cmpi eq, %arg0, %c0_i32 : i32
    %c2_i32 = arith.constant 2 : i32
    %1 = arith.cmpi eq, %arg0, %c2_i32 : i32
    %2 = arith.ori %0, %1 : i1
    %3 = arith.extui %2 : i1 to i32
    %c0_i32_0 = arith.constant 0 : i32
    %4 = arith.cmpi ne, %3, %c0_i32_0 : i32
    scf.if %4 {
      %cst = arith.constant 0.000000e+00 : bf16
      %8 = vector.broadcast %cst : bf16 to vector<8x1024xbf16>
      %c0 = arith.constant 0 : index
      %c0_2 = arith.constant 0 : index
      %9 = vector.load %arg6[%c0, %c0_2] : memref<8x1024xbf16, #tpu.memory_space<vmem>>, vector<8x1024xbf16>
      tpu.vector_store %arg6[%c0, %c0_2], %8 {strides = array<i32>} : memref<8x1024xbf16, #tpu.memory_space<vmem>>, vector<8x1024xbf16>,
    } else {
    }
    %true = arith.constant true
    %5 = arith.xori %2, %true : i1
    %6 = arith.extui %5 : i1 to i32
    %c0_i32_1 = arith.constant 0 : i32
    %7 = arith.cmpi ne, %6, %c0_i32_1 : i32
    scf.if %7 {
      %c1024_i32 = arith.constant 1024 : i32
      %8 = arith.muli %arg0, %c1024_i32 : i32
      %c128_i32 = arith.constant 128 : i32
      %9 = arith.subi %8, %c128_i32 : i32
      %10 = tpu.assume_multiple %9, 128 : i32
      %c0 = arith.constant 0 : index
      %11 = arith.index_cast %10 : i32 to index
      %12 = vector.load %arg1[%c0, %11] : memref<8x3072xbf16, #tpu.memory_space<vmem>>, vector<8x1280xbf16>
      %13 = vector.extract_strided_slice %12 {offsets = [0, 117], sizes = [8, 1024], strides = [1, 1]} : vector<8x1280xbf16> to vector<8x1024xbf16>
      %c0_2 = arith.constant 0 : index
      %c0_3 = arith.constant 0 : index
      %c0_4 = arith.constant 0 : index
      %14 = vector.load %arg3[%c0_2, %c0_3, %c0_4] : memref<9x8x8xbf16, #tpu.memory_space<vmem>>, vector<1x8x8xbf16>
      %15 = vector.shape_cast %14 : vector<1x8x8xbf16> to vector<8x8xbf16>
      %cst = arith.constant dense<0.000000e+00> : vector<8x1024xf32>
      %16 = tpu.matmul %15, %13, %cst {dimension_numbers = #tpu.dot_dimension_numbers<[1], [0], [0], [1], [0, 0, 1, 1], [], []>} : vector<8x8xbf16>, vector<8x1024xbf16>, vector<8x1024xf32> -> vector<8x1024xf32>
      %17 = vector.extract_strided_slice %12 {offsets = [0, 118], sizes = [8, 1024], strides = [1, 1]} : vector<8x1280xbf16> to vector<8x1024xbf16>
      %c1 = arith.constant 1 : index
      %c0_5 = arith.constant 0 : index
      %c0_6 = arith.constant 0 : index
      %18 = vector.load %arg3[%c1, %c0_5, %c0_6] : memref<9x8x8xbf16, #tpu.memory_space<vmem>>, vector<1x8x8xbf16>
      %19 = vector.shape_cast %18 : vector<1x8x8xbf16> to vector<8x8xbf16>
      %cst_7 = arith.constant dense<0.000000e+00> : vector<8x1024xf32>
      %20 = tpu.matmul %19, %17, %cst_7 {dimension_numbers = #tpu.dot_dimension_numbers<[1], [0], [0], [1], [0, 0, 1, 1], [], []>} : vector<8x8xbf16>, vector<8x1024xbf16>, vector<8x1024xf32> -> vector<8x1024xf32>
      %21 = arith.addf %16, %20 : vector<8x1024xf32>
      %22 = vector.extract_strided_slice %12 {offsets = [0, 119], sizes = [8, 1024], strides = [1, 1]} : vector<8x1280xbf16> to vector<8x1024xbf16>
      %c2 = arith.constant 2 : index
      %c0_8 = arith.constant 0 : index
      %c0_9 = arith.constant 0 : index
      %23 = vector.load %arg3[%c2, %c0_8, %c0_9] : memref<9x8x8xbf16, #tpu.memory_space<vmem>>, vector<1x8x8xbf16>
      %24 = vector.shape_cast %23 : vector<1x8x8xbf16> to vector<8x8xbf16>
      %cst_10 = arith.constant dense<0.000000e+00> : vector<8x1024xf32>
      %25 = tpu.matmul %24, %22, %cst_10 {dimension_numbers = #tpu.dot_dimension_numbers<[1], [0], [0], [1], [0, 0, 1, 1], [], []>} : vector<8x8xbf16>, vector<8x1024xbf16>, vector<8x1024xf32> -> vector<8x1024xf32>
      %26 = arith.addf %21, %25 : vector<8x1024xf32>
      %27 = vector.extract_strided_slice %12 {offsets = [0, 127], sizes = [8, 1024], strides = [1, 1]} : vector<8x1280xbf16> to vector<8x1024xbf16>
      %c3 = arith.constant 3 : index
      %c0_11 = arith.constant 0 : index
      %c0_12 = arith.constant 0 : index
      %28 = vector.load %arg3[%c3, %c0_11, %c0_12] : memref<9x8x8xbf16, #tpu.memory_space<vmem>>, vector<1x8x8xbf16>
      %29 = vector.shape_cast %28 : vector<1x8x8xbf16> to vector<8x8xbf16>
      %cst_13 = arith.constant dense<0.000000e+00> : vector<8x1024xf32>
      %30 = tpu.matmul %29, %27, %cst_13 {dimension_numbers = #tpu.dot_dimension_numbers<[1], [0], [0], [1], [0, 0, 1, 1], [], []>} : vector<8x8xbf16>, vector<8x1024xbf16>, vector<8x1024xf32> -> vector<8x1024xf32>
      %31 = arith.addf %26, %30 : vector<8x1024xf32>
      %32 = vector.extract_strided_slice %12 {offsets = [0, 128], sizes = [8, 1024], strides = [1, 1]} : vector<8x1280xbf16> to vector<8x1024xbf16>
      %c4 = arith.constant 4 : index
      %c0_14 = arith.constant 0 : index
      %c0_15 = arith.constant 0 : index
      %33 = vector.load %arg3[%c4, %c0_14, %c0_15] : memref<9x8x8xbf16, #tpu.memory_space<vmem>>, vector<1x8x8xbf16>
      %34 = vector.shape_cast %33 : vector<1x8x8xbf16> to vector<8x8xbf16>
      %cst_16 = arith.constant dense<0.000000e+00> : vector<8x1024xf32>
      %35 = tpu.matmul %34, %32, %cst_16 {dimension_numbers = #tpu.dot_dimension_numbers<[1], [0], [0], [1], [0, 0, 1, 1], [], []>} : vector<8x8xbf16>, vector<8x1024xbf16>, vector<8x1024xf32> -> vector<8x1024xf32>
      %36 = arith.addf %31, %35 : vector<8x1024xf32>
      %37 = vector.extract_strided_slice %12 {offsets = [0, 129], sizes = [8, 1024], strides = [1, 1]} : vector<8x1280xbf16> to vector<8x1024xbf16>
      %c5 = arith.constant 5 : index
      %c0_17 = arith.constant 0 : index
      %c0_18 = arith.constant 0 : index
      %38 = vector.load %arg3[%c5, %c0_17, %c0_18] : memref<9x8x8xbf16, #tpu.memory_space<vmem>>, vector<1x8x8xbf16>
      %39 = vector.shape_cast %38 : vector<1x8x8xbf16> to vector<8x8xbf16>
      %cst_19 = arith.constant dense<0.000000e+00> : vector<8x1024xf32>
      %40 = tpu.matmul %39, %37, %cst_19 {dimension_numbers = #tpu.dot_dimension_numbers<[1], [0], [0], [1], [0, 0, 1, 1], [], []>} : vector<8x8xbf16>, vector<8x1024xbf16>, vector<8x1024xf32> -> vector<8x1024xf32>
      %41 = arith.addf %36, %40 : vector<8x1024xf32>
      %42 = vector.extract_strided_slice %12 {offsets = [0, 137], sizes = [8, 1024], strides = [1, 1]} : vector<8x1280xbf16> to vector<8x1024xbf16>
      %c6 = arith.constant 6 : index
      %c0_20 = arith.constant 0 : index
      %c0_21 = arith.constant 0 : index
      %43 = vector.load %arg3[%c6, %c0_20, %c0_21] : memref<9x8x8xbf16, #tpu.memory_space<vmem>>, vector<1x8x8xbf16>
      %44 = vector.shape_cast %43 : vector<1x8x8xbf16> to vector<8x8xbf16>
      %cst_22 = arith.constant dense<0.000000e+00> : vector<8x1024xf32>
      %45 = tpu.matmul %44, %42, %cst_22 {dimension_numbers = #tpu.dot_dimension_numbers<[1], [0], [0], [1], [0, 0, 1, 1], [], []>} : vector<8x8xbf16>, vector<8x1024xbf16>, vector<8x1024xf32> -> vector<8x1024xf32>
      %46 = arith.addf %41, %45 : vector<8x1024xf32>
      %47 = vector.extract_strided_slice %12 {offsets = [0, 138], sizes = [8, 1024], strides = [1, 1]} : vector<8x1280xbf16> to vector<8x1024xbf16>
      %c7 = arith.constant 7 : index
      %c0_23 = arith.constant 0 : index
      %c0_24 = arith.constant 0 : index
      %48 = vector.load %arg3[%c7, %c0_23, %c0_24] : memref<9x8x8xbf16, #tpu.memory_space<vmem>>, vector<1x8x8xbf16>
      %49 = vector.shape_cast %48 : vector<1x8x8xbf16> to vector<8x8xbf16>
      %cst_25 = arith.constant dense<0.000000e+00> : vector<8x1024xf32>
      %50 = tpu.matmul %49, %47, %cst_25 {dimension_numbers = #tpu.dot_dimension_numbers<[1], [0], [0], [1], [0, 0, 1, 1], [], []>} : vector<8x8xbf16>, vector<8x1024xbf16>, vector<8x1024xf32> -> vector<8x1024xf32>
      %51 = arith.addf %46, %50 : vector<8x1024xf32>
      %52 = vector.extract_strided_slice %12 {offsets = [0, 139], sizes = [8, 1024], strides = [1, 1]} : vector<8x1280xbf16> to vector<8x1024xbf16>
      %c8 = arith.constant 8 : index
      %c0_26 = arith.constant 0 : index
      %c0_27 = arith.constant 0 : index
      %53 = vector.load %arg3[%c8, %c0_26, %c0_27] : memref<9x8x8xbf16, #tpu.memory_space<vmem>>, vector<1x8x8xbf16>
      %54 = vector.shape_cast %53 : vector<1x8x8xbf16> to vector<8x8xbf16>
      %cst_28 = arith.constant dense<0.000000e+00> : vector<8x1024xf32>
      %55 = tpu.matmul %54, %52, %cst_28 {dimension_numbers = #tpu.dot_dimension_numbers<[1], [0], [0], [1], [0, 0, 1, 1], [], []>} : vector<8x8xbf16>, vector<8x1024xbf16>, vector<8x1024xf32> -> vector<8x1024xf32>
      %56 = arith.addf %51, %55 : vector<8x1024xf32>
      %c0_29 = arith.constant 0 : index
      %c0_30 = arith.constant 0 : index
      %57 = vector.load %arg4[%c0_29, %c0_30] : memref<8x4xbf16, #tpu.memory_space<vmem>>, vector<8x4xbf16>
      %c0_31 = arith.constant 0 : index
      %c0_32 = arith.constant 0 : index
      %58 = vector.load %arg2[%c0_31, %c0_32] : memref<4x1024xbf16, #tpu.memory_space<vmem>>, vector<4x1024xbf16>
      %cst_33 = arith.constant dense<0.000000e+00> : vector<8x1024xf32>
      %59 = tpu.matmul %57, %58, %cst_33 {dimension_numbers = #tpu.dot_dimension_numbers<[1], [0], [0], [1], [0, 0, 1, 1], [], []>} : vector<8x4xbf16>, vector<4x1024xbf16>, vector<8x1024xf32> -> vector<8x1024xf32>
      %60 = arith.addf %56, %59 : vector<8x1024xf32>
      %c0_34 = arith.constant 0 : index
      %c0_35 = arith.constant 0 : index
      %61 = vector.load %arg5[%c0_34, %c0_35] : memref<8x1xf32, #tpu.memory_space<vmem>>, vector<8x1xf32>
      %62 = vector.broadcast %61 : vector<8x1xf32> to vector<8x1024xf32>
      %63 = arith.addf %60, %62 : vector<8x1024xf32>
      %cst_36 = arith.constant 0.000000e+00 : f32
      %64 = vector.broadcast %cst_36 : f32 to vector<8x1024xf32>
      %65 = arith.maximumf %63, %64 : vector<8x1024xf32>
      %66 = arith.truncf %65 : vector<8x1024xf32> to vector<8x1024xbf16>
      %c0_37 = arith.constant 0 : index
      %c0_38 = arith.constant 0 : index
      %67 = vector.load %arg6[%c0_37, %c0_38] : memref<8x1024xbf16, #tpu.memory_space<vmem>>, vector<8x1024xbf16>
      tpu.vector_store %arg6[%c0_37, %c0_38], %66 {strides = array<i32>} : memref<8x1024xbf16, #tpu.memory_space<vmem>>, vector<8x1024xbf16>,
    } else {
    }
    return
  }
  func.func @transform_0(%arg0: i32) -> (i32, i32) {
    %c0_i32 = arith.constant 0 : i32
    %c0_i32_0 = arith.constant 0 : i32
    %c0_i32_1 = arith.constant 0 : i32
    return %c0_i32, %c0_i32_0 : i32, i32
  }
  func.func @transform_1(%arg0: i32) -> (i32, i32) {
    %c0_i32 = arith.constant 0 : i32
    %c0_i32_0 = arith.constant 0 : i32
    return %c0_i32, %arg0 : i32, i32
  }
  func.func @transform_2(%arg0: i32) -> (i32, i32, i32) {
    %c0_i32 = arith.constant 0 : i32
    %c0_i32_0 = arith.constant 0 : i32
    %c0_i32_1 = arith.constant 0 : i32
    %c0_i32_2 = arith.constant 0 : i32
    return %c0_i32, %c0_i32_0, %c0_i32_1 : i32, i32, i32
  }
  func.func @transform_3(%arg0: i32) -> (i32, i32) {
    %c0_i32 = arith.constant 0 : i32
    %c0_i32_0 = arith.constant 0 : i32
    %c0_i32_1 = arith.constant 0 : i32
    return %c0_i32, %c0_i32_0 : i32, i32
  }
  func.func @transform_4(%arg0: i32) -> (i32, i32) {
    %c0_i32 = arith.constant 0 : i32
    %c0_i32_0 = arith.constant 0 : i32
    %c0_i32_1 = arith.constant 0 : i32
    return %c0_i32, %c0_i32_0 : i32, i32
  }
  func.func @transform_5(%arg0: i32) -> (i32, i32) {
    %c0_i32 = arith.constant 0 : i32
    %c0_i32_0 = arith.constant 0 : i32
    return %c0_i32, %arg0 : i32, i32
  }
}

</mosaic_0001>

<llo_original>
// kernel: residual_forward.2
$region0: #{residual_forward.2}
  #allocation0 [shape = 'u32[]', space=smem, size = 0x4, offset = 0x4, fixed_abs, tag = 'smem constant byte address 0x4 - core index']
  #allocation1 [shape = 'u32[144,128]{1,0:T(1,128)}', space=vmem, size = 0x12000, scoped, tag = 'internal scratch']
  %s0 = inlined_call_operand.vmem [shape: bf16[36,3072], index: 0, kind: input, shape index: {}]
  %s1 = inlined_call_operand.vmem [shape: bf16[8,36], index: 1, kind: input, shape index: {}]
  %s2 = inlined_call_operand.vmem [shape: f32[8,1], index: 2, kind: input, shape index: {}]
  %s3 = inlined_call_operand.vmem [shape: bf16[1,3072], index: 3, kind: input, shape index: {}]
  %s4 = inlined_call_operand.vmem [shape: bf16[8,3072], index: 4, kind: output, shape index: {}]
  %s5 = sld [smem:[#allocation0]]
  $region72: #{residual_forward.2} parent=0
    _
  %s7 = ssub.s32 1, %s5
  %s8 = scalar_select 0, %s7, %s5
  $region1: #{residual_forward.2} parent=0
    #allocation2 [shape = 'u8[163840]{0}', space=vmem, size = 0x28000, scoped, tag = 'input window, operand 0']
    loop: start=0, step=1, limit=5
    $region2: #{residual_forward.2} parent=1 // loop_pre_header
      _
    $region3: #{residual_forward.2} parent=1 // loop_header
      %s10 = sphi 0, %s14
      %p11 = scmp.ge.s32.totalorder %s10, 5
      %s20 = sphi 0, %s22
      %s23 = sphi 0, %s20
      %s24 = sphi 0, %s23
      %s40 = sphi 0, %s24
      %s44 = sphi 0, %s44
      %s46 = sphi 0, %s44
      %s47 = sphi 0, %s46
      %s61 = sphi 0, %s47
      %s65 = sphi 0, %s65
      %s67 = sphi 0, %s65
      %s68 = sphi 0, %s67
      %s82 = sphi 0, %s68
      %s88 = sphi 0, %s90
      %s91 = sphi 0, %s88
      %s92 = sphi 0, %s91
      %s108 = sphi 0, %s92
      %s114 = sphi 0, %s116
      %s117 = sphi 0, %s114
      %s118 = sphi 0, %s117
      %s134 = sphi 0, %s118
    $region4: #{residual_forward.2} parent=1 // loop_header_branch
      %13 = sbr.rel (%p11) target = $region8
    $region5: #{residual_forward.2} parent=1 // loop_body
      %s15 = ssub.s32 %s10, 1
      %s16 = ssub.s32 %s10, 2
      %s17 = sadd.s32 %s10, 1
      %s18 = ssub.s32 %s10, %s17
      %p19 = scmp.eq.s32.totalorder %s18, 0
      %s21 = sadd.s32 %s20, 1
      %s22 = scalar_select %p19, %s20, %s21
      %p25 = pneg %p19
      %p26 = scmp.eq.s32.totalorder %s10, 2
      %p27 = por %p25, %p26
      %p28 = scmp.ne.s32.totalorder %s20, %s23
      %p29 = scmp.eq.s32.totalorder %s10, 0
      %p30 = por %p28, %p29
      %p31 = scmp.ne.s32.totalorder %s20, %s23
      %p32 = scmp.eq.s32.totalorder %s15, 2
      %p33 = por %p31, %p32
      %p34 = scmp.ne.s32.totalorder %s23, %s24
      %p35 = scmp.eq.s32.totalorder %s15, 0
      %p36 = por %p34, %p35
      %p37 = scmp.ne.s32.totalorder %s23, %s24
      %p38 = scmp.eq.s32.totalorder %s16, 2
      %p39 = por %p37, %p38
      %p41 = scmp.ne.s32.totalorder %s24, %s40
      %p42 = scmp.eq.s32.totalorder %s16, 0
      %p43 = por %p41, %p42
      %s45 = sadd.s32 %s44, 1
      %p48 = scmp.eq.s32.totalorder %s10, 2
      %p49 = scmp.ne.s32.totalorder %s44, %s46
      %p50 = scmp.eq.s32.totalorder %s10, 0
      %p51 = por %p49, %p50
      %p52 = scmp.ne.s32.totalorder %s44, %s46
      %p53 = scmp.eq.s32.totalorder %s15, 2
      %p54 = por %p52, %p53
      %p55 = scmp.ne.s32.totalorder %s46, %s47
      %p56 = scmp.eq.s32.totalorder %s15, 0
      %p57 = por %p55, %p56
      %p58 = scmp.ne.s32.totalorder %s46, %s47
      %p59 = scmp.eq.s32.totalorder %s16, 2
      %p60 = por %p58, %p59
      %p62 = scmp.ne.s32.totalorder %s47, %s61
      %p63 = scmp.eq.s32.totalorder %s16, 0
      %p64 = por %p62, %p63
      %s66 = sadd.s32 %s65, 1
      %p69 = scmp.eq.s32.totalorder %s10, 2
      %p70 = scmp.ne.s32.totalorder %s65, %s67
      %p71 = scmp.eq.s32.totalorder %s10, 0
      %p72 = por %p70, %p71
      %p73 = scmp.ne.s32.totalorder %s65, %s67
      %p74 = scmp.eq.s32.totalorder %s15, 2
      %p75 = por %p73, %p74
      %p76 = scmp.ne.s32.totalorder %s67, %s68
      %p77 = scmp.eq.s32.totalorder %s15, 0
      %p78 = por %p76, %p77
      %p79 = scmp.ne.s32.totalorder %s67, %s68
      %p80 = scmp.eq.s32.totalorder %s16, 2
      %p81 = por %p79, %p80
      %p83 = scmp.ne.s32.totalorder %s68, %s82
      %p84 = scmp.eq.s32.totalorder %s16, 0
      %p85 = por %p83, %p84
      %s86 = ssub.s32 %s10, %s17
      %p87 = scmp.eq.s32.totalorder %s86, 0
      %s89 = sadd.s32 %s88, 1
      %s90 = scalar_select %p87, %s88, %s89
      %p93 = pneg %p87
      %p94 = scmp.eq.s32.totalorder %s10, 2
      %p95 = por %p93, %p94
      %p96 = scmp.ne.s32.totalorder %s88, %s91
      %p97 = scmp.eq.s32.totalorder %s10, 0
      %p98 = por %p96, %p97
      %p99 = scmp.ne.s32.totalorder %s88, %s91
      %p100 = scmp.eq.s32.totalorder %s15, 2
      %p101 = por %p99, %p100
      %p102 = scmp.ne.s32.totalorder %s91, %s92
      %p103 = scmp.eq.s32.totalorder %s15, 0
      %p104 = por %p102, %p103
      %p105 = scmp.ne.s32.totalorder %s91, %s92
      %p106 = scmp.eq.s32.totalorder %s16, 2
      %p107 = por %p105, %p106
      %p109 = scmp.ne.s32.totalorder %s92, %s108
      %p110 = scmp.eq.s32.totalorder %s16, 0
      %p111 = por %p109, %p110
      %s112 = ssub.s32 %s10, %s17
      %p113 = scmp.eq.s32.totalorder %s112, 0
      %s115 = sadd.s32 %s114, 1
      %s116 = scalar_select %p113, %s114, %s115
      %p119 = pneg %p113
      %p120 = scmp.eq.s32.totalorder %s10, 2
      %p121 = por %p119, %p120
      %p122 = scmp.ne.s32.totalorder %s114, %s117
      %p123 = scmp.eq.s32.totalorder %s10, 0
      %p124 = por %p122, %p123
      %p125 = scmp.ne.s32.totalorder %s114, %s117
      %p126 = scmp.eq.s32.totalorder %s15, 2
      %p127 = por %p125, %p126
      %p128 = scmp.ne.s32.totalorder %s117, %s118
      %p129 = scmp.eq.s32.totalorder %s15, 0
      %p130 = por %p128, %p129
      %p131 = scmp.ne.s32.totalorder %s117, %s118
      %p132 = scmp.eq.s32.totalorder %s16, 2
      %p133 = por %p131, %p132
      %p135 = scmp.ne.s32.totalorder %s118, %s134
      %p136 = scmp.eq.s32.totalorder %s16, 0
      %p137 = por %p135, %p136
      %p138 = scmp.le.s32.totalorder 1, %s10
      %p139 = scmp.lt.s32.totalorder %s10, 4
      %p140 = pnand %p138, %p139
      %p141 = pneg %p140
      // Predicated region
      $region9: #{residual_forward.2} parent=5 // pred_check
        _
      $region10: #{residual_forward.2} parent=5 // pred_check_branch
        %143 = sbr.rel (%p140) target = $region12
      $region11: #{residual_forward.2} parent=5 // pred_region
        %s144 = ssub.s32 %s10, 1
        // Predicated region
        $region13: #{residual_forward.2} parent=11 // pred_check
          %p145 = pneg %p57
        $region14: #{residual_forward.2} parent=11 // pred_check_branch
          %147 = sbr.rel (%p145) target = $region16
        $region15: #{residual_forward.2} parent=11 // pred_region
          _
        $region16: #{residual_forward.2} parent=11 // pred_fallthru
          _
        // Predicated region
        $region17: #{residual_forward.2} parent=11 // pred_check
          %p148 = pneg %p78
        $region18: #{residual_forward.2} parent=11 // pred_check_branch
          %150 = sbr.rel (%p148) target = $region20
        $region19: #{residual_forward.2} parent=11 // pred_region
          _
        $region20: #{residual_forward.2} parent=11 // pred_fallthru
          _
      $region12: #{residual_forward.2} parent=5 // pred_fallthru
        _
      %p151 = scmp.lt.s32.totalorder %s10, 3
      // Predicated region
      $region21: #{residual_forward.2} parent=5 // pred_check
        %p152 = pneg %p151
      $region22: #{residual_forward.2} parent=5 // pred_check_branch
        %154 = sbr.rel (%p152) target = $region24
      $region23: #{residual_forward.2} parent=5 // pred_region
        // Predicated region
        $region25: #{residual_forward.2} parent=23 // pred_check
          %p155 = pneg %p30
        $region26: #{residual_forward.2} parent=23 // pred_check_branch
          %157 = sbr.rel (%p155) target = $region28
        $region27: #{residual_forward.2} parent=23 // pred_region
          %s158 = sand.u32 %s20, 1
          %s159 = sand.u32 %s20, 1
          %s160 = smul.addr %s159, 160
          %s161 = scalar_lea.vmem [#allocation2], %s160
          %s162 = smul.u32 8, %s10
          %s163 = smul.addr %s162, 4
          %s164 = scalar_lea.vmem %s0, %s163
          // Predicated region
          $region29: #{residual_forward.2} parent=27 // pred_check
            _
          $region30: #{residual_forward.2} parent=27 // pred_check_branch
            %166 = sbr.rel (0) target = $region32
          $region31: #{residual_forward.2} parent=27 // pred_region
            // Predicated region
            $region33: #{residual_forward.2} parent=31 // pred_check
              _
            $region34: #{residual_forward.2} parent=31 // pred_check_branch
              %168 = sbr.rel (0) target = $region36
            $region35: #{residual_forward.2} parent=31 // pred_region
              loop: start=0, step=1, limit=1
              $region37: #{residual_forward.2} parent=35 // loop_pre_header
                _
              $region38: #{residual_forward.2} parent=35 // loop_header
                %s170 = sphi 0, %s174
                %p171 = scmp.ge.s32.totalorder %s170, 1
                %s175 = sphi %s164, %s164
                %s176 = sphi %s161, %s161
              $region39: #{residual_forward.2} parent=35 // loop_header_branch
                %173 = sbr.rel (%p171) target = $region43
              $region40: #{residual_forward.2} parent=35 // loop_body
                %v177 = vld [vmem:[%s175] sm:$0xff]
                %178 = vst [vmem:[%s176] sm:$0xff] %v177
                %v179 = vld [vmem:[%s175 + $0x8] sm:$0xff]
                %180 = vst [vmem:[%s176 + $0x8] sm:$0xff] %v179
                %v181 = vld [vmem:[%s175 + $0x10] sm:$0xff]
                %182 = vst [vmem:[%s176 + $0x10] sm:$0xff] %v181
                %v183 = vld [vmem:[%s175 + $0x18] sm:$0xff]
                %184 = vst [vmem:[%s176 + $0x18] sm:$0xff] %v183
                %v185 = vld [vmem:[%s175 + $0x60] sm:$0xff]
                %186 = vst [vmem:[%s176 + $0x20] sm:$0xff] %v185
                %v187 = vld [vmem:[%s175 + $0x68] sm:$0xff]
                %188 = vst [vmem:[%s176 + $0x28] sm:$0xff] %v187
                %v189 = vld [vmem:[%s175 + $0x70] sm:$0xff]
                %190 = vst [vmem:[%s176 + $0x30] sm:$0xff] %v189
                %v191 = vld [vmem:[%s175 + $0x78] sm:$0xff]
                %192 = vst [vmem:[%s176 + $0x38] sm:$0xff] %v191
                %v193 = vld [vmem:[%s175 + $0xc0] sm:$0xff]
                %194 = vst [vmem:[%s176 + $0x40] sm:$0xff] %v193
                %v195 = vld [vmem:[%s175 + $0xc8] sm:$0xff]
                %196 = vst [vmem:[%s176 + $0x48] sm:$0xff] %v195
                %v197 = vld [vmem:[%s175 + $0xd0] sm:$0xff]
                %198 = vst [vmem:[%s176 + $0x50] sm:$0xff] %v197
                %v199 = vld [vmem:[%s175 + $0xd8] sm:$0xff]
                %200 = vst [vmem:[%s176 + $0x58] sm:$0xff] %v199
                %v201 = vld [vmem:[%s175 + $0x120] sm:$0xff]
                %202 = vst [vmem:[%s176 + $0x60] sm:$0xff] %v201
                %v203 = vld [vmem:[%s175 + $0x128] sm:$0xff]
                %204 = vst [vmem:[%s176 + $0x68] sm:$0xff] %v203
                %v205 = vld [vmem:[%s175 + $0x130] sm:$0xff]
                %206 = vst [vmem:[%s176 + $0x70] sm:$0xff] %v205
                %v207 = vld [vmem:[%s175 + $0x138] sm:$0xff]
                %208 = vst [vmem:[%s176 + $0x78] sm:$0xff] %v207
                %v209 = vld [vmem:[%s175 + $0x180] sm:$0xff]
                %210 = vst [vmem:[%s176 + $0x80] sm:$0xff] %v209
                %v211 = vld [vmem:[%s175 + $0x188] sm:$0xff]
                %212 = vst [vmem:[%s176 + $0x88] sm:$0xff] %v211
                %v213 = vld [vmem:[%s175 + $0x190] sm:$0xff]
                %214 = vst [vmem:[%s176 + $0x90] sm:$0xff] %v213
                %v215 = vld [vmem:[%s175 + $0x198] sm:$0xff]
                %216 = vst [vmem:[%s176 + $0x98] sm:$0xff] %v215
              $region41: #{residual_forward.2} parent=35 // loop_footer
                %s174 = sadd.s32 1, %s170
              $region42: #{residual_forward.2} parent=35 // loop_footer_branch
                %169 = sbr.rel target = $region38
              $region43: #{residual_forward.2} parent=35 // loop_exit
                _
            $region36: #{residual_forward.2} parent=31 // pred_fallthru
              _
            // Predicated region
            $region44: #{residual_forward.2} parent=31 // pred_check
              _
            $region45: #{residual_forward.2} parent=31 // pred_check_branch
              %218 = sbr.rel target = $region47
            $region46: #{residual_forward.2} parent=31 // pred_region
              _
            $region47: #{residual_forward.2} parent=31 // pred_fallthru
              _
          $region32: #{residual_forward.2} parent=27 // pred_fallthru
            _
          %219 = vnop
        $region28: #{residual_forward.2} parent=23 // pred_fallthru
          _
        // Predicated region
        $region48: #{residual_forward.2} parent=23 // pred_check
          %p220 = pneg %p98
        $region49: #{residual_forward.2} parent=23 // pred_check_branch
          %222 = sbr.rel (%p220) target = $region51
        $region50: #{residual_forward.2} parent=23 // pred_region
          %s223 = smul.u32 8, %s10
          %p224 = scmp.lt.s32.totalorder %s223, 23
          %s225 = scalar_select %p224, %s223, 23
          %s226 = scalar_lea.vmem %s3, %s225
          %s227 = smul.u32 8, %s10
        $region51: #{residual_forward.2} parent=23 // pred_fallthru
          _
      $region24: #{residual_forward.2} parent=5 // pred_fallthru
        _
      %p228 = scmp.le.s32.totalorder 1, %s10
      %p229 = scmp.lt.s32.totalorder %s10, 4
      %p230 = pnand %p228, %p229
      %p231 = pneg %p230
      // Predicated region
      $region52: #{residual_forward.2} parent=5 // pred_check
        _
      $region53: #{residual_forward.2} parent=5 // pred_check_branch
        %233 = sbr.rel (%p230) target = $region55
      $region54: #{residual_forward.2} parent=5 // pred_region
        %s234 = ssub.s32 %s10, 1
        %s235 = sand.u32 %s23, 1
        %s236 = sand.u32 %s23, 1
        %s237 = smul.addr %s236, 160
        %s238 = scalar_lea.vmem [#allocation2], %s237
        // Predicated region
        $region56: #{residual_forward.2} parent=54 // pred_check
          %p239 = pneg %p36
        $region57: #{residual_forward.2} parent=54 // pred_check_branch
          %241 = sbr.rel (%p239) target = $region59
        $region58: #{residual_forward.2} parent=54 // pred_region
          _
        $region59: #{residual_forward.2} parent=54 // pred_fallthru
          _
        %s242 = sand.u32 %s23, 1
        %s243 = sand.u32 %s23, 1
        %s244 = smul.addr %s243, 160
        %s245 = scalar_lea.vmem [#allocation2], %s244
        %p246 = pneg %p36
        %p247 = pneg %p33
        %p248 = pneg %p57
        %p249 = pneg %p54
        %p250 = pneg %p78
        %p251 = pneg %p75
        %s252 = smul.u32 8, %s15
        %p253 = scmp.lt.s32.totalorder %s252, 23
        %s254 = scalar_select %p253, %s252, 23
        %s255 = scalar_lea.vmem %s3, %s254
        %p256 = pneg %p104
        %p257 = pneg %p101
        %p258 = pneg %p130
        %p259 = pneg %p127
        %s260 = smul.u32 8, %s15
        %p261 = scmp.lt.s32.totalorder %s260, 23
        %s262 = scalar_select %p261, %s260, 23
        %s263 = smul.addr %s262, 4
        %s264 = scalar_lea.vmem %s4, %s263
        %s265 = smul.u32 8, %s15
        %s266 = smul.u32 8, %s15
        %p267 = scmp.lt.s32.totalorder %s266, 23
        %s268 = scalar_select %p267, %s266, 23
        %s269 = scalar_lea.vmem %s3, %s268
        %s270 = smul.u32 8, %s15
        %s271 = smul.u32 8, %s15
        %p272 = scmp.lt.s32.totalorder %s271, 23
        %s273 = scalar_select %p272, %s271, 23
        %s274 = smul.addr %s273, 4
        %s275 = scalar_lea.vmem %s4, %s274
        %s276 = smul.u32 8, %s15
        %v278 = vld [vmem:[%s1] sm:$0xf]
        %v279 = vld [vmem:[%s238] sm:$0xff]
        %v280 = vld [vmem:[%s238 + $0x8] sm:$0xff]
        %v281 = vld [vmem:[%s238 + $0x10] sm:$0xff]
        %v282 = vld [vmem:[%s238 + $0x18] sm:$0xff]
        %v283 = vld [vmem:[%s238 + $0x20] sm:$0xff]
        %v284 = vld [vmem:[%s238 + $0x28] sm:$0xff]
        %v285 = vld [vmem:[%s238 + $0x30] sm:$0xff]
        %v286 = vld [vmem:[%s238 + $0x38] sm:$0xff]
        %v287 = vld [vmem:[%s238 + $0x40] sm:$0xff]
        %v288 = vld [vmem:[%s238 + $0x48] sm:$0xff]
        %v289 = vld [vmem:[%s238 + $0x50] sm:$0xff]
        %v290 = vld [vmem:[%s238 + $0x58] sm:$0xff]
        %v291 = vld [vmem:[%s238 + $0x60] sm:$0xff]
        %v292 = vld [vmem:[%s238 + $0x68] sm:$0xff]
        %v293 = vld [vmem:[%s238 + $0x70] sm:$0xff]
        %v294 = vld [vmem:[%s238 + $0x78] sm:$0xff]
        %v295 = vld [vmem:[%s238 + $0x80] sm:$0x33]
        %v296 = vld [vmem:[%s238 + $0x88] sm:$0x33]
        %v297 = vld [vmem:[%s238 + $0x90] sm:$0x33]
        %v298 = vld [vmem:[%s238 + $0x98] sm:$0x33]
        %v299 = vld [vmem:[%s2] sm:$0xff]
        %301 = vset.pattern.permute.xlu0 0
        %302 = vperm.xlu0 %301, %v299
        %v303 = vpop.permute.xlu0 %302
        %v325 = vunpack.c.l.b16 %v279
        %v326 = vunpack.c.h.b16 %v279
        %v327 = vunpack.c.l.b16 %v280
        %v328 = vunpack.c.h.b16 %v280
        %v329 = vunpack.c.l.b16 %v281
        %v330 = vunpack.c.h.b16 %v281
        %v331 = vunpack.c.l.b16 %v282
        %v332 = vunpack.c.h.b16 %v282
        %v333 = vunpack.c.l.b16 %v283
        %v334 = vunpack.c.h.b16 %v283
        %v335 = vunpack.c.l.b16 %v284
        %v336 = vunpack.c.h.b16 %v284
        %v337 = vunpack.c.l.b16 %v285
        %v338 = vunpack.c.h.b16 %v285
        %v339 = vunpack.c.l.b16 %v286
        %v340 = vunpack.c.h.b16 %v286
        %v341 = vunpack.c.l.b16 %v287
        %v342 = vunpack.c.h.b16 %v287
        %v343 = vunpack.c.l.b16 %v288
        %v344 = vunpack.c.h.b16 %v288
        %v345 = vunpack.c.l.b16 %v289
        %v346 = vunpack.c.h.b16 %v289
        %v347 = vunpack.c.l.b16 %v290
        %v348 = vunpack.c.h.b16 %v290
        %v349 = vunpack.c.l.b16 %v291
        %v350 = vunpack.c.h.b16 %v291
        %v351 = vunpack.c.l.b16 %v292
        %v352 = vunpack.c.h.b16 %v292
        %v353 = vunpack.c.l.b16 %v293
        %v354 = vunpack.c.h.b16 %v293
        %v355 = vunpack.c.l.b16 %v294
        %v356 = vunpack.c.h.b16 %v294
        %v357 = vunpack.c.l.b16 %v295
        %v358 = vunpack.c.h.b16 %v295
        %v359 = vunpack.c.l.b16 %v296
        %v360 = vunpack.c.h.b16 %v296
        %v361 = vunpack.c.l.b16 %v297
        %v362 = vunpack.c.h.b16 %v297
        %v363 = vunpack.c.l.b16 %v298
        %v364 = vunpack.c.h.b16 %v298
        %v365 = vpack.c.b16 %v333, %v325
        %v366 = vpack.c.b16 %v334, %v326
        %v367 = vpack.c.b16 %v335, %v327
        %v368 = vpack.c.b16 %v336, %v328
        %v369 = vpack.c.b16 %v337, %v329
        %v370 = vpack.c.b16 %v338, %v330
        %v371 = vpack.c.b16 %v339, %v331
        %v372 = vpack.c.b16 %v340, %v332
        %v373 = vpack.c.b16 %v349, %v341
        %v374 = vpack.c.b16 %v350, %v342
        %v375 = vpack.c.b16 %v351, %v343
        %v376 = vpack.c.b16 %v352, %v344
        %v377 = vpack.c.b16 %v353, %v345
        %v378 = vpack.c.b16 %v354, %v346
        %v379 = vpack.c.b16 %v355, %v347
        %v380 = vpack.c.b16 %v356, %v348
        %v381 = vpack.c.b16 %v357, %v357
        %v382 = vpack.c.b16 %v358, %v358
        %v383 = vpack.c.b16 %v359, %v359
        %v384 = vpack.c.b16 %v360, %v360
        %v385 = vpack.c.b16 %v361, %v361
        %v386 = vpack.c.b16 %v362, %v362
        %v387 = vpack.c.b16 %v363, %v363
        %v388 = vpack.c.b16 %v364, %v364
        %vm405 = vcmask 293888
        %v407 = vsel %vm405, %v278, 0
        %vm409 = vcmask 1041408
        %v411 = vsel %vm409, %v381, 0
        %v414 = vsel %vm409, %v382, 0
        %v417 = vsel %vm409, %v383, 0
        %v420 = vsel %vm409, %v384, 0
        %v423 = vsel %vm409, %v385, 0
        %v426 = vsel %vm409, %v386, 0
        %v429 = vsel %vm409, %v387, 0
        %v432 = vsel %vm409, %v388, 0
        %434 = vmatprep.subr.bf16.mxu0 0
        %435 = vmatpush1.bf16.msra.mxu0 0
        %436 = vmatprep.subr.bf16.mxu0 0
        %437 = vmatpush1.bf16.msra.mxu0 0
        %438 = vmatprep.subr.bf16.mxu0 0
        %439 = vmatpush1.bf16.msra.mxu0 0
        %440 = vmatprep.subr.bf16.mxu0 0
        %441 = vmatpush1.bf16.msra.mxu0 0
        %442 = vmatprep.subr.bf16.mxu0 0
        %443 = vmatpush1.bf16.msra.mxu0 0
        %444 = vmatprep.subr.bf16.mxu0 %v414
        %445 = vmatpush1.bf16.msra.mxu0 %v411
        %446 = vmatprep.subr.bf16.mxu0 %v374
        %447 = vmatpush1.bf16.msra.mxu0 %v373
        %448 = vmatprep.subr.bf16.mxu0 %v366
        %449 = vmatpush1.bf16.msra.mxu0 %v365
        %450 = vmatprep.subr.bf16.mxu0 0
        %451 = vmatpush2.bf16.msra.mxu0 0
        %452 = vmatprep.subr.bf16.mxu0 0
        %453 = vmatpush2.bf16.msra.mxu0 0
        %454 = vmatprep.subr.bf16.mxu0 0
        %455 = vmatpush2.bf16.msra.mxu0 0
        %456 = vmatprep.subr.bf16.mxu0 0
        %457 = vmatpush2.bf16.msra.mxu0 0
        %458 = vmatprep.subr.bf16.mxu0 0
        %459 = vmatpush2.bf16.msra.mxu0 0
        %460 = vmatprep.subr.bf16.mxu0 0
        %461 = vmatpush2.bf16.msra.mxu0 0
        %462 = vmatprep.subr.bf16.mxu0 0
        %463 = vmatpush2.bf16.msra.mxu0 0
        %464 = vmatprep.subr.bf16.mxu0 0
        %465 = vmatpush2.bf16.msra.mxu0 0
        %466 = vmatprep.mubr.bf16.mxu0 0
        %467 = vmatmul.mubr.bf16.gmra.mxu0 %v407
        %v468 = vpop.f32.mrf.mxu0
        %v469 = vadd.f32 %v303, %v468
        %v470 = vpop.f32.mrf.mxu0
        %v471 = vadd.f32 %v303, %v470
        %v472 = vpop.f32.mrf.mxu0
        %v473 = vpop.f32.mrf.mxu0
        %474 = vdwg.mxu0
        %475 = vmatprep.subr.bf16.mxu0 0
        %476 = vmatpush1.bf16.msra.mxu0 0
        %477 = vmatprep.subr.bf16.mxu0 0
        %478 = vmatpush1.bf16.msra.mxu0 0
        %479 = vmatprep.subr.bf16.mxu0 0
        %480 = vmatpush1.bf16.msra.mxu0 0
        %481 = vmatprep.subr.bf16.mxu0 0
        %482 = vmatpush1.bf16.msra.mxu0 0
        %483 = vmatprep.subr.bf16.mxu0 0
        %484 = vmatpush1.bf16.msra.mxu0 0
        %485 = vmatprep.subr.bf16.mxu0 %v420
        %486 = vmatpush1.bf16.msra.mxu0 %v417
        %487 = vmatprep.subr.bf16.mxu0 %v376
        %488 = vmatpush1.bf16.msra.mxu0 %v375
        %489 = vmatprep.subr.bf16.mxu0 %v368
        %490 = vmatpush1.bf16.msra.mxu0 %v367
        %491 = vmatprep.subr.bf16.mxu0 0
        %492 = vmatpush2.bf16.msra.mxu0 0
        %493 = vmatprep.subr.bf16.mxu0 0
        %494 = vmatpush2.bf16.msra.mxu0 0
        %495 = vmatprep.subr.bf16.mxu0 0
        %496 = vmatpush2.bf16.msra.mxu0 0
        %497 = vmatprep.subr.bf16.mxu0 0
        %498 = vmatpush2.bf16.msra.mxu0 0
        %499 = vmatprep.subr.bf16.mxu0 0
        %500 = vmatpush2.bf16.msra.mxu0 0
        %501 = vmatprep.subr.bf16.mxu0 0
        %502 = vmatpush2.bf16.msra.mxu0 0
        %503 = vmatprep.subr.bf16.mxu0 0
        %504 = vmatpush2.bf16.msra.mxu0 0
        %505 = vmatprep.subr.bf16.mxu0 0
        %506 = vmatpush2.bf16.msra.mxu0 0
        %507 = vmatprep.mubr.bf16.mxu0 0
        %508 = vmatmul.mubr.bf16.gmra.mxu0 %v407
        %v509 = vpop.f32.mrf.mxu0
        %v510 = vadd.f32 %v303, %v509
        %v511 = vpop.f32.mrf.mxu0
        %v512 = vadd.f32 %v303, %v511
        %v513 = vpop.f32.mrf.mxu0
        %v514 = vpop.f32.mrf.mxu0
        %515 = vdwg.mxu0
        %516 = vmatprep.subr.bf16.mxu0 0
        %517 = vmatpush1.bf16.msra.mxu0 0
        %518 = vmatprep.subr.bf16.mxu0 0
        %519 = vmatpush1.bf16.msra.mxu0 0
        %520 = vmatprep.subr.bf16.mxu0 0
        %521 = vmatpush1.bf16.msra.mxu0 0
        %522 = vmatprep.subr.bf16.mxu0 0
        %523 = vmatpush1.bf16.msra.mxu0 0
        %524 = vmatprep.subr.bf16.mxu0 0
        %525 = vmatpush1.bf16.msra.mxu0 0
        %526 = vmatprep.subr.bf16.mxu0 %v426
        %527 = vmatpush1.bf16.msra.mxu0 %v423
        %528 = vmatprep.subr.bf16.mxu0 %v378
        %529 = vmatpush1.bf16.msra.mxu0 %v377
        %530 = vmatprep.subr.bf16.mxu0 %v370
        %531 = vmatpush1.bf16.msra.mxu0 %v369
        %532 = vmatprep.subr.bf16.mxu0 0
        %533 = vmatpush2.bf16.msra.mxu0 0
        %534 = vmatprep.subr.bf16.mxu0 0
        %535 = vmatpush2.bf16.msra.mxu0 0
        %536 = vmatprep.subr.bf16.mxu0 0
        %537 = vmatpush2.bf16.msra.mxu0 0
        %538 = vmatprep.subr.bf16.mxu0 0
        %539 = vmatpush2.bf16.msra.mxu0 0
        %540 = vmatprep.subr.bf16.mxu0 0
        %541 = vmatpush2.bf16.msra.mxu0 0
        %542 = vmatprep.subr.bf16.mxu0 0
        %543 = vmatpush2.bf16.msra.mxu0 0
        %544 = vmatprep.subr.bf16.mxu0 0
        %545 = vmatpush2.bf16.msra.mxu0 0
        %546 = vmatprep.subr.bf16.mxu0 0
        %547 = vmatpush2.bf16.msra.mxu0 0
        %548 = vmatprep.mubr.bf16.mxu0 0
        %549 = vmatmul.mubr.bf16.gmra.mxu0 %v407
        %v550 = vpop.f32.mrf.mxu0
        %v551 = vadd.f32 %v303, %v550
        %v552 = vpop.f32.mrf.mxu0
        %v553 = vadd.f32 %v303, %v552
        %v554 = vpop.f32.mrf.mxu0
        %v555 = vpop.f32.mrf.mxu0
        %556 = vdwg.mxu0
        %557 = vmatprep.subr.bf16.mxu0 0
        %558 = vmatpush1.bf16.msra.mxu0 0
        %559 = vmatprep.subr.bf16.mxu0 0
        %560 = vmatpush1.bf16.msra.mxu0 0
        %561 = vmatprep.subr.bf16.mxu0 0
        %562 = vmatpush1.bf16.msra.mxu0 0
        %563 = vmatprep.subr.bf16.mxu0 0
        %564 = vmatpush1.bf16.msra.mxu0 0
        %565 = vmatprep.subr.bf16.mxu0 0
        %566 = vmatpush1.bf16.msra.mxu0 0
        %567 = vmatprep.subr.bf16.mxu0 %v432
        %568 = vmatpush1.bf16.msra.mxu0 %v429
        %569 = vmatprep.subr.bf16.mxu0 %v380
        %570 = vmatpush1.bf16.msra.mxu0 %v379
        %571 = vmatprep.subr.bf16.mxu0 %v372
        %572 = vmatpush1.bf16.msra.mxu0 %v371
        %573 = vmatprep.subr.bf16.mxu0 0
        %574 = vmatpush2.bf16.msra.mxu0 0
        %575 = vmatprep.subr.bf16.mxu0 0
        %576 = vmatpush2.bf16.msra.mxu0 0
        %577 = vmatprep.subr.bf16.mxu0 0
        %578 = vmatpush2.bf16.msra.mxu0 0
        %579 = vmatprep.subr.bf16.mxu0 0
        %580 = vmatpush2.bf16.msra.mxu0 0
        %581 = vmatprep.subr.bf16.mxu0 0
        %582 = vmatpush2.bf16.msra.mxu0 0
        %583 = vmatprep.subr.bf16.mxu0 0
        %584 = vmatpush2.bf16.msra.mxu0 0
        %585 = vmatprep.subr.bf16.mxu0 0
        %586 = vmatpush2.bf16.msra.mxu0 0
        %587 = vmatprep.subr.bf16.mxu0 0
        %588 = vmatpush2.bf16.msra.mxu0 0
        %589 = vmatprep.mubr.bf16.mxu0 0
        %590 = vmatmul.mubr.bf16.gmra.mxu0 %v407
        %v591 = vpop.f32.mrf.mxu0
        %v592 = vadd.f32 %v303, %v591
        %v593 = vpop.f32.mrf.mxu0
        %v594 = vadd.f32 %v303, %v593
        %v595 = vpop.f32.mrf.mxu0
        %v596 = vpop.f32.mrf.mxu0
        %597 = vdwg.mxu0
        %v598 = vmax.f32 %v469, 0.0
        %v599 = vmax.f32 %v471, 0.0
        %v600 = vmax.f32 %v510, 0.0
        %v601 = vmax.f32 %v512, 0.0
        %v602 = vmax.f32 %v551, 0.0
        %v603 = vmax.f32 %v553, 0.0
        %v604 = vmax.f32 %v592, 0.0
        %v605 = vmax.f32 %v594, 0.0
        %v606 = vld [vmem:[%s269] sm:$0xff]
        %v607 = vunpack.c.l.bf16 %v606
        %v608 = vunpack.c.h.bf16 %v606
        %v611 = vlaneseq
        %v612 = vshrl.u32 %v611, 7
        %v613 = vsub.s32 0, %v612
        %v614 = vrot.slane %v607, %v613
        %v615 = vlaneseq
        %v616 = vshrl.u32 %v615, 7
        %v617 = vsub.s32 2, %v616
        %v618 = vrot.slane %v607, %v617
        %v619 = vlaneseq
        %v620 = vshrl.u32 %v619, 7
        %v621 = vsub.s32 4, %v620
        %v622 = vrot.slane %v607, %v621
        %v623 = vlaneseq
        %v624 = vshrl.u32 %v623, 7
        %v625 = vsub.s32 6, %v624
        %v626 = vrot.slane %v607, %v625
        %v627 = vlaneseq
        %v628 = vshrl.u32 %v627, 7
        %v629 = vsub.s32 0, %v628
        %v630 = vrot.slane %v608, %v629
        %v631 = vlaneseq
        %v632 = vshrl.u32 %v631, 7
        %v633 = vsub.s32 2, %v632
        %v634 = vrot.slane %v608, %v633
        %v635 = vlaneseq
        %v636 = vshrl.u32 %v635, 7
        %v637 = vsub.s32 4, %v636
        %v638 = vrot.slane %v608, %v637
        %v639 = vlaneseq
        %v640 = vshrl.u32 %v639, 7
        %v641 = vsub.s32 6, %v640
        %v642 = vrot.slane %v608, %v641
        %v651 = vlaneseq
        %v652 = vshrl.u32 %v651, 7
        %v653 = vsub.s32 0, %v652
        %v654 = vrot.slane %v614, %v653
        %v655 = vlaneseq
        %v656 = vshrl.u32 %v655, 7
        %v657 = vsub.s32 0, %v656
        %v658 = vrot.slane %v618, %v657
        %v659 = vlaneseq
        %v660 = vshrl.u32 %v659, 7
        %v661 = vsub.s32 0, %v660
        %v662 = vrot.slane %v622, %v661
        %v663 = vlaneseq
        %v664 = vshrl.u32 %v663, 7
        %v665 = vsub.s32 0, %v664
        %v666 = vrot.slane %v626, %v665
        %v667 = vlaneseq
        %v668 = vshrl.u32 %v667, 7
        %v669 = vsub.s32 0, %v668
        %v670 = vrot.slane %v630, %v669
        %v671 = vlaneseq
        %v672 = vshrl.u32 %v671, 7
        %v673 = vsub.s32 0, %v672
        %v674 = vrot.slane %v634, %v673
        %v675 = vlaneseq
        %v676 = vshrl.u32 %v675, 7
        %v677 = vsub.s32 0, %v676
        %v678 = vrot.slane %v638, %v677
        %v679 = vlaneseq
        %v680 = vshrl.u32 %v679, 7
        %v681 = vsub.s32 0, %v680
        %v682 = vrot.slane %v642, %v681
        %v683 = vmul.f32 %v598, %v654
        %v684 = vmul.f32 %v599, %v658
        %v685 = vmul.f32 %v600, %v662
        %v686 = vmul.f32 %v601, %v666
        %v687 = vmul.f32 %v602, %v670
        %v688 = vmul.f32 %v603, %v674
        %v689 = vmul.f32 %v604, %v678
        %v690 = vmul.f32 %v605, %v682
        %v691 = vpack.c.bf16 %v683, %v683
        %v692 = vpack.c.bf16 %v684, %v684
        %v693 = vpack.c.bf16 %v685, %v685
        %v694 = vpack.c.bf16 %v686, %v686
        %v695 = vpack.c.bf16 %v687, %v687
        %v696 = vpack.c.bf16 %v688, %v688
        %v697 = vpack.c.bf16 %v689, %v689
        %v698 = vpack.c.bf16 %v690, %v690
        %v707 = vunpack.c.l.b16 %v691
        %v708 = vunpack.c.l.b16 %v692
        %v709 = vunpack.c.l.b16 %v693
        %v710 = vunpack.c.l.b16 %v694
        %v711 = vunpack.c.l.b16 %v695
        %v712 = vunpack.c.l.b16 %v696
        %v713 = vunpack.c.l.b16 %v697
        %v714 = vunpack.c.l.b16 %v698
        %v715 = vpack.c.b16 %v708, %v707
        %v716 = vpack.c.b16 %v710, %v709
        %v717 = vpack.c.b16 %v712, %v711
        %v718 = vpack.c.b16 %v714, %v713
        %723 = vst [vmem:[%s275] sm:$0xff] %v715
        %724 = vst [vmem:[%s275 + $0x8] sm:$0xff] %v716
        %725 = vst [vmem:[%s275 + $0x10] sm:$0xff] %v717
        %726 = vst [vmem:[%s275 + $0x18] sm:$0xff] %v718
        %s727 = smul.u32 8, %s15
        %p728 = scmp.lt.s32.totalorder %s727, 23
        %s729 = scalar_select %p728, %s727, 23
        %s730 = smul.addr %s729, 4
        %s731 = scalar_lea.vmem %s4, %s730
        // Predicated region
        $region60: #{residual_forward.2} parent=54 // pred_check
          %p732 = pneg %p127
        $region61: #{residual_forward.2} parent=54 // pred_check_branch
          %734 = sbr.rel (%p732) target = $region63
        $region62: #{residual_forward.2} parent=54 // pred_region
          %s735 = smul.u32 8, %s15
        $region63: #{residual_forward.2} parent=54 // pred_fallthru
          _
      $region55: #{residual_forward.2} parent=5 // pred_fallthru
        _
      %p736 = scmp.le.s32.totalorder 2, %s10
      // Predicated region
      $region64: #{residual_forward.2} parent=5 // pred_check
        %p737 = pneg %p736
      $region65: #{residual_forward.2} parent=5 // pred_check_branch
        %739 = sbr.rel (%p737) target = $region67
      $region66: #{residual_forward.2} parent=5 // pred_region
        %s740 = ssub.s32 %s10, 2
        // Predicated region
        $region68: #{residual_forward.2} parent=66 // pred_check
          %p741 = pneg %p133
        $region69: #{residual_forward.2} parent=66 // pred_check_branch
          %743 = sbr.rel (%p741) target = $region71
        $region70: #{residual_forward.2} parent=66 // pred_region
          %s744 = smul.u32 8, %s16
          %p745 = scmp.lt.s32.totalorder %s744, 23
          %s746 = scalar_select %p745, %s744, 23
          %s747 = smul.addr %s746, 4
          %s748 = scalar_lea.vmem %s4, %s747
        $region71: #{residual_forward.2} parent=66 // pred_fallthru
          _
      $region67: #{residual_forward.2} parent=5 // pred_fallthru
        _
    $region6: #{residual_forward.2} parent=1 // loop_footer
      %s14 = sadd.s32 1, %s10
    $region7: #{residual_forward.2} parent=1 // loop_footer_branch
      %9 = sbr.rel target = $region3
    $region8: #{residual_forward.2} parent=1 // loop_exit
      _

// kernel: residual_forward.3
$region0: #{residual_forward.3}
  #allocation0 [shape = 'u32[]', space=smem, size = 0x4, offset = 0x4, fixed_abs, tag = 'smem constant byte address 0x4 - core index']
  #allocation1 [shape = 'u32[144,128]{1,0:T(1,128)}', space=vmem, size = 0x12000, scoped, tag = 'internal scratch']
  %s0 = inlined_call_operand.vmem [shape: bf16[8,3072], index: 0, kind: input, shape index: {}]
  %s1 = inlined_call_operand.vmem [shape: bf16[4,3072], index: 1, kind: input, shape index: {}]
  %s2 = inlined_call_operand.vmem [shape: bf16[9,8,8], index: 2, kind: input, shape index: {}]
  %s3 = inlined_call_operand.vmem [shape: bf16[8,4], index: 3, kind: input, shape index: {}]
  %s4 = inlined_call_operand.vmem [shape: f32[8,1], index: 4, kind: input, shape index: {}]
  %s5 = inlined_call_operand.vmem [shape: bf16[8,3072], index: 5, kind: output, shape index: {}]
  %s6 = sld [smem:[#allocation0]]
  $region61: #{residual_forward.3} parent=0
    _
  %s8 = ssub.s32 1, %s6
  %s9 = scalar_select 0, %s8, %s6
  loop: start=0, step=1, limit=5
  $region2: #{residual_forward.3} parent=0 // loop_pre_header
    _
  $region3: #{residual_forward.3} parent=0 // loop_header
    %s11 = sphi 0, %s15
    %p12 = scmp.ge.s32.totalorder %s11, 5
    %s19 = sphi 0, %s19
    %s21 = sphi 0, %s19
    %s22 = sphi 0, %s21
    %s36 = sphi 0, %s22
    %s42 = sphi 0, %s44
    %s45 = sphi 0, %s42
    %s46 = sphi 0, %s45
    %s62 = sphi 0, %s46
    %s66 = sphi 0, %s66
    %s68 = sphi 0, %s66
    %s69 = sphi 0, %s68
    %s83 = sphi 0, %s69
    %s87 = sphi 0, %s87
    %s89 = sphi 0, %s87
    %s90 = sphi 0, %s89
    %s104 = sphi 0, %s90
    %s108 = sphi 0, %s108
    %s110 = sphi 0, %s108
    %s111 = sphi 0, %s110
    %s125 = sphi 0, %s111
    %s131 = sphi 0, %s133
    %s134 = sphi 0, %s131
    %s135 = sphi 0, %s134
    %s151 = sphi 0, %s135
  $region4: #{residual_forward.3} parent=0 // loop_header_branch
    %14 = sbr.rel (%p12) target = $region8
  $region5: #{residual_forward.3} parent=0 // loop_body
    %s16 = ssub.s32 %s11, 1
    %s17 = ssub.s32 %s11, 2
    %s18 = sadd.s32 %s11, 1
    %s20 = sadd.s32 %s19, 1
    %p23 = scmp.eq.s32.totalorder %s11, 2
    %p24 = scmp.ne.s32.totalorder %s19, %s21
    %p25 = scmp.eq.s32.totalorder %s11, 0
    %p26 = por %p24, %p25
    %p27 = scmp.ne.s32.totalorder %s19, %s21
    %p28 = scmp.eq.s32.totalorder %s16, 2
    %p29 = por %p27, %p28
    %p30 = scmp.ne.s32.totalorder %s21, %s22
    %p31 = scmp.eq.s32.totalorder %s16, 0
    %p32 = por %p30, %p31
    %p33 = scmp.ne.s32.totalorder %s21, %s22
    %p34 = scmp.eq.s32.totalorder %s17, 2
    %p35 = por %p33, %p34
    %p37 = scmp.ne.s32.totalorder %s22, %s36
    %p38 = scmp.eq.s32.totalorder %s17, 0
    %p39 = por %p37, %p38
    %s40 = ssub.s32 %s11, %s18
    %p41 = scmp.eq.s32.totalorder %s40, 0
    %s43 = sadd.s32 %s42, 1
    %s44 = scalar_select %p41, %s42, %s43
    %p47 = pneg %p41
    %p48 = scmp.eq.s32.totalorder %s11, 2
    %p49 = por %p47, %p48
    %p50 = scmp.ne.s32.totalorder %s42, %s45
    %p51 = scmp.eq.s32.totalorder %s11, 0
    %p52 = por %p50, %p51
    %p53 = scmp.ne.s32.totalorder %s42, %s45
    %p54 = scmp.eq.s32.totalorder %s16, 2
    %p55 = por %p53, %p54
    %p56 = scmp.ne.s32.totalorder %s45, %s46
    %p57 = scmp.eq.s32.totalorder %s16, 0
    %p58 = por %p56, %p57
    %p59 = scmp.ne.s32.totalorder %s45, %s46
    %p60 = scmp.eq.s32.totalorder %s17, 2
    %p61 = por %p59, %p60
    %p63 = scmp.ne.s32.totalorder %s46, %s62
    %p64 = scmp.eq.s32.totalorder %s17, 0
    %p65 = por %p63, %p64
    %s67 = sadd.s32 %s66, 1
    %p70 = scmp.eq.s32.totalorder %s11, 2
    %p71 = scmp.ne.s32.totalorder %s66, %s68
    %p72 = scmp.eq.s32.totalorder %s11, 0
    %p73 = por %p71, %p72
    %p74 = scmp.ne.s32.totalorder %s66, %s68
    %p75 = scmp.eq.s32.totalorder %s16, 2
    %p76 = por %p74, %p75
    %p77 = scmp.ne.s32.totalorder %s68, %s69
    %p78 = scmp.eq.s32.totalorder %s16, 0
    %p79 = por %p77, %p78
    %p80 = scmp.ne.s32.totalorder %s68, %s69
    %p81 = scmp.eq.s32.totalorder %s17, 2
    %p82 = por %p80, %p81
    %p84 = scmp.ne.s32.totalorder %s69, %s83
    %p85 = scmp.eq.s32.totalorder %s17, 0
    %p86 = por %p84, %p85
    %s88 = sadd.s32 %s87, 1
    %p91 = scmp.eq.s32.totalorder %s11, 2
    %p92 = scmp.ne.s32.totalorder %s87, %s89
    %p93 = scmp.eq.s32.totalorder %s11, 0
    %p94 = por %p92, %p93
    %p95 = scmp.ne.s32.totalorder %s87, %s89
    %p96 = scmp.eq.s32.totalorder %s16, 2
    %p97 = por %p95, %p96
    %p98 = scmp.ne.s32.totalorder %s89, %s90
    %p99 = scmp.eq.s32.totalorder %s16, 0
    %p100 = por %p98, %p99
    %p101 = scmp.ne.s32.totalorder %s89, %s90
    %p102 = scmp.eq.s32.totalorder %s17, 2
    %p103 = por %p101, %p102
    %p105 = scmp.ne.s32.totalorder %s90, %s104
    %p106 = scmp.eq.s32.totalorder %s17, 0
    %p107 = por %p105, %p106
    %s109 = sadd.s32 %s108, 1
    %p112 = scmp.eq.s32.totalorder %s11, 2
    %p113 = scmp.ne.s32.totalorder %s108, %s110
    %p114 = scmp.eq.s32.totalorder %s11, 0
    %p115 = por %p113, %p114
    %p116 = scmp.ne.s32.totalorder %s108, %s110
    %p117 = scmp.eq.s32.totalorder %s16, 2
    %p118 = por %p116, %p117
    %p119 = scmp.ne.s32.totalorder %s110, %s111
    %p120 = scmp.eq.s32.totalorder %s16, 0
    %p121 = por %p119, %p120
    %p122 = scmp.ne.s32.totalorder %s110, %s111
    %p123 = scmp.eq.s32.totalorder %s17, 2
    %p124 = por %p122, %p123
    %p126 = scmp.ne.s32.totalorder %s111, %s125
    %p127 = scmp.eq.s32.totalorder %s17, 0
    %p128 = por %p126, %p127
    %s129 = ssub.s32 %s11, %s18
    %p130 = scmp.eq.s32.totalorder %s129, 0
    %s132 = sadd.s32 %s131, 1
    %s133 = scalar_select %p130, %s131, %s132
    %p136 = pneg %p130
    %p137 = scmp.eq.s32.totalorder %s11, 2
    %p138 = por %p136, %p137
    %p139 = scmp.ne.s32.totalorder %s131, %s134
    %p140 = scmp.eq.s32.totalorder %s11, 0
    %p141 = por %p139, %p140
    %p142 = scmp.ne.s32.totalorder %s131, %s134
    %p143 = scmp.eq.s32.totalorder %s16, 2
    %p144 = por %p142, %p143
    %p145 = scmp.ne.s32.totalorder %s134, %s135
    %p146 = scmp.eq.s32.totalorder %s16, 0
    %p147 = por %p145, %p146
    %p148 = scmp.ne.s32.totalorder %s134, %s135
    %p149 = scmp.eq.s32.totalorder %s17, 2
    %p150 = por %p148, %p149
    %p152 = scmp.ne.s32.totalorder %s135, %s151
    %p153 = scmp.eq.s32.totalorder %s17, 0
    %p154 = por %p152, %p153
    %p155 = scmp.le.s32.totalorder 1, %s11
    %p156 = scmp.lt.s32.totalorder %s11, 4
    %p157 = pnand %p155, %p156
    %p158 = pneg %p157
    // Predicated region
    $region9: #{residual_forward.3} parent=5 // pred_check
      _
    $region10: #{residual_forward.3} parent=5 // pred_check_branch
      %160 = sbr.rel (%p157) target = $region12
    $region11: #{residual_forward.3} parent=5 // pred_region
      %s161 = ssub.s32 %s11, 1
      // Predicated region
      $region13: #{residual_forward.3} parent=11 // pred_check
        %p162 = pneg %p32
      $region14: #{residual_forward.3} parent=11 // pred_check_branch
        %164 = sbr.rel (%p162) target = $region16
      $region15: #{residual_forward.3} parent=11 // pred_region
        _
      $region16: #{residual_forward.3} parent=11 // pred_fallthru
        _
      // Predicated region
      $region17: #{residual_forward.3} parent=11 // pred_check
        %p165 = pneg %p79
      $region18: #{residual_forward.3} parent=11 // pred_check_branch
        %167 = sbr.rel (%p165) target = $region20
      $region19: #{residual_forward.3} parent=11 // pred_region
        _
      $region20: #{residual_forward.3} parent=11 // pred_fallthru
        _
      // Predicated region
      $region21: #{residual_forward.3} parent=11 // pred_check
        %p168 = pneg %p100
      $region22: #{residual_forward.3} parent=11 // pred_check_branch
        %170 = sbr.rel (%p168) target = $region24
      $region23: #{residual_forward.3} parent=11 // pred_region
        _
      $region24: #{residual_forward.3} parent=11 // pred_fallthru
        _
      // Predicated region
      $region25: #{residual_forward.3} parent=11 // pred_check
        %p171 = pneg %p121
      $region26: #{residual_forward.3} parent=11 // pred_check_branch
        %173 = sbr.rel (%p171) target = $region28
      $region27: #{residual_forward.3} parent=11 // pred_region
        _
      $region28: #{residual_forward.3} parent=11 // pred_fallthru
        _
    $region12: #{residual_forward.3} parent=5 // pred_fallthru
      _
    %p174 = scmp.lt.s32.totalorder %s11, 3
    // Predicated region
    $region29: #{residual_forward.3} parent=5 // pred_check
      %p175 = pneg %p174
    $region30: #{residual_forward.3} parent=5 // pred_check_branch
      %177 = sbr.rel (%p175) target = $region32
    $region31: #{residual_forward.3} parent=5 // pred_region
      // Predicated region
      $region33: #{residual_forward.3} parent=31 // pred_check
        %p178 = pneg %p52
      $region34: #{residual_forward.3} parent=31 // pred_check_branch
        %180 = sbr.rel (%p178) target = $region36
      $region35: #{residual_forward.3} parent=31 // pred_region
        %s181 = smul.u32 8, %s11
        %p182 = scmp.lt.s32.totalorder %s181, 23
        %s183 = scalar_select %p182, %s181, 23
        %s184 = smul.addr %s183, 2
        %s185 = scalar_lea.vmem %s1, %s184
        %s186 = smul.u32 8, %s11
      $region36: #{residual_forward.3} parent=31 // pred_fallthru
        _
    $region32: #{residual_forward.3} parent=5 // pred_fallthru
      _
    %p187 = scmp.le.s32.totalorder 1, %s11
    %p188 = scmp.lt.s32.totalorder %s11, 4
    %p189 = pnand %p187, %p188
    %p190 = pneg %p189
    // Predicated region
    $region37: #{residual_forward.3} parent=5 // pred_check
      _
    $region38: #{residual_forward.3} parent=5 // pred_check_branch
      %192 = sbr.rel (%p189) target = $region40
    $region39: #{residual_forward.3} parent=5 // pred_region
      %s193 = ssub.s32 %s11, 1
      %p194 = pneg %p32
      %p195 = pneg %p29
      %s196 = smul.u32 8, %s16
      %p197 = scmp.lt.s32.totalorder %s196, 23
      %s198 = scalar_select %p197, %s196, 23
      %s199 = smul.addr %s198, 2
      %s200 = scalar_lea.vmem %s1, %s199
      %p201 = pneg %p58
      %p202 = pneg %p55
      %p203 = pneg %p79
      %p204 = pneg %p76
      %p205 = pneg %p100
      %p206 = pneg %p97
      %p207 = pneg %p121
      %p208 = pneg %p118
      %p209 = pneg %p147
      %p210 = pneg %p144
      %s211 = smul.u32 8, %s16
      %p212 = scmp.lt.s32.totalorder %s211, 23
      %s213 = scalar_select %p212, %s211, 23
      %s214 = smul.addr %s213, 4
      %s215 = scalar_lea.vmem %s5, %s214
      %s216 = smul.u32 8, %s16
      %p217 = scmp.lt.s32.totalorder %s216, 23
      %s218 = scalar_select %p217, %s216, 23
      %s219 = smul.addr %s218, 2
      %s220 = scalar_lea.vmem %s1, %s219
      %s221 = smul.u32 8, %s16
      %s222 = smul.u32 8, %s16
      %p223 = scmp.lt.s32.totalorder %s222, 23
      %s224 = scalar_select %p223, %s222, 23
      %s225 = smul.addr %s224, 4
      %s226 = scalar_lea.vmem %s5, %s225
      %s227 = smul.u32 8, %s16
      %p229 = scmp.eq.s32.totalorder %s16, 0
      %p230 = scmp.eq.s32.totalorder %s16, 2
      %p231 = por %p229, %p230
      // Predicated region
      $region41: #{residual_forward.3} parent=39 // pred_check
        %p232 = pneg %p231
      $region42: #{residual_forward.3} parent=39 // pred_check_branch
        %234 = sbr.rel (%p232) target = $region44
      $region43: #{residual_forward.3} parent=39 // pred_region
        %235 = vst [vmem:[%s226] sm:$0xff] 0
        %236 = vst [vmem:[%s226 + $0x8] sm:$0xff] 0
        %237 = vst [vmem:[%s226 + $0x10] sm:$0xff] 0
        %238 = vst [vmem:[%s226 + $0x18] sm:$0xff] 0
      $region44: #{residual_forward.3} parent=39 // pred_fallthru
        _
      %p239 = pneg %p231
      // Predicated region
      $region45: #{residual_forward.3} parent=39 // pred_check
        _
      $region46: #{residual_forward.3} parent=39 // pred_check_branch
        %241 = sbr.rel (%p231) target = $region48
      $region47: #{residual_forward.3} parent=39 // pred_region
        %s242 = smul.u32 %s16, 1024
        %s243 = ssub.s32 %s242, 128
        %s244 = sshra.s32 %s243, 7
        %s245 = sand.u32 %s243, 127
        %s246 = smul.addr %s244, 4
        %s247 = scalar_lea.vmem %s0, %s246
        %v248 = vld [vmem:[%s247] sm:$0xff]
        %v249 = vld [vmem:[%s247 + $0x8] sm:$0xff]
        %v250 = vld [vmem:[%s247 + $0x10] sm:$0xff]
        %v251 = vld [vmem:[%s247 + $0x18] sm:$0xff]
        %v252 = vld [vmem:[%s247 + $0x20] sm:$0xff]
        %v253 = vld [vmem:[%s2] sm:$0xf]
        %s254 = scalar_lea.vmem %s2, 4
        %v255 = vld [vmem:[%s254] sm:$0xf]
        %v261 = vunpack.c.l.b16 %v248
        %v262 = vunpack.c.h.b16 %v248
        %v263 = vunpack.c.l.b16 %v249
        %v264 = vunpack.c.h.b16 %v249
        %v265 = vunpack.c.l.b16 %v250
        %v266 = vunpack.c.h.b16 %v250
        %v267 = vunpack.c.l.b16 %v251
        %v268 = vunpack.c.h.b16 %v251
        %v269 = vunpack.c.l.b16 %v252
        %v270 = vpack.c.b16 %v261, %v261
        %v271 = vpack.c.b16 %v262, %v262
        %v272 = vpack.c.b16 %v263, %v263
        %v273 = vpack.c.b16 %v264, %v264
        %v274 = vpack.c.b16 %v265, %v265
        %v275 = vpack.c.b16 %v266, %v266
        %v276 = vpack.c.b16 %v267, %v267
        %v277 = vpack.c.b16 %v268, %v268
        %v278 = vpack.c.b16 %v269, %v269
        %279 = vrot.lane.b32.xlu0 %v270, 10
        %v280 = vpop.permute.xlu0 %279
        %281 = vrot.lane.b32.xlu0 %v271, 10
        %v282 = vpop.permute.xlu0 %281
        %283 = vrot.lane.b32.xlu0 %v272, 10
        %v284 = vpop.permute.xlu0 %283
        %285 = vrot.lane.b32.xlu0 %v273, 10
        %v286 = vpop.permute.xlu0 %285
        %287 = vrot.lane.b32.xlu0 %v274, 10
        %v288 = vpop.permute.xlu0 %287
        %289 = vrot.lane.b32.xlu0 %v275, 10
        %v290 = vpop.permute.xlu0 %289
        %291 = vrot.lane.b32.xlu0 %v276, 10
        %v292 = vpop.permute.xlu0 %291
        %293 = vrot.lane.b32.xlu0 %v277, 10
        %v294 = vpop.permute.xlu0 %293
        %295 = vrot.lane.b32.xlu0 %v278, 10
        %v296 = vpop.permute.xlu0 %295
        %vm297 = vcmask 80896
        %v298 = vsel %vm297, %v280, %v282
        %v299 = vsel %vm297, %v282, %v284
        %v300 = vsel %vm297, %v284, %v286
        %v301 = vsel %vm297, %v286, %v288
        %v302 = vsel %vm297, %v288, %v290
        %v303 = vsel %vm297, %v290, %v292
        %v304 = vsel %vm297, %v292, %v294
        %v305 = vsel %vm297, %v294, %v296
        %vm306 = vcmask 64512
        %v308 = vsel %vm306, %v255, 0
        %vm310 = vcmask 1043456
        %v312 = vsel %vm310, %v298, 0
        %v315 = vsel %vm310, %v299, 0
        %v318 = vsel %vm310, %v300, 0
        %v321 = vsel %vm310, %v301, 0
        %v324 = vsel %vm310, %v302, 0
        %v327 = vsel %vm310, %v303, 0
        %v330 = vsel %vm310, %v304, 0
        %v333 = vsel %vm310, %v305, 0
        %335 = vmatprep.subr.bf16.mxu0 0
        %336 = vmatpush1.bf16.msra.mxu0 0
        %337 = vmatprep.subr.bf16.mxu0 0
        %338 = vmatpush1.bf16.msra.mxu0 0
        %339 = vmatprep.subr.bf16.mxu0 0
        %340 = vmatpush1.bf16.msra.mxu0 0
        %341 = vmatprep.subr.bf16.mxu0 0
        %342 = vmatpush1.bf16.msra.mxu0 0
        %343 = vmatprep.subr.bf16.mxu0 0
        %344 = vmatpush1.bf16.msra.mxu0 0
        %345 = vmatprep.subr.bf16.mxu0 0
        %346 = vmatpush1.bf16.msra.mxu0 0
        %347 = vmatprep.subr.bf16.mxu0 0
        %348 = vmatpush1.bf16.msra.mxu0 0
        %349 = vmatprep.subr.bf16.mxu0 %v315
        %350 = vmatpush1.bf16.msra.mxu0 %v312
        %351 = vmatprep.subr.bf16.mxu0 0
        %352 = vmatpush2.bf16.msra.mxu0 0
        %353 = vmatprep.subr.bf16.mxu0 0
        %354 = vmatpush2.bf16.msra.mxu0 0
        %355 = vmatprep.subr.bf16.mxu0 0
        %356 = vmatpush2.bf16.msra.mxu0 0
        %357 = vmatprep.subr.bf16.mxu0 0
        %358 = vmatpush2.bf16.msra.mxu0 0
        %359 = vmatprep.subr.bf16.mxu0 0
        %360 = vmatpush2.bf16.msra.mxu0 0
        %361 = vmatprep.subr.bf16.mxu0 0
        %362 = vmatpush2.bf16.msra.mxu0 0
        %363 = vmatprep.subr.bf16.mxu0 0
        %364 = vmatpush2.bf16.msra.mxu0 0
        %365 = vmatprep.subr.bf16.mxu0 0
        %366 = vmatpush2.bf16.msra.mxu0 0
        %367 = vmatprep.mubr.bf16.mxu0 0
        %368 = vmatmul.mubr.bf16.gmra.mxu0 %v308
        %v369 = vpop.f32.mrf.mxu0
        %v370 = vadd.f32 0.0, %v369
        %v371 = vpop.f32.mrf.mxu0
        %v372 = vadd.f32 0.0, %v371
        %v373 = vpop.f32.mrf.mxu0
        %v374 = vpop.f32.mrf.mxu0
        %375 = vdwg.mxu0
        %376 = vmatprep.subr.bf16.mxu0 0
        %377 = vmatpush1.bf16.msra.mxu0 0
        %378 = vmatprep.subr.bf16.mxu0 0
        %379 = vmatpush1.bf16.msra.mxu0 0
        %380 = vmatprep.subr.bf16.mxu0 0
        %381 = vmatpush1.bf16.msra.mxu0 0
        %382 = vmatprep.subr.bf16.mxu0 0
        %383 = vmatpush1.bf16.msra.mxu0 0
        %384 = vmatprep.subr.bf16.mxu0 0
        %385 = vmatpush1.bf16.msra.mxu0 0
        %386 = vmatprep.subr.bf16.mxu0 0
        %387 = vmatpush1.bf16.msra.mxu0 0
        %388 = vmatprep.subr.bf16.mxu0 0
        %389 = vmatpush1.bf16.msra.mxu0 0
        %390 = vmatprep.subr.bf16.mxu0 %v321
        %391 = vmatpush1.bf16.msra.mxu0 %v318
        %392 = vmatprep.subr.bf16.mxu0 0
        %393 = vmatpush2.bf16.msra.mxu0 0
        %394 = vmatprep.subr.bf16.mxu0 0
        %395 = vmatpush2.bf16.msra.mxu0 0
        %396 = vmatprep.subr.bf16.mxu0 0
        %397 = vmatpush2.bf16.msra.mxu0 0
        %398 = vmatprep.subr.bf16.mxu0 0
        %399 = vmatpush2.bf16.msra.mxu0 0
        %400 = vmatprep.subr.bf16.mxu0 0
        %401 = vmatpush2.bf16.msra.mxu0 0
        %402 = vmatprep.subr.bf16.mxu0 0
        %403 = vmatpush2.bf16.msra.mxu0 0
        %404 = vmatprep.subr.bf16.mxu0 0
        %405 = vmatpush2.bf16.msra.mxu0 0
        %406 = vmatprep.subr.bf16.mxu0 0
        %407 = vmatpush2.bf16.msra.mxu0 0
        %408 = vmatprep.mubr.bf16.mxu0 0
        %409 = vmatmul.mubr.bf16.gmra.mxu0 %v308
        %v410 = vpop.f32.mrf.mxu0
        %v411 = vadd.f32 0.0, %v410
        %v412 = vpop.f32.mrf.mxu0
        %v413 = vadd.f32 0.0, %v412
        %v414 = vpop.f32.mrf.mxu0
        %v415 = vpop.f32.mrf.mxu0
        %416 = vdwg.mxu0
        %417 = vmatprep.subr.bf16.mxu0 0
        %418 = vmatpush1.bf16.msra.mxu0 0
        %419 = vmatprep.subr.bf16.mxu0 0
        %420 = vmatpush1.bf16.msra.mxu0 0
        %421 = vmatprep.subr.bf16.mxu0 0
        %422 = vmatpush1.bf16.msra.mxu0 0
        %423 = vmatprep.subr.bf16.mxu0 0
        %424 = vmatpush1.bf16.msra.mxu0 0
        %425 = vmatprep.subr.bf16.mxu0 0
        %426 = vmatpush1.bf16.msra.mxu0 0
        %427 = vmatprep.subr.bf16.mxu0 0
        %428 = vmatpush1.bf16.msra.mxu0 0
        %429 = vmatprep.subr.bf16.mxu0 0
        %430 = vmatpush1.bf16.msra.mxu0 0
        %431 = vmatprep.subr.bf16.mxu0 %v327
        %432 = vmatpush1.bf16.msra.mxu0 %v324
        %433 = vmatprep.subr.bf16.mxu0 0
        %434 = vmatpush2.bf16.msra.mxu0 0
        %435 = vmatprep.subr.bf16.mxu0 0
        %436 = vmatpush2.bf16.msra.mxu0 0
        %437 = vmatprep.subr.bf16.mxu0 0
        %438 = vmatpush2.bf16.msra.mxu0 0
        %439 = vmatprep.subr.bf16.mxu0 0
        %440 = vmatpush2.bf16.msra.mxu0 0
        %441 = vmatprep.subr.bf16.mxu0 0
        %442 = vmatpush2.bf16.msra.mxu0 0
        %443 = vmatprep.subr.bf16.mxu0 0
        %444 = vmatpush2.bf16.msra.mxu0 0
        %445 = vmatprep.subr.bf16.mxu0 0
        %446 = vmatpush2.bf16.msra.mxu0 0
        %447 = vmatprep.subr.bf16.mxu0 0
        %448 = vmatpush2.bf16.msra.mxu0 0
        %449 = vmatprep.mubr.bf16.mxu0 0
        %450 = vmatmul.mubr.bf16.gmra.mxu0 %v308
        %v451 = vpop.f32.mrf.mxu0
        %v452 = vadd.f32 0.0, %v451
        %v453 = vpop.f32.mrf.mxu0
        %v454 = vadd.f32 0.0, %v453
        %v455 = vpop.f32.mrf.mxu0
        %v456 = vpop.f32.mrf.mxu0
        %457 = vdwg.mxu0
        %458 = vmatprep.subr.bf16.mxu0 0
        %459 = vmatpush1.bf16.msra.mxu0 0
        %460 = vmatprep.subr.bf16.mxu0 0
        %461 = vmatpush1.bf16.msra.mxu0 0
        %462 = vmatprep.subr.bf16.mxu0 0
        %463 = vmatpush1.bf16.msra.mxu0 0
        %464 = vmatprep.subr.bf16.mxu0 0
        %465 = vmatpush1.bf16.msra.mxu0 0
        %466 = vmatprep.subr.bf16.mxu0 0
        %467 = vmatpush1.bf16.msra.mxu0 0
        %468 = vmatprep.subr.bf16.mxu0 0
        %469 = vmatpush1.bf16.msra.mxu0 0
        %470 = vmatprep.subr.bf16.mxu0 0
        %471 = vmatpush1.bf16.msra.mxu0 0
        %472 = vmatprep.subr.bf16.mxu0 %v333
        %473 = vmatpush1.bf16.msra.mxu0 %v330
        %474 = vmatprep.subr.bf16.mxu0 0
        %475 = vmatpush2.bf16.msra.mxu0 0
        %476 = vmatprep.subr.bf16.mxu0 0
        %477 = vmatpush2.bf16.msra.mxu0 0
        %478 = vmatprep.subr.bf16.mxu0 0
        %479 = vmatpush2.bf16.msra.mxu0 0
        %480 = vmatprep.subr.bf16.mxu0 0
        %481 = vmatpush2.bf16.msra.mxu0 0
        %482 = vmatprep.subr.bf16.mxu0 0
        %483 = vmatpush2.bf16.msra.mxu0 0
        %484 = vmatprep.subr.bf16.mxu0 0
        %485 = vmatpush2.bf16.msra.mxu0 0
        %486 = vmatprep.subr.bf16.mxu0 0
        %487 = vmatpush2.bf16.msra.mxu0 0
        %488 = vmatprep.subr.bf16.mxu0 0
        %489 = vmatpush2.bf16.msra.mxu0 0
        %490 = vmatprep.mubr.bf16.mxu0 0
        %491 = vmatmul.mubr.bf16.gmra.mxu0 %v308
        %v492 = vpop.f32.mrf.mxu0
        %v493 = vadd.f32 0.0, %v492
        %v494 = vpop.f32.mrf.mxu0
        %v495 = vadd.f32 0.0, %v494
        %v496 = vpop.f32.mrf.mxu0
        %v497 = vpop.f32.mrf.mxu0
        %498 = vdwg.mxu0
        %499 = vrot.lane.b32.xlu0 %v270, 11
        %v500 = vpop.permute.xlu0 %499
        %501 = vrot.lane.b32.xlu0 %v271, 11
        %v502 = vpop.permute.xlu0 %501
        %503 = vrot.lane.b32.xlu0 %v272, 11
        %v504 = vpop.permute.xlu0 %503
        %505 = vrot.lane.b32.xlu0 %v273, 11
        %v506 = vpop.permute.xlu0 %505
        %507 = vrot.lane.b32.xlu0 %v274, 11
        %v508 = vpop.permute.xlu0 %507
        %509 = vrot.lane.b32.xlu0 %v275, 11
        %v510 = vpop.permute.xlu0 %509
        %511 = vrot.lane.b32.xlu0 %v276, 11
        %v512 = vpop.permute.xlu0 %511
        %513 = vrot.lane.b32.xlu0 %v277, 11
        %v514 = vpop.permute.xlu0 %513
        %515 = vrot.lane.b32.xlu0 %v278, 11
        %v516 = vpop.permute.xlu0 %515
        %vm517 = vcmask 89088
        %v518 = vsel %vm517, %v500, %v502
        %v519 = vsel %vm517, %v502, %v504
        %v520 = vsel %vm517, %v504, %v506
        %v521 = vsel %vm517, %v506, %v508
        %v522 = vsel %vm517, %v508, %v510
        %v523 = vsel %vm517, %v510, %v512
        %v524 = vsel %vm517, %v512, %v514
        %v525 = vsel %vm517, %v514, %v516
        %v527 = vsel %vm306, %v253, 0
        %v530 = vsel %vm310, %v518, 0
        %v533 = vsel %vm310, %v519, 0
        %v536 = vsel %vm310, %v520, 0
        %v539 = vsel %vm310, %v521, 0
        %v542 = vsel %vm310, %v522, 0
        %v545 = vsel %vm310, %v523, 0
        %v548 = vsel %vm310, %v524, 0
        %v551 = vsel %vm310, %v525, 0
        %553 = vmatprep.subr.bf16.mxu0 0
        %554 = vmatpush1.bf16.msra.mxu0 0
        %555 = vmatprep.subr.bf16.mxu0 0
        %556 = vmatpush1.bf16.msra.mxu0 0
        %557 = vmatprep.subr.bf16.mxu0 0
        %558 = vmatpush1.bf16.msra.mxu0 0
        %559 = vmatprep.subr.bf16.mxu0 0
        %560 = vmatpush1.bf16.msra.mxu0 0
        %561 = vmatprep.subr.bf16.mxu0 0
        %562 = vmatpush1.bf16.msra.mxu0 0
        %563 = vmatprep.subr.bf16.mxu0 0
        %564 = vmatpush1.bf16.msra.mxu0 0
        %565 = vmatprep.subr.bf16.mxu0 0
        %566 = vmatpush1.bf16.msra.mxu0 0
        %567 = vmatprep.subr.bf16.mxu0 %v533
        %568 = vmatpush1.bf16.msra.mxu0 %v530
        %569 = vmatprep.subr.bf16.mxu0 0
        %570 = vmatpush2.bf16.msra.mxu0 0
        %571 = vmatprep.subr.bf16.mxu0 0
        %572 = vmatpush2.bf16.msra.mxu0 0
        %573 = vmatprep.subr.bf16.mxu0 0
        %574 = vmatpush2.bf16.msra.mxu0 0
        %575 = vmatprep.subr.bf16.mxu0 0
        %576 = vmatpush2.bf16.msra.mxu0 0
        %577 = vmatprep.subr.bf16.mxu0 0
        %578 = vmatpush2.bf16.msra.mxu0 0
        %579 = vmatprep.subr.bf16.mxu0 0
        %580 = vmatpush2.bf16.msra.mxu0 0
        %581 = vmatprep.subr.bf16.mxu0 0
        %582 = vmatpush2.bf16.msra.mxu0 0
        %583 = vmatprep.subr.bf16.mxu0 0
        %584 = vmatpush2.bf16.msra.mxu0 0
        %585 = vmatprep.mubr.bf16.mxu0 0
        %586 = vmatmul.mubr.bf16.gmra.mxu0 %v527
        %v587 = vpop.f32.mrf.mxu0
        %v588 = vadd.f32 %v370, %v587
        %v589 = vpop.f32.mrf.mxu0
        %v590 = vadd.f32 %v372, %v589
        %v591 = vpop.f32.mrf.mxu0
        %v592 = vpop.f32.mrf.mxu0
        %593 = vdwg.mxu0
        %594 = vmatprep.subr.bf16.mxu0 0
        %595 = vmatpush1.bf16.msra.mxu0 0
        %596 = vmatprep.subr.bf16.mxu0 0
        %597 = vmatpush1.bf16.msra.mxu0 0
        %598 = vmatprep.subr.bf16.mxu0 0
        %599 = vmatpush1.bf16.msra.mxu0 0
        %600 = vmatprep.subr.bf16.mxu0 0
        %601 = vmatpush1.bf16.msra.mxu0 0
        %602 = vmatprep.subr.bf16.mxu0 0
        %603 = vmatpush1.bf16.msra.mxu0 0
        %604 = vmatprep.subr.bf16.mxu0 0
        %605 = vmatpush1.bf16.msra.mxu0 0
        %606 = vmatprep.subr.bf16.mxu0 0
        %607 = vmatpush1.bf16.msra.mxu0 0
        %608 = vmatprep.subr.bf16.mxu0 %v539
        %609 = vmatpush1.bf16.msra.mxu0 %v536
        %610 = vmatprep.subr.bf16.mxu0 0
        %611 = vmatpush2.bf16.msra.mxu0 0
        %612 = vmatprep.subr.bf16.mxu0 0
        %613 = vmatpush2.bf16.msra.mxu0 0
        %614 = vmatprep.subr.bf16.mxu0 0
        %615 = vmatpush2.bf16.msra.mxu0 0
        %616 = vmatprep.subr.bf16.mxu0 0
        %617 = vmatpush2.bf16.msra.mxu0 0
        %618 = vmatprep.subr.bf16.mxu0 0
        %619 = vmatpush2.bf16.msra.mxu0 0
        %620 = vmatprep.subr.bf16.mxu0 0
        %621 = vmatpush2.bf16.msra.mxu0 0
        %622 = vmatprep.subr.bf16.mxu0 0
        %623 = vmatpush2.bf16.msra.mxu0 0
        %624 = vmatprep.subr.bf16.mxu0 0
        %625 = vmatpush2.bf16.msra.mxu0 0
        %626 = vmatprep.mubr.bf16.mxu0 0
        %627 = vmatmul.mubr.bf16.gmra.mxu0 %v527
        %v628 = vpop.f32.mrf.mxu0
        %v629 = vadd.f32 %v411, %v628
        %v630 = vpop.f32.mrf.mxu0
        %v631 = vadd.f32 %v413, %v630
        %v632 = vpop.f32.mrf.mxu0
        %v633 = vpop.f32.mrf.mxu0
        %634 = vdwg.mxu0
        %635 = vmatprep.subr.bf16.mxu0 0
        %636 = vmatpush1.bf16.msra.mxu0 0
        %637 = vmatprep.subr.bf16.mxu0 0
        %638 = vmatpush1.bf16.msra.mxu0 0
        %639 = vmatprep.subr.bf16.mxu0 0
        %640 = vmatpush1.bf16.msra.mxu0 0
        %641 = vmatprep.subr.bf16.mxu0 0
        %642 = vmatpush1.bf16.msra.mxu0 0
        %643 = vmatprep.subr.bf16.mxu0 0
        %644 = vmatpush1.bf16.msra.mxu0 0
        %645 = vmatprep.subr.bf16.mxu0 0
        %646 = vmatpush1.bf16.msra.mxu0 0
        %647 = vmatprep.subr.bf16.mxu0 0
        %648 = vmatpush1.bf16.msra.mxu0 0
        %649 = vmatprep.subr.bf16.mxu0 %v545
        %650 = vmatpush1.bf16.msra.mxu0 %v542
        %651 = vmatprep.subr.bf16.mxu0 0
        %652 = vmatpush2.bf16.msra.mxu0 0
        %653 = vmatprep.subr.bf16.mxu0 0
        %654 = vmatpush2.bf16.msra.mxu0 0
        %655 = vmatprep.subr.bf16.mxu0 0
        %656 = vmatpush2.bf16.msra.mxu0 0
        %657 = vmatprep.subr.bf16.mxu0 0
        %658 = vmatpush2.bf16.msra.mxu0 0
        %659 = vmatprep.subr.bf16.mxu0 0
        %660 = vmatpush2.bf16.msra.mxu0 0
        %661 = vmatprep.subr.bf16.mxu0 0
        %662 = vmatpush2.bf16.msra.mxu0 0
        %663 = vmatprep.subr.bf16.mxu0 0
        %664 = vmatpush2.bf16.msra.mxu0 0
        %665 = vmatprep.subr.bf16.mxu0 0
        %666 = vmatpush2.bf16.msra.mxu0 0
        %667 = vmatprep.mubr.bf16.mxu0 0
        %668 = vmatmul.mubr.bf16.gmra.mxu0 %v527
        %v669 = vpop.f32.mrf.mxu0
        %v670 = vadd.f32 %v452, %v669
        %v671 = vpop.f32.mrf.mxu0
        %v672 = vadd.f32 %v454, %v671
        %v673 = vpop.f32.mrf.mxu0
        %v674 = vpop.f32.mrf.mxu0
        %675 = vdwg.mxu0
        %676 = vmatprep.subr.bf16.mxu0 0
        %677 = vmatpush1.bf16.msra.mxu0 0
        %678 = vmatprep.subr.bf16.mxu0 0
        %679 = vmatpush1.bf16.msra.mxu0 0
        %680 = vmatprep.subr.bf16.mxu0 0
        %681 = vmatpush1.bf16.msra.mxu0 0
        %682 = vmatprep.subr.bf16.mxu0 0
        %683 = vmatpush1.bf16.msra.mxu0 0
        %684 = vmatprep.subr.bf16.mxu0 0
        %685 = vmatpush1.bf16.msra.mxu0 0
        %686 = vmatprep.subr.bf16.mxu0 0
        %687 = vmatpush1.bf16.msra.mxu0 0
        %688 = vmatprep.subr.bf16.mxu0 0
        %689 = vmatpush1.bf16.msra.mxu0 0
        %690 = vmatprep.subr.bf16.mxu0 %v551
        %691 = vmatpush1.bf16.msra.mxu0 %v548
        %692 = vmatprep.subr.bf16.mxu0 0
        %693 = vmatpush2.bf16.msra.mxu0 0
        %694 = vmatprep.subr.bf16.mxu0 0
        %695 = vmatpush2.bf16.msra.mxu0 0
        %696 = vmatprep.subr.bf16.mxu0 0
        %697 = vmatpush2.bf16.msra.mxu0 0
        %698 = vmatprep.subr.bf16.mxu0 0
        %699 = vmatpush2.bf16.msra.mxu0 0
        %700 = vmatprep.subr.bf16.mxu0 0
        %701 = vmatpush2.bf16.msra.mxu0 0
        %702 = vmatprep.subr.bf16.mxu0 0
        %703 = vmatpush2.bf16.msra.mxu0 0
        %704 = vmatprep.subr.bf16.mxu0 0
        %705 = vmatpush2.bf16.msra.mxu0 0
        %706 = vmatprep.subr.bf16.mxu0 0
        %707 = vmatpush2.bf16.msra.mxu0 0
        %708 = vmatprep.mubr.bf16.mxu0 0
        %709 = vmatmul.mubr.bf16.gmra.mxu0 %v527
        %v710 = vpop.f32.mrf.mxu0
        %v711 = vadd.f32 %v493, %v710
        %v712 = vpop.f32.mrf.mxu0
        %v713 = vadd.f32 %v495, %v712
        %v714 = vpop.f32.mrf.mxu0
        %v715 = vpop.f32.mrf.mxu0
        %716 = vdwg.mxu0
        %s717 = scalar_lea.vmem %s2, 8
        %v718 = vld [vmem:[%s717] sm:$0xf]
        %719 = vrot.lane.b32.xlu0 %v270, 9
        %v720 = vpop.permute.xlu0 %719
        %721 = vrot.lane.b32.xlu0 %v271, 9
        %v722 = vpop.permute.xlu0 %721
        %723 = vrot.lane.b32.xlu0 %v272, 9
        %v724 = vpop.permute.xlu0 %723
        %725 = vrot.lane.b32.xlu0 %v273, 9
        %v726 = vpop.permute.xlu0 %725
        %727 = vrot.lane.b32.xlu0 %v274, 9
        %v728 = vpop.permute.xlu0 %727
        %729 = vrot.lane.b32.xlu0 %v275, 9
        %v730 = vpop.permute.xlu0 %729
        %731 = vrot.lane.b32.xlu0 %v276, 9
        %v732 = vpop.permute.xlu0 %731
        %733 = vrot.lane.b32.xlu0 %v277, 9
        %v734 = vpop.permute.xlu0 %733
        %735 = vrot.lane.b32.xlu0 %v278, 9
        %v736 = vpop.permute.xlu0 %735
        %vm737 = vcmask 72704
        %v738 = vsel %vm737, %v720, %v722
        %v739 = vsel %vm737, %v722, %v724
        %v740 = vsel %vm737, %v724, %v726
        %v741 = vsel %vm737, %v726, %v728
        %v742 = vsel %vm737, %v728, %v730
        %v743 = vsel %vm737, %v730, %v732
        %v744 = vsel %vm737, %v732, %v734
        %v745 = vsel %vm737, %v734, %v736
        %v747 = vsel %vm306, %v718, 0
        %v750 = vsel %vm310, %v738, 0
        %v753 = vsel %vm310, %v739, 0
        %v756 = vsel %vm310, %v740, 0
        %v759 = vsel %vm310, %v741, 0
        %v762 = vsel %vm310, %v742, 0
        %v765 = vsel %vm310, %v743, 0
        %v768 = vsel %vm310, %v744, 0
        %v771 = vsel %vm310, %v745, 0
        %773 = vmatprep.subr.bf16.mxu0 0
        %774 = vmatpush1.bf16.msra.mxu0 0
        %775 = vmatprep.subr.bf16.mxu0 0
        %776 = vmatpush1.bf16.msra.mxu0 0
        %777 = vmatprep.subr.bf16.mxu0 0
        %778 = vmatpush1.bf16.msra.mxu0 0
        %779 = vmatprep.subr.bf16.mxu0 0
        %780 = vmatpush1.bf16.msra.mxu0 0
        %781 = vmatprep.subr.bf16.mxu0 0
        %782 = vmatpush1.bf16.msra.mxu0 0
        %783 = vmatprep.subr.bf16.mxu0 0
        %784 = vmatpush1.bf16.msra.mxu0 0
        %785 = vmatprep.subr.bf16.mxu0 0
        %786 = vmatpush1.bf16.msra.mxu0 0
        %787 = vmatprep.subr.bf16.mxu0 %v753
        %788 = vmatpush1.bf16.msra.mxu0 %v750
        %789 = vmatprep.subr.bf16.mxu0 0
        %790 = vmatpush2.bf16.msra.mxu0 0
        %791 = vmatprep.subr.bf16.mxu0 0
        %792 = vmatpush2.bf16.msra.mxu0 0
        %793 = vmatprep.subr.bf16.mxu0 0
        %794 = vmatpush2.bf16.msra.mxu0 0
        %795 = vmatprep.subr.bf16.mxu0 0
        %796 = vmatpush2.bf16.msra.mxu0 0
        %797 = vmatprep.subr.bf16.mxu0 0
        %798 = vmatpush2.bf16.msra.mxu0 0
        %799 = vmatprep.subr.bf16.mxu0 0
        %800 = vmatpush2.bf16.msra.mxu0 0
        %801 = vmatprep.subr.bf16.mxu0 0
        %802 = vmatpush2.bf16.msra.mxu0 0
        %803 = vmatprep.subr.bf16.mxu0 0
        %804 = vmatpush2.bf16.msra.mxu0 0
        %805 = vmatprep.mubr.bf16.mxu0 0
        %806 = vmatmul.mubr.bf16.gmra.mxu0 %v747
        %v807 = vpop.f32.mrf.mxu0
        %v808 = vadd.f32 0.0, %v807
        %v809 = vpop.f32.mrf.mxu0
        %v810 = vadd.f32 0.0, %v809
        %v811 = vpop.f32.mrf.mxu0
        %v812 = vpop.f32.mrf.mxu0
        %813 = vdwg.mxu0
        %814 = vmatprep.subr.bf16.mxu0 0
        %815 = vmatpush1.bf16.msra.mxu0 0
        %816 = vmatprep.subr.bf16.mxu0 0
        %817 = vmatpush1.bf16.msra.mxu0 0
        %818 = vmatprep.subr.bf16.mxu0 0
        %819 = vmatpush1.bf16.msra.mxu0 0
        %820 = vmatprep.subr.bf16.mxu0 0
        %821 = vmatpush1.bf16.msra.mxu0 0
        %822 = vmatprep.subr.bf16.mxu0 0
        %823 = vmatpush1.bf16.msra.mxu0 0
        %824 = vmatprep.subr.bf16.mxu0 0
        %825 = vmatpush1.bf16.msra.mxu0 0
        %826 = vmatprep.subr.bf16.mxu0 0
        %827 = vmatpush1.bf16.msra.mxu0 0
        %828 = vmatprep.subr.bf16.mxu0 %v759
        %829 = vmatpush1.bf16.msra.mxu0 %v756
        %830 = vmatprep.subr.bf16.mxu0 0
        %831 = vmatpush2.bf16.msra.mxu0 0
        %832 = vmatprep.subr.bf16.mxu0 0
        %833 = vmatpush2.bf16.msra.mxu0 0
        %834 = vmatprep.subr.bf16.mxu0 0
        %835 = vmatpush2.bf16.msra.mxu0 0
        %836 = vmatprep.subr.bf16.mxu0 0
        %837 = vmatpush2.bf16.msra.mxu0 0
        %838 = vmatprep.subr.bf16.mxu0 0
        %839 = vmatpush2.bf16.msra.mxu0 0
        %840 = vmatprep.subr.bf16.mxu0 0
        %841 = vmatpush2.bf16.msra.mxu0 0
        %842 = vmatprep.subr.bf16.mxu0 0
        %843 = vmatpush2.bf16.msra.mxu0 0
        %844 = vmatprep.subr.bf16.mxu0 0
        %845 = vmatpush2.bf16.msra.mxu0 0
        %846 = vmatprep.mubr.bf16.mxu0 0
        %847 = vmatmul.mubr.bf16.gmra.mxu0 %v747
        %v848 = vpop.f32.mrf.mxu0
        %v849 = vadd.f32 0.0, %v848
        %v850 = vpop.f32.mrf.mxu0
        %v851 = vadd.f32 0.0, %v850
        %v852 = vpop.f32.mrf.mxu0
        %v853 = vpop.f32.mrf.mxu0
        %854 = vdwg.mxu0
        %855 = vmatprep.subr.bf16.mxu0 0
        %856 = vmatpush1.bf16.msra.mxu0 0
        %857 = vmatprep.subr.bf16.mxu0 0
        %858 = vmatpush1.bf16.msra.mxu0 0
        %859 = vmatprep.subr.bf16.mxu0 0
        %860 = vmatpush1.bf16.msra.mxu0 0
        %861 = vmatprep.subr.bf16.mxu0 0
        %862 = vmatpush1.bf16.msra.mxu0 0
        %863 = vmatprep.subr.bf16.mxu0 0
        %864 = vmatpush1.bf16.msra.mxu0 0
        %865 = vmatprep.subr.bf16.mxu0 0
        %866 = vmatpush1.bf16.msra.mxu0 0
        %867 = vmatprep.subr.bf16.mxu0 0
        %868 = vmatpush1.bf16.msra.mxu0 0
        %869 = vmatprep.subr.bf16.mxu0 %v765
        %870 = vmatpush1.bf16.msra.mxu0 %v762
        %871 = vmatprep.subr.bf16.mxu0 0
        %872 = vmatpush2.bf16.msra.mxu0 0
        %873 = vmatprep.subr.bf16.mxu0 0
        %874 = vmatpush2.bf16.msra.mxu0 0
        %875 = vmatprep.subr.bf16.mxu0 0
        %876 = vmatpush2.bf16.msra.mxu0 0
        %877 = vmatprep.subr.bf16.mxu0 0
        %878 = vmatpush2.bf16.msra.mxu0 0
        %879 = vmatprep.subr.bf16.mxu0 0
        %880 = vmatpush2.bf16.msra.mxu0 0
        %881 = vmatprep.subr.bf16.mxu0 0
        %882 = vmatpush2.bf16.msra.mxu0 0
        %883 = vmatprep.subr.bf16.mxu0 0
        %884 = vmatpush2.bf16.msra.mxu0 0
        %885 = vmatprep.subr.bf16.mxu0 0
        %886 = vmatpush2.bf16.msra.mxu0 0
        %887 = vmatprep.mubr.bf16.mxu0 0
        %888 = vmatmul.mubr.bf16.gmra.mxu0 %v747
        %v889 = vpop.f32.mrf.mxu0
        %v890 = vadd.f32 0.0, %v889
        %v891 = vpop.f32.mrf.mxu0
        %v892 = vadd.f32 0.0, %v891
        %v893 = vpop.f32.mrf.mxu0
        %v894 = vpop.f32.mrf.mxu0
        %895 = vdwg.mxu0
        %896 = vmatprep.subr.bf16.mxu0 0
        %897 = vmatpush1.bf16.msra.mxu0 0
        %898 = vmatprep.subr.bf16.mxu0 0
        %899 = vmatpush1.bf16.msra.mxu0 0
        %900 = vmatprep.subr.bf16.mxu0 0
        %901 = vmatpush1.bf16.msra.mxu0 0
        %902 = vmatprep.subr.bf16.mxu0 0
        %903 = vmatpush1.bf16.msra.mxu0 0
        %904 = vmatprep.subr.bf16.mxu0 0
        %905 = vmatpush1.bf16.msra.mxu0 0
        %906 = vmatprep.subr.bf16.mxu0 0
        %907 = vmatpush1.bf16.msra.mxu0 0
        %908 = vmatprep.subr.bf16.mxu0 0
        %909 = vmatpush1.bf16.msra.mxu0 0
        %910 = vmatprep.subr.bf16.mxu0 %v771
        %911 = vmatpush1.bf16.msra.mxu0 %v768
        %912 = vmatprep.subr.bf16.mxu0 0
        %913 = vmatpush2.bf16.msra.mxu0 0
        %914 = vmatprep.subr.bf16.mxu0 0
        %915 = vmatpush2.bf16.msra.mxu0 0
        %916 = vmatprep.subr.bf16.mxu0 0
        %917 = vmatpush2.bf16.msra.mxu0 0
        %918 = vmatprep.subr.bf16.mxu0 0
        %919 = vmatpush2.bf16.msra.mxu0 0
        %920 = vmatprep.subr.bf16.mxu0 0
        %921 = vmatpush2.bf16.msra.mxu0 0
        %922 = vmatprep.subr.bf16.mxu0 0
        %923 = vmatpush2.bf16.msra.mxu0 0
        %924 = vmatprep.subr.bf16.mxu0 0
        %925 = vmatpush2.bf16.msra.mxu0 0
        %926 = vmatprep.subr.bf16.mxu0 0
        %927 = vmatpush2.bf16.msra.mxu0 0
        %928 = vmatprep.mubr.bf16.mxu0 0
        %929 = vmatmul.mubr.bf16.gmra.mxu0 %v747
        %v930 = vpop.f32.mrf.mxu0
        %v931 = vadd.f32 0.0, %v930
        %v932 = vpop.f32.mrf.mxu0
        %v933 = vadd.f32 0.0, %v932
        %v934 = vpop.f32.mrf.mxu0
        %v935 = vpop.f32.mrf.mxu0
        %936 = vdwg.mxu0
        %v937 = vadd.f32 %v588, %v808
        %v938 = vadd.f32 %v590, %v810
        %v939 = vadd.f32 %v629, %v849
        %v940 = vadd.f32 %v631, %v851
        %v941 = vadd.f32 %v670, %v890
        %v942 = vadd.f32 %v672, %v892
        %v943 = vadd.f32 %v711, %v931
        %v944 = vadd.f32 %v713, %v933
        %s945 = scalar_lea.vmem %s2, 12
        %v946 = vld [vmem:[%s945] sm:$0xf]
        %947 = vrot.lane.b32.xlu0 %v270, 1
        %v948 = vpop.permute.xlu0 %947
        %949 = vrot.lane.b32.xlu0 %v271, 1
        %v950 = vpop.permute.xlu0 %949
        %951 = vrot.lane.b32.xlu0 %v272, 1
        %v952 = vpop.permute.xlu0 %951
        %953 = vrot.lane.b32.xlu0 %v273, 1
        %v954 = vpop.permute.xlu0 %953
        %955 = vrot.lane.b32.xlu0 %v274, 1
        %v956 = vpop.permute.xlu0 %955
        %957 = vrot.lane.b32.xlu0 %v275, 1
        %v958 = vpop.permute.xlu0 %957
        %959 = vrot.lane.b32.xlu0 %v276, 1
        %v960 = vpop.permute.xlu0 %959
        %961 = vrot.lane.b32.xlu0 %v277, 1
        %v962 = vpop.permute.xlu0 %961
        %963 = vrot.lane.b32.xlu0 %v278, 1
        %v964 = vpop.permute.xlu0 %963
        %vm965 = vcmask 7168
        %v966 = vsel %vm965, %v948, %v950
        %v967 = vsel %vm965, %v950, %v952
        %v968 = vsel %vm965, %v952, %v954
        %v969 = vsel %vm965, %v954, %v956
        %v970 = vsel %vm965, %v956, %v958
        %v971 = vsel %vm965, %v958, %v960
        %v972 = vsel %vm965, %v960, %v962
        %v973 = vsel %vm965, %v962, %v964
        %v975 = vsel %vm306, %v946, 0
        %v978 = vsel %vm310, %v966, 0
        %v981 = vsel %vm310, %v967, 0
        %v984 = vsel %vm310, %v968, 0
        %v987 = vsel %vm310, %v969, 0
        %v990 = vsel %vm310, %v970, 0
        %v993 = vsel %vm310, %v971, 0
        %v996 = vsel %vm310, %v972, 0
        %v999 = vsel %vm310, %v973, 0
        %1001 = vmatprep.subr.bf16.mxu0 0
        %1002 = vmatpush1.bf16.msra.mxu0 0
        %1003 = vmatprep.subr.bf16.mxu0 0
        %1004 = vmatpush1.bf16.msra.mxu0 0
        %1005 = vmatprep.subr.bf16.mxu0 0
        %1006 = vmatpush1.bf16.msra.mxu0 0
        %1007 = vmatprep.subr.bf16.mxu0 0
        %1008 = vmatpush1.bf16.msra.mxu0 0
        %1009 = vmatprep.subr.bf16.mxu0 0
        %1010 = vmatpush1.bf16.msra.mxu0 0
        %1011 = vmatprep.subr.bf16.mxu0 0
        %1012 = vmatpush1.bf16.msra.mxu0 0
        %1013 = vmatprep.subr.bf16.mxu0 0
        %1014 = vmatpush1.bf16.msra.mxu0 0
        %1015 = vmatprep.subr.bf16.mxu0 %v981
        %1016 = vmatpush1.bf16.msra.mxu0 %v978
        %1017 = vmatprep.subr.bf16.mxu0 0
        %1018 = vmatpush2.bf16.msra.mxu0 0
        %1019 = vmatprep.subr.bf16.mxu0 0
        %1020 = vmatpush2.bf16.msra.mxu0 0
        %1021 = vmatprep.subr.bf16.mxu0 0
        %1022 = vmatpush2.bf16.msra.mxu0 0
        %1023 = vmatprep.subr.bf16.mxu0 0
        %1024 = vmatpush2.bf16.msra.mxu0 0
        %1025 = vmatprep.subr.bf16.mxu0 0
        %1026 = vmatpush2.bf16.msra.mxu0 0
        %1027 = vmatprep.subr.bf16.mxu0 0
        %1028 = vmatpush2.bf16.msra.mxu0 0
        %1029 = vmatprep.subr.bf16.mxu0 0
        %1030 = vmatpush2.bf16.msra.mxu0 0
        %1031 = vmatprep.subr.bf16.mxu0 0
        %1032 = vmatpush2.bf16.msra.mxu0 0
        %1033 = vmatprep.mubr.bf16.mxu0 0
        %1034 = vmatmul.mubr.bf16.gmra.mxu0 %v975
        %v1035 = vpop.f32.mrf.mxu0
        %v1036 = vadd.f32 0.0, %v1035
        %v1037 = vpop.f32.mrf.mxu0
        %v1038 = vadd.f32 0.0, %v1037
        %v1039 = vpop.f32.mrf.mxu0
        %v1040 = vpop.f32.mrf.mxu0
        %1041 = vdwg.mxu0
        %1042 = vmatprep.subr.bf16.mxu0 0
        %1043 = vmatpush1.bf16.msra.mxu0 0
        %1044 = vmatprep.subr.bf16.mxu0 0
        %1045 = vmatpush1.bf16.msra.mxu0 0
        %1046 = vmatprep.subr.bf16.mxu0 0
        %1047 = vmatpush1.bf16.msra.mxu0 0
        %1048 = vmatprep.subr.bf16.mxu0 0
        %1049 = vmatpush1.bf16.msra.mxu0 0
        %1050 = vmatprep.subr.bf16.mxu0 0
        %1051 = vmatpush1.bf16.msra.mxu0 0
        %1052 = vmatprep.subr.bf16.mxu0 0
        %1053 = vmatpush1.bf16.msra.mxu0 0
        %1054 = vmatprep.subr.bf16.mxu0 0
        %1055 = vmatpush1.bf16.msra.mxu0 0
        %1056 = vmatprep.subr.bf16.mxu0 %v987
        %1057 = vmatpush1.bf16.msra.mxu0 %v984
        %1058 = vmatprep.subr.bf16.mxu0 0
        %1059 = vmatpush2.bf16.msra.mxu0 0
        %1060 = vmatprep.subr.bf16.mxu0 0
        %1061 = vmatpush2.bf16.msra.mxu0 0
        %1062 = vmatprep.subr.bf16.mxu0 0
        %1063 = vmatpush2.bf16.msra.mxu0 0
        %1064 = vmatprep.subr.bf16.mxu0 0
        %1065 = vmatpush2.bf16.msra.mxu0 0
        %1066 = vmatprep.subr.bf16.mxu0 0
        %1067 = vmatpush2.bf16.msra.mxu0 0
        %1068 = vmatprep.subr.bf16.mxu0 0
        %1069 = vmatpush2.bf16.msra.mxu0 0
        %1070 = vmatprep.subr.bf16.mxu0 0
        %1071 = vmatpush2.bf16.msra.mxu0 0
        %1072 = vmatprep.subr.bf16.mxu0 0
        %1073 = vmatpush2.bf16.msra.mxu0 0
        %1074 = vmatprep.mubr.bf16.mxu0 0
        %1075 = vmatmul.mubr.bf16.gmra.mxu0 %v975
        %v1076 = vpop.f32.mrf.mxu0
        %v1077 = vadd.f32 0.0, %v1076
        %v1078 = vpop.f32.mrf.mxu0
        %v1079 = vadd.f32 0.0, %v1078
        %v1080 = vpop.f32.mrf.mxu0
        %v1081 = vpop.f32.mrf.mxu0
        %1082 = vdwg.mxu0
        %1083 = vmatprep.subr.bf16.mxu0 0
        %1084 = vmatpush1.bf16.msra.mxu0 0
        %1085 = vmatprep.subr.bf16.mxu0 0
        %1086 = vmatpush1.bf16.msra.mxu0 0
        %1087 = vmatprep.subr.bf16.mxu0 0
        %1088 = vmatpush1.bf16.msra.mxu0 0
        %1089 = vmatprep.subr.bf16.mxu0 0
        %1090 = vmatpush1.bf16.msra.mxu0 0
        %1091 = vmatprep.subr.bf16.mxu0 0
        %1092 = vmatpush1.bf16.msra.mxu0 0
        %1093 = vmatprep.subr.bf16.mxu0 0
        %1094 = vmatpush1.bf16.msra.mxu0 0
        %1095 = vmatprep.subr.bf16.mxu0 0
        %1096 = vmatpush1.bf16.msra.mxu0 0
        %1097 = vmatprep.subr.bf16.mxu0 %v993
        %1098 = vmatpush1.bf16.msra.mxu0 %v990
        %1099 = vmatprep.subr.bf16.mxu0 0
        %1100 = vmatpush2.bf16.msra.mxu0 0
        %1101 = vmatprep.subr.bf16.mxu0 0
        %1102 = vmatpush2.bf16.msra.mxu0 0
        %1103 = vmatprep.subr.bf16.mxu0 0
        %1104 = vmatpush2.bf16.msra.mxu0 0
        %1105 = vmatprep.subr.bf16.mxu0 0
        %1106 = vmatpush2.bf16.msra.mxu0 0
        %1107 = vmatprep.subr.bf16.mxu0 0
        %1108 = vmatpush2.bf16.msra.mxu0 0
        %1109 = vmatprep.subr.bf16.mxu0 0
        %1110 = vmatpush2.bf16.msra.mxu0 0
        %1111 = vmatprep.subr.bf16.mxu0 0
        %1112 = vmatpush2.bf16.msra.mxu0 0
        %1113 = vmatprep.subr.bf16.mxu0 0
        %1114 = vmatpush2.bf16.msra.mxu0 0
        %1115 = vmatprep.mubr.bf16.mxu0 0
        %1116 = vmatmul.mubr.bf16.gmra.mxu0 %v975
        %v1117 = vpop.f32.mrf.mxu0
        %v1118 = vadd.f32 0.0, %v1117
        %v1119 = vpop.f32.mrf.mxu0
        %v1120 = vadd.f32 0.0, %v1119
        %v1121 = vpop.f32.mrf.mxu0
        %v1122 = vpop.f32.mrf.mxu0
        %1123 = vdwg.mxu0
        %1124 = vmatprep.subr.bf16.mxu0 0
        %1125 = vmatpush1.bf16.msra.mxu0 0
        %1126 = vmatprep.subr.bf16.mxu0 0
        %1127 = vmatpush1.bf16.msra.mxu0 0
        %1128 = vmatprep.subr.bf16.mxu0 0
        %1129 = vmatpush1.bf16.msra.mxu0 0
        %1130 = vmatprep.subr.bf16.mxu0 0
        %1131 = vmatpush1.bf16.msra.mxu0 0
        %1132 = vmatprep.subr.bf16.mxu0 0
        %1133 = vmatpush1.bf16.msra.mxu0 0
        %1134 = vmatprep.subr.bf16.mxu0 0
        %1135 = vmatpush1.bf16.msra.mxu0 0
        %1136 = vmatprep.subr.bf16.mxu0 0
        %1137 = vmatpush1.bf16.msra.mxu0 0
        %1138 = vmatprep.subr.bf16.mxu0 %v999
        %1139 = vmatpush1.bf16.msra.mxu0 %v996
        %1140 = vmatprep.subr.bf16.mxu0 0
        %1141 = vmatpush2.bf16.msra.mxu0 0
        %1142 = vmatprep.subr.bf16.mxu0 0
        %1143 = vmatpush2.bf16.msra.mxu0 0
        %1144 = vmatprep.subr.bf16.mxu0 0
        %1145 = vmatpush2.bf16.msra.mxu0 0
        %1146 = vmatprep.subr.bf16.mxu0 0
        %1147 = vmatpush2.bf16.msra.mxu0 0
        %1148 = vmatprep.subr.bf16.mxu0 0
        %1149 = vmatpush2.bf16.msra.mxu0 0
        %1150 = vmatprep.subr.bf16.mxu0 0
        %1151 = vmatpush2.bf16.msra.mxu0 0
        %1152 = vmatprep.subr.bf16.mxu0 0
        %1153 = vmatpush2.bf16.msra.mxu0 0
        %1154 = vmatprep.subr.bf16.mxu0 0
        %1155 = vmatpush2.bf16.msra.mxu0 0
        %1156 = vmatprep.mubr.bf16.mxu0 0
        %1157 = vmatmul.mubr.bf16.gmra.mxu0 %v975
        %v1158 = vpop.f32.mrf.mxu0
        %v1159 = vadd.f32 0.0, %v1158
        %v1160 = vpop.f32.mrf.mxu0
        %v1161 = vadd.f32 0.0, %v1160
        %v1162 = vpop.f32.mrf.mxu0
        %v1163 = vpop.f32.mrf.mxu0
        %1164 = vdwg.mxu0
        %v1165 = vadd.f32 %v937, %v1036
        %v1166 = vadd.f32 %v938, %v1038
        %v1167 = vadd.f32 %v939, %v1077
        %v1168 = vadd.f32 %v940, %v1079
        %v1169 = vadd.f32 %v941, %v1118
        %v1170 = vadd.f32 %v942, %v1120
        %v1171 = vadd.f32 %v943, %v1159
        %v1172 = vadd.f32 %v944, %v1161
        %s1173 = scalar_lea.vmem %s2, 16
        %v1174 = vld [vmem:[%s1173] sm:$0xf]
        %v1176 = vsel %vm306, %v1174, 0
        %v1179 = vsel %vm310, %v271, 0
        %v1182 = vsel %vm310, %v272, 0
        %v1185 = vsel %vm310, %v273, 0
        %v1188 = vsel %vm310, %v274, 0
        %v1191 = vsel %vm310, %v275, 0
        %v1194 = vsel %vm310, %v276, 0
        %v1197 = vsel %vm310, %v277, 0
        %v1200 = vsel %vm310, %v278, 0
        %1202 = vmatprep.subr.bf16.mxu0 0
        %1203 = vmatpush1.bf16.msra.mxu0 0
        %1204 = vmatprep.subr.bf16.mxu0 0
        %1205 = vmatpush1.bf16.msra.mxu0 0
        %1206 = vmatprep.subr.bf16.mxu0 0
        %1207 = vmatpush1.bf16.msra.mxu0 0
        %1208 = vmatprep.subr.bf16.mxu0 0
        %1209 = vmatpush1.bf16.msra.mxu0 0
        %1210 = vmatprep.subr.bf16.mxu0 0
        %1211 = vmatpush1.bf16.msra.mxu0 0
        %1212 = vmatprep.subr.bf16.mxu0 0
        %1213 = vmatpush1.bf16.msra.mxu0 0
        %1214 = vmatprep.subr.bf16.mxu0 0
        %1215 = vmatpush1.bf16.msra.mxu0 0
        %1216 = vmatprep.subr.bf16.mxu0 %v1182
        %1217 = vmatpush1.bf16.msra.mxu0 %v1179
        %1218 = vmatprep.subr.bf16.mxu0 0
        %1219 = vmatpush2.bf16.msra.mxu0 0
        %1220 = vmatprep.subr.bf16.mxu0 0
        %1221 = vmatpush2.bf16.msra.mxu0 0
        %1222 = vmatprep.subr.bf16.mxu0 0
        %1223 = vmatpush2.bf16.msra.mxu0 0
        %1224 = vmatprep.subr.bf16.mxu0 0
        %1225 = vmatpush2.bf16.msra.mxu0 0
        %1226 = vmatprep.subr.bf16.mxu0 0
        %1227 = vmatpush2.bf16.msra.mxu0 0
        %1228 = vmatprep.subr.bf16.mxu0 0
        %1229 = vmatpush2.bf16.msra.mxu0 0
        %1230 = vmatprep.subr.bf16.mxu0 0
        %1231 = vmatpush2.bf16.msra.mxu0 0
        %1232 = vmatprep.subr.bf16.mxu0 0
        %1233 = vmatpush2.bf16.msra.mxu0 0
        %1234 = vmatprep.mubr.bf16.mxu0 0
        %1235 = vmatmul.mubr.bf16.gmra.mxu0 %v1176
        %v1236 = vpop.f32.mrf.mxu0
        %v1237 = vadd.f32 0.0, %v1236
        %v1238 = vpop.f32.mrf.mxu0
        %v1239 = vadd.f32 0.0, %v1238
        %v1240 = vpop.f32.mrf.mxu0
        %v1241 = vpop.f32.mrf.mxu0
        %1242 = vdwg.mxu0
        %1243 = vmatprep.subr.bf16.mxu0 0
        %1244 = vmatpush1.bf16.msra.mxu0 0
        %1245 = vmatprep.subr.bf16.mxu0 0
        %1246 = vmatpush1.bf16.msra.mxu0 0
        %1247 = vmatprep.subr.bf16.mxu0 0
        %1248 = vmatpush1.bf16.msra.mxu0 0
        %1249 = vmatprep.subr.bf16.mxu0 0
        %1250 = vmatpush1.bf16.msra.mxu0 0
        %1251 = vmatprep.subr.bf16.mxu0 0
        %1252 = vmatpush1.bf16.msra.mxu0 0
        %1253 = vmatprep.subr.bf16.mxu0 0
        %1254 = vmatpush1.bf16.msra.mxu0 0
        %1255 = vmatprep.subr.bf16.mxu0 0
        %1256 = vmatpush1.bf16.msra.mxu0 0
        %1257 = vmatprep.subr.bf16.mxu0 %v1188
        %1258 = vmatpush1.bf16.msra.mxu0 %v1185
        %1259 = vmatprep.subr.bf16.mxu0 0
        %1260 = vmatpush2.bf16.msra.mxu0 0
        %1261 = vmatprep.subr.bf16.mxu0 0
        %1262 = vmatpush2.bf16.msra.mxu0 0
        %1263 = vmatprep.subr.bf16.mxu0 0
        %1264 = vmatpush2.bf16.msra.mxu0 0
        %1265 = vmatprep.subr.bf16.mxu0 0
        %1266 = vmatpush2.bf16.msra.mxu0 0
        %1267 = vmatprep.subr.bf16.mxu0 0
        %1268 = vmatpush2.bf16.msra.mxu0 0
        %1269 = vmatprep.subr.bf16.mxu0 0
        %1270 = vmatpush2.bf16.msra.mxu0 0
        %1271 = vmatprep.subr.bf16.mxu0 0
        %1272 = vmatpush2.bf16.msra.mxu0 0
        %1273 = vmatprep.subr.bf16.mxu0 0
        %1274 = vmatpush2.bf16.msra.mxu0 0
        %1275 = vmatprep.mubr.bf16.mxu0 0
        %1276 = vmatmul.mubr.bf16.gmra.mxu0 %v1176
        %v1277 = vpop.f32.mrf.mxu0
        %v1278 = vadd.f32 0.0, %v1277
        %v1279 = vpop.f32.mrf.mxu0
        %v1280 = vadd.f32 0.0, %v1279
        %v1281 = vpop.f32.mrf.mxu0
        %v1282 = vpop.f32.mrf.mxu0
        %1283 = vdwg.mxu0
        %1284 = vmatprep.subr.bf16.mxu0 0
        %1285 = vmatpush1.bf16.msra.mxu0 0
        %1286 = vmatprep.subr.bf16.mxu0 0
        %1287 = vmatpush1.bf16.msra.mxu0 0
        %1288 = vmatprep.subr.bf16.mxu0 0
        %1289 = vmatpush1.bf16.msra.mxu0 0
        %1290 = vmatprep.subr.bf16.mxu0 0
        %1291 = vmatpush1.bf16.msra.mxu0 0
        %1292 = vmatprep.subr.bf16.mxu0 0
        %1293 = vmatpush1.bf16.msra.mxu0 0
        %1294 = vmatprep.subr.bf16.mxu0 0
        %1295 = vmatpush1.bf16.msra.mxu0 0
        %1296 = vmatprep.subr.bf16.mxu0 0
        %1297 = vmatpush1.bf16.msra.mxu0 0
        %1298 = vmatprep.subr.bf16.mxu0 %v1194
        %1299 = vmatpush1.bf16.msra.mxu0 %v1191
        %1300 = vmatprep.subr.bf16.mxu0 0
        %1301 = vmatpush2.bf16.msra.mxu0 0
        %1302 = vmatprep.subr.bf16.mxu0 0
        %1303 = vmatpush2.bf16.msra.mxu0 0
        %1304 = vmatprep.subr.bf16.mxu0 0
        %1305 = vmatpush2.bf16.msra.mxu0 0
        %1306 = vmatprep.subr.bf16.mxu0 0
        %1307 = vmatpush2.bf16.msra.mxu0 0
        %1308 = vmatprep.subr.bf16.mxu0 0
        %1309 = vmatpush2.bf16.msra.mxu0 0
        %1310 = vmatprep.subr.bf16.mxu0 0
        %1311 = vmatpush2.bf16.msra.mxu0 0
        %1312 = vmatprep.subr.bf16.mxu0 0
        %1313 = vmatpush2.bf16.msra.mxu0 0
        %1314 = vmatprep.subr.bf16.mxu0 0
        %1315 = vmatpush2.bf16.msra.mxu0 0
        %1316 = vmatprep.mubr.bf16.mxu0 0
        %1317 = vmatmul.mubr.bf16.gmra.mxu0 %v1176
        %v1318 = vpop.f32.mrf.mxu0
        %v1319 = vadd.f32 0.0, %v1318
        %v1320 = vpop.f32.mrf.mxu0
        %v1321 = vadd.f32 0.0, %v1320
        %v1322 = vpop.f32.mrf.mxu0
        %v1323 = vpop.f32.mrf.mxu0
        %1324 = vdwg.mxu0
        %1325 = vmatprep.subr.bf16.mxu0 0
        %1326 = vmatpush1.bf16.msra.mxu0 0
        %1327 = vmatprep.subr.bf16.mxu0 0
        %1328 = vmatpush1.bf16.msra.mxu0 0
        %1329 = vmatprep.subr.bf16.mxu0 0
        %1330 = vmatpush1.bf16.msra.mxu0 0
        %1331 = vmatprep.subr.bf16.mxu0 0
        %1332 = vmatpush1.bf16.msra.mxu0 0
        %1333 = vmatprep.subr.bf16.mxu0 0
        %1334 = vmatpush1.bf16.msra.mxu0 0
        %1335 = vmatprep.subr.bf16.mxu0 0
        %1336 = vmatpush1.bf16.msra.mxu0 0
        %1337 = vmatprep.subr.bf16.mxu0 0
        %1338 = vmatpush1.bf16.msra.mxu0 0
        %1339 = vmatprep.subr.bf16.mxu0 %v1200
        %1340 = vmatpush1.bf16.msra.mxu0 %v1197
        %1341 = vmatprep.subr.bf16.mxu0 0
        %1342 = vmatpush2.bf16.msra.mxu0 0
        %1343 = vmatprep.subr.bf16.mxu0 0
        %1344 = vmatpush2.bf16.msra.mxu0 0
        %1345 = vmatprep.subr.bf16.mxu0 0
        %1346 = vmatpush2.bf16.msra.mxu0 0
        %1347 = vmatprep.subr.bf16.mxu0 0
        %1348 = vmatpush2.bf16.msra.mxu0 0
        %1349 = vmatprep.subr.bf16.mxu0 0
        %1350 = vmatpush2.bf16.msra.mxu0 0
        %1351 = vmatprep.subr.bf16.mxu0 0
        %1352 = vmatpush2.bf16.msra.mxu0 0
        %1353 = vmatprep.subr.bf16.mxu0 0
        %1354 = vmatpush2.bf16.msra.mxu0 0
        %1355 = vmatprep.subr.bf16.mxu0 0
        %1356 = vmatpush2.bf16.msra.mxu0 0
        %1357 = vmatprep.mubr.bf16.mxu0 0
        %1358 = vmatmul.mubr.bf16.gmra.mxu0 %v1176
        %v1359 = vpop.f32.mrf.mxu0
        %v1360 = vadd.f32 0.0, %v1359
        %v1361 = vpop.f32.mrf.mxu0
        %v1362 = vadd.f32 0.0, %v1361
        %v1363 = vpop.f32.mrf.mxu0
        %v1364 = vpop.f32.mrf.mxu0
        %1365 = vdwg.mxu0
        %v1366 = vadd.f32 %v1165, %v1237
        %v1367 = vadd.f32 %v1166, %v1239
        %v1368 = vadd.f32 %v1167, %v1278
        %v1369 = vadd.f32 %v1168, %v1280
        %v1370 = vadd.f32 %v1169, %v1319
        %v1371 = vadd.f32 %v1170, %v1321
        %v1372 = vadd.f32 %v1171, %v1360
        %v1373 = vadd.f32 %v1172, %v1362
        %s1374 = scalar_lea.vmem %s2, 20
        %v1375 = vld [vmem:[%s1374] sm:$0xf]
        %v1376 = vunpack.c.h.b16 %v252
        %v1377 = vpack.c.b16 %v1376, %v1376
        %1378 = vrot.lane.b32.xlu0 %v271, 127
        %v1379 = vpop.permute.xlu0 %1378
        %1380 = vrot.lane.b32.xlu0 %v272, 127
        %v1381 = vpop.permute.xlu0 %1380
        %1382 = vrot.lane.b32.xlu0 %v273, 127
        %v1383 = vpop.permute.xlu0 %1382
        %1384 = vrot.lane.b32.xlu0 %v274, 127
        %v1385 = vpop.permute.xlu0 %1384
        %1386 = vrot.lane.b32.xlu0 %v275, 127
        %v1387 = vpop.permute.xlu0 %1386
        %1388 = vrot.lane.b32.xlu0 %v276, 127
        %v1389 = vpop.permute.xlu0 %1388
        %1390 = vrot.lane.b32.xlu0 %v277, 127
        %v1391 = vpop.permute.xlu0 %1390
        %1392 = vrot.lane.b32.xlu0 %v278, 127
        %v1393 = vpop.permute.xlu0 %1392
        %1394 = vrot.lane.b32.xlu0 %v1377, 127
        %v1395 = vpop.permute.xlu0 %1394
        %vm1396 = vcmask 1039360
        %v1397 = vsel %vm1396, %v1379, %v1381
        %v1398 = vsel %vm1396, %v1381, %v1383
        %v1399 = vsel %vm1396, %v1383, %v1385
        %v1400 = vsel %vm1396, %v1385, %v1387
        %v1401 = vsel %vm1396, %v1387, %v1389
        %v1402 = vsel %vm1396, %v1389, %v1391
        %v1403 = vsel %vm1396, %v1391, %v1393
        %v1404 = vsel %vm1396, %v1393, %v1395
        %v1406 = vsel %vm306, %v1375, 0
        %v1409 = vsel %vm310, %v1397, 0
        %v1412 = vsel %vm310, %v1398, 0
        %v1415 = vsel %vm310, %v1399, 0
        %v1418 = vsel %vm310, %v1400, 0
        %v1421 = vsel %vm310, %v1401, 0
        %v1424 = vsel %vm310, %v1402, 0
        %v1427 = vsel %vm310, %v1403, 0
        %v1430 = vsel %vm310, %v1404, 0
        %1432 = vmatprep.subr.bf16.mxu0 0
        %1433 = vmatpush1.bf16.msra.mxu0 0
        %1434 = vmatprep.subr.bf16.mxu0 0
        %1435 = vmatpush1.bf16.msra.mxu0 0
        %1436 = vmatprep.subr.bf16.mxu0 0
        %1437 = vmatpush1.bf16.msra.mxu0 0
        %1438 = vmatprep.subr.bf16.mxu0 0
        %1439 = vmatpush1.bf16.msra.mxu0 0
        %1440 = vmatprep.subr.bf16.mxu0 0
        %1441 = vmatpush1.bf16.msra.mxu0 0
        %1442 = vmatprep.subr.bf16.mxu0 0
        %1443 = vmatpush1.bf16.msra.mxu0 0
        %1444 = vmatprep.subr.bf16.mxu0 0
        %1445 = vmatpush1.bf16.msra.mxu0 0
        %1446 = vmatprep.subr.bf16.mxu0 %v1412
        %1447 = vmatpush1.bf16.msra.mxu0 %v1409
        %1448 = vmatprep.subr.bf16.mxu0 0
        %1449 = vmatpush2.bf16.msra.mxu0 0
        %1450 = vmatprep.subr.bf16.mxu0 0
        %1451 = vmatpush2.bf16.msra.mxu0 0
        %1452 = vmatprep.subr.bf16.mxu0 0
        %1453 = vmatpush2.bf16.msra.mxu0 0
        %1454 = vmatprep.subr.bf16.mxu0 0
        %1455 = vmatpush2.bf16.msra.mxu0 0
        %1456 = vmatprep.subr.bf16.mxu0 0
        %1457 = vmatpush2.bf16.msra.mxu0 0
        %1458 = vmatprep.subr.bf16.mxu0 0
        %1459 = vmatpush2.bf16.msra.mxu0 0
        %1460 = vmatprep.subr.bf16.mxu0 0
        %1461 = vmatpush2.bf16.msra.mxu0 0
        %1462 = vmatprep.subr.bf16.mxu0 0
        %1463 = vmatpush2.bf16.msra.mxu0 0
        %1464 = vmatprep.mubr.bf16.mxu0 0
        %1465 = vmatmul.mubr.bf16.gmra.mxu0 %v1406
        %v1466 = vpop.f32.mrf.mxu0
        %v1467 = vadd.f32 0.0, %v1466
        %v1468 = vpop.f32.mrf.mxu0
        %v1469 = vadd.f32 0.0, %v1468
        %v1470 = vpop.f32.mrf.mxu0
        %v1471 = vpop.f32.mrf.mxu0
        %1472 = vdwg.mxu0
        %1473 = vmatprep.subr.bf16.mxu0 0
        %1474 = vmatpush1.bf16.msra.mxu0 0
        %1475 = vmatprep.subr.bf16.mxu0 0
        %1476 = vmatpush1.bf16.msra.mxu0 0
        %1477 = vmatprep.subr.bf16.mxu0 0
        %1478 = vmatpush1.bf16.msra.mxu0 0
        %1479 = vmatprep.subr.bf16.mxu0 0
        %1480 = vmatpush1.bf16.msra.mxu0 0
        %1481 = vmatprep.subr.bf16.mxu0 0
        %1482 = vmatpush1.bf16.msra.mxu0 0
        %1483 = vmatprep.subr.bf16.mxu0 0
        %1484 = vmatpush1.bf16.msra.mxu0 0
        %1485 = vmatprep.subr.bf16.mxu0 0
        %1486 = vmatpush1.bf16.msra.mxu0 0
        %1487 = vmatprep.subr.bf16.mxu0 %v1418
        %1488 = vmatpush1.bf16.msra.mxu0 %v1415
        %1489 = vmatprep.subr.bf16.mxu0 0
        %1490 = vmatpush2.bf16.msra.mxu0 0
        %1491 = vmatprep.subr.bf16.mxu0 0
        %1492 = vmatpush2.bf16.msra.mxu0 0
        %1493 = vmatprep.subr.bf16.mxu0 0
        %1494 = vmatpush2.bf16.msra.mxu0 0
        %1495 = vmatprep.subr.bf16.mxu0 0
        %1496 = vmatpush2.bf16.msra.mxu0 0
        %1497 = vmatprep.subr.bf16.mxu0 0
        %1498 = vmatpush2.bf16.msra.mxu0 0
        %1499 = vmatprep.subr.bf16.mxu0 0
        %1500 = vmatpush2.bf16.msra.mxu0 0
        %1501 = vmatprep.subr.bf16.mxu0 0
        %1502 = vmatpush2.bf16.msra.mxu0 0
        %1503 = vmatprep.subr.bf16.mxu0 0
        %1504 = vmatpush2.bf16.msra.mxu0 0
        %1505 = vmatprep.mubr.bf16.mxu0 0
        %1506 = vmatmul.mubr.bf16.gmra.mxu0 %v1406
        %v1507 = vpop.f32.mrf.mxu0
        %v1508 = vadd.f32 0.0, %v1507
        %v1509 = vpop.f32.mrf.mxu0
        %v1510 = vadd.f32 0.0, %v1509
        %v1511 = vpop.f32.mrf.mxu0
        %v1512 = vpop.f32.mrf.mxu0
        %1513 = vdwg.mxu0
        %1514 = vmatprep.subr.bf16.mxu0 0
        %1515 = vmatpush1.bf16.msra.mxu0 0
        %1516 = vmatprep.subr.bf16.mxu0 0
        %1517 = vmatpush1.bf16.msra.mxu0 0
        %1518 = vmatprep.subr.bf16.mxu0 0
        %1519 = vmatpush1.bf16.msra.mxu0 0
        %1520 = vmatprep.subr.bf16.mxu0 0
        %1521 = vmatpush1.bf16.msra.mxu0 0
        %1522 = vmatprep.subr.bf16.mxu0 0
        %1523 = vmatpush1.bf16.msra.mxu0 0
        %1524 = vmatprep.subr.bf16.mxu0 0
        %1525 = vmatpush1.bf16.msra.mxu0 0
        %1526 = vmatprep.subr.bf16.mxu0 0
        %1527 = vmatpush1.bf16.msra.mxu0 0
        %1528 = vmatprep.subr.bf16.mxu0 %v1424
        %1529 = vmatpush1.bf16.msra.mxu0 %v1421
        %1530 = vmatprep.subr.bf16.mxu0 0
        %1531 = vmatpush2.bf16.msra.mxu0 0
        %1532 = vmatprep.subr.bf16.mxu0 0
        %1533 = vmatpush2.bf16.msra.mxu0 0
        %1534 = vmatprep.subr.bf16.mxu0 0
        %1535 = vmatpush2.bf16.msra.mxu0 0
        %1536 = vmatprep.subr.bf16.mxu0 0
        %1537 = vmatpush2.bf16.msra.mxu0 0
        %1538 = vmatprep.subr.bf16.mxu0 0
        %1539 = vmatpush2.bf16.msra.mxu0 0
        %1540 = vmatprep.subr.bf16.mxu0 0
        %1541 = vmatpush2.bf16.msra.mxu0 0
        %1542 = vmatprep.subr.bf16.mxu0 0
        %1543 = vmatpush2.bf16.msra.mxu0 0
        %1544 = vmatprep.subr.bf16.mxu0 0
        %1545 = vmatpush2.bf16.msra.mxu0 0
        %1546 = vmatprep.mubr.bf16.mxu0 0
        %1547 = vmatmul.mubr.bf16.gmra.mxu0 %v1406
        %v1548 = vpop.f32.mrf.mxu0
        %v1549 = vadd.f32 0.0, %v1548
        %v1550 = vpop.f32.mrf.mxu0
        %v1551 = vadd.f32 0.0, %v1550
        %v1552 = vpop.f32.mrf.mxu0
        %v1553 = vpop.f32.mrf.mxu0
        %1554 = vdwg.mxu0
        %1555 = vmatprep.subr.bf16.mxu0 0
        %1556 = vmatpush1.bf16.msra.mxu0 0
        %1557 = vmatprep.subr.bf16.mxu0 0
        %1558 = vmatpush1.bf16.msra.mxu0 0
        %1559 = vmatprep.subr.bf16.mxu0 0
        %1560 = vmatpush1.bf16.msra.mxu0 0
        %1561 = vmatprep.subr.bf16.mxu0 0
        %1562 = vmatpush1.bf16.msra.mxu0 0
        %1563 = vmatprep.subr.bf16.mxu0 0
        %1564 = vmatpush1.bf16.msra.mxu0 0
        %1565 = vmatprep.subr.bf16.mxu0 0
        %1566 = vmatpush1.bf16.msra.mxu0 0
        %1567 = vmatprep.subr.bf16.mxu0 0
        %1568 = vmatpush1.bf16.msra.mxu0 0
        %1569 = vmatprep.subr.bf16.mxu0 %v1430
        %1570 = vmatpush1.bf16.msra.mxu0 %v1427
        %1571 = vmatprep.subr.bf16.mxu0 0
        %1572 = vmatpush2.bf16.msra.mxu0 0
        %1573 = vmatprep.subr.bf16.mxu0 0
        %1574 = vmatpush2.bf16.msra.mxu0 0
        %1575 = vmatprep.subr.bf16.mxu0 0
        %1576 = vmatpush2.bf16.msra.mxu0 0
        %1577 = vmatprep.subr.bf16.mxu0 0
        %1578 = vmatpush2.bf16.msra.mxu0 0
        %1579 = vmatprep.subr.bf16.mxu0 0
        %1580 = vmatpush2.bf16.msra.mxu0 0
        %1581 = vmatprep.subr.bf16.mxu0 0
        %1582 = vmatpush2.bf16.msra.mxu0 0
        %1583 = vmatprep.subr.bf16.mxu0 0
        %1584 = vmatpush2.bf16.msra.mxu0 0
        %1585 = vmatprep.subr.bf16.mxu0 0
        %1586 = vmatpush2.bf16.msra.mxu0 0
        %1587 = vmatprep.mubr.bf16.mxu0 0
        %1588 = vmatmul.mubr.bf16.gmra.mxu0 %v1406
        %v1589 = vpop.f32.mrf.mxu0
        %v1590 = vadd.f32 0.0, %v1589
        %v1591 = vpop.f32.mrf.mxu0
        %v1592 = vadd.f32 0.0, %v1591
        %v1593 = vpop.f32.mrf.mxu0
        %v1594 = vpop.f32.mrf.mxu0
        %1595 = vdwg.mxu0
        %v1596 = vadd.f32 %v1366, %v1467
        %v1597 = vadd.f32 %v1367, %v1469
        %v1598 = vadd.f32 %v1368, %v1508
        %v1599 = vadd.f32 %v1369, %v1510
        %v1600 = vadd.f32 %v1370, %v1549
        %v1601 = vadd.f32 %v1371, %v1551
        %v1602 = vadd.f32 %v1372, %v1590
        %v1603 = vadd.f32 %v1373, %v1592
        %s1604 = scalar_lea.vmem %s2, 24
        %v1605 = vld [vmem:[%s1604] sm:$0xf]
        %1606 = vrot.lane.b32.xlu0 %v271, 119
        %v1607 = vpop.permute.xlu0 %1606
        %1608 = vrot.lane.b32.xlu0 %v272, 119
        %v1609 = vpop.permute.xlu0 %1608
        %1610 = vrot.lane.b32.xlu0 %v273, 119
        %v1611 = vpop.permute.xlu0 %1610
        %1612 = vrot.lane.b32.xlu0 %v274, 119
        %v1613 = vpop.permute.xlu0 %1612
        %1614 = vrot.lane.b32.xlu0 %v275, 119
        %v1615 = vpop.permute.xlu0 %1614
        %1616 = vrot.lane.b32.xlu0 %v276, 119
        %v1617 = vpop.permute.xlu0 %1616
        %1618 = vrot.lane.b32.xlu0 %v277, 119
        %v1619 = vpop.permute.xlu0 %1618
        %1620 = vrot.lane.b32.xlu0 %v278, 119
        %v1621 = vpop.permute.xlu0 %1620
        %1622 = vrot.lane.b32.xlu0 %v1377, 119
        %v1623 = vpop.permute.xlu0 %1622
        %vm1624 = vcmask 973824
        %v1625 = vsel %vm1624, %v1607, %v1609
        %v1626 = vsel %vm1624, %v1609, %v1611
        %v1627 = vsel %vm1624, %v1611, %v1613
        %v1628 = vsel %vm1624, %v1613, %v1615
        %v1629 = vsel %vm1624, %v1615, %v1617
        %v1630 = vsel %vm1624, %v1617, %v1619
        %v1631 = vsel %vm1624, %v1619, %v1621
        %v1632 = vsel %vm1624, %v1621, %v1623
        %v1634 = vsel %vm306, %v1605, 0
        %v1637 = vsel %vm310, %v1625, 0
        %v1640 = vsel %vm310, %v1626, 0
        %v1643 = vsel %vm310, %v1627, 0
        %v1646 = vsel %vm310, %v1628, 0
        %v1649 = vsel %vm310, %v1629, 0
        %v1652 = vsel %vm310, %v1630, 0
        %v1655 = vsel %vm310, %v1631, 0
        %v1658 = vsel %vm310, %v1632, 0
        %1660 = vmatprep.subr.bf16.mxu0 0
        %1661 = vmatpush1.bf16.msra.mxu0 0
        %1662 = vmatprep.subr.bf16.mxu0 0
        %1663 = vmatpush1.bf16.msra.mxu0 0
        %1664 = vmatprep.subr.bf16.mxu0 0
        %1665 = vmatpush1.bf16.msra.mxu0 0
        %1666 = vmatprep.subr.bf16.mxu0 0
        %1667 = vmatpush1.bf16.msra.mxu0 0
        %1668 = vmatprep.subr.bf16.mxu0 0
        %1669 = vmatpush1.bf16.msra.mxu0 0
        %1670 = vmatprep.subr.bf16.mxu0 0
        %1671 = vmatpush1.bf16.msra.mxu0 0
        %1672 = vmatprep.subr.bf16.mxu0 0
        %1673 = vmatpush1.bf16.msra.mxu0 0
        %1674 = vmatprep.subr.bf16.mxu0 %v1640
        %1675 = vmatpush1.bf16.msra.mxu0 %v1637
        %1676 = vmatprep.subr.bf16.mxu0 0
        %1677 = vmatpush2.bf16.msra.mxu0 0
        %1678 = vmatprep.subr.bf16.mxu0 0
        %1679 = vmatpush2.bf16.msra.mxu0 0
        %1680 = vmatprep.subr.bf16.mxu0 0
        %1681 = vmatpush2.bf16.msra.mxu0 0
        %1682 = vmatprep.subr.bf16.mxu0 0
        %1683 = vmatpush2.bf16.msra.mxu0 0
        %1684 = vmatprep.subr.bf16.mxu0 0
        %1685 = vmatpush2.bf16.msra.mxu0 0
        %1686 = vmatprep.subr.bf16.mxu0 0
        %1687 = vmatpush2.bf16.msra.mxu0 0
        %1688 = vmatprep.subr.bf16.mxu0 0
        %1689 = vmatpush2.bf16.msra.mxu0 0
        %1690 = vmatprep.subr.bf16.mxu0 0
        %1691 = vmatpush2.bf16.msra.mxu0 0
        %1692 = vmatprep.mubr.bf16.mxu0 0
        %1693 = vmatmul.mubr.bf16.gmra.mxu0 %v1634
        %v1694 = vpop.f32.mrf.mxu0
        %v1695 = vadd.f32 0.0, %v1694
        %v1696 = vpop.f32.mrf.mxu0
        %v1697 = vadd.f32 0.0, %v1696
        %v1698 = vpop.f32.mrf.mxu0
        %v1699 = vpop.f32.mrf.mxu0
        %1700 = vdwg.mxu0
        %1701 = vmatprep.subr.bf16.mxu0 0
        %1702 = vmatpush1.bf16.msra.mxu0 0
        %1703 = vmatprep.subr.bf16.mxu0 0
        %1704 = vmatpush1.bf16.msra.mxu0 0
        %1705 = vmatprep.subr.bf16.mxu0 0
        %1706 = vmatpush1.bf16.msra.mxu0 0
        %1707 = vmatprep.subr.bf16.mxu0 0
        %1708 = vmatpush1.bf16.msra.mxu0 0
        %1709 = vmatprep.subr.bf16.mxu0 0
        %1710 = vmatpush1.bf16.msra.mxu0 0
        %1711 = vmatprep.subr.bf16.mxu0 0
        %1712 = vmatpush1.bf16.msra.mxu0 0
        %1713 = vmatprep.subr.bf16.mxu0 0
        %1714 = vmatpush1.bf16.msra.mxu0 0
        %1715 = vmatprep.subr.bf16.mxu0 %v1646
        %1716 = vmatpush1.bf16.msra.mxu0 %v1643
        %1717 = vmatprep.subr.bf16.mxu0 0
        %1718 = vmatpush2.bf16.msra.mxu0 0
        %1719 = vmatprep.subr.bf16.mxu0 0
        %1720 = vmatpush2.bf16.msra.mxu0 0
        %1721 = vmatprep.subr.bf16.mxu0 0
        %1722 = vmatpush2.bf16.msra.mxu0 0
        %1723 = vmatprep.subr.bf16.mxu0 0
        %1724 = vmatpush2.bf16.msra.mxu0 0
        %1725 = vmatprep.subr.bf16.mxu0 0
        %1726 = vmatpush2.bf16.msra.mxu0 0
        %1727 = vmatprep.subr.bf16.mxu0 0
        %1728 = vmatpush2.bf16.msra.mxu0 0
        %1729 = vmatprep.subr.bf16.mxu0 0
        %1730 = vmatpush2.bf16.msra.mxu0 0
        %1731 = vmatprep.subr.bf16.mxu0 0
        %1732 = vmatpush2.bf16.msra.mxu0 0
        %1733 = vmatprep.mubr.bf16.mxu0 0
        %1734 = vmatmul.mubr.bf16.gmra.mxu0 %v1634
        %v1735 = vpop.f32.mrf.mxu0
        %v1736 = vadd.f32 0.0, %v1735
        %v1737 = vpop.f32.mrf.mxu0
        %v1738 = vadd.f32 0.0, %v1737
        %v1739 = vpop.f32.mrf.mxu0
        %v1740 = vpop.f32.mrf.mxu0
        %1741 = vdwg.mxu0
        %1742 = vmatprep.subr.bf16.mxu0 0
        %1743 = vmatpush1.bf16.msra.mxu0 0
        %1744 = vmatprep.subr.bf16.mxu0 0
        %1745 = vmatpush1.bf16.msra.mxu0 0
        %1746 = vmatprep.subr.bf16.mxu0 0
        %1747 = vmatpush1.bf16.msra.mxu0 0
        %1748 = vmatprep.subr.bf16.mxu0 0
        %1749 = vmatpush1.bf16.msra.mxu0 0
        %1750 = vmatprep.subr.bf16.mxu0 0
        %1751 = vmatpush1.bf16.msra.mxu0 0
        %1752 = vmatprep.subr.bf16.mxu0 0
        %1753 = vmatpush1.bf16.msra.mxu0 0
        %1754 = vmatprep.subr.bf16.mxu0 0
        %1755 = vmatpush1.bf16.msra.mxu0 0
        %1756 = vmatprep.subr.bf16.mxu0 %v1652
        %1757 = vmatpush1.bf16.msra.mxu0 %v1649
        %1758 = vmatprep.subr.bf16.mxu0 0
        %1759 = vmatpush2.bf16.msra.mxu0 0
        %1760 = vmatprep.subr.bf16.mxu0 0
        %1761 = vmatpush2.bf16.msra.mxu0 0
        %1762 = vmatprep.subr.bf16.mxu0 0
        %1763 = vmatpush2.bf16.msra.mxu0 0
        %1764 = vmatprep.subr.bf16.mxu0 0
        %1765 = vmatpush2.bf16.msra.mxu0 0
        %1766 = vmatprep.subr.bf16.mxu0 0
        %1767 = vmatpush2.bf16.msra.mxu0 0
        %1768 = vmatprep.subr.bf16.mxu0 0
        %1769 = vmatpush2.bf16.msra.mxu0 0
        %1770 = vmatprep.subr.bf16.mxu0 0
        %1771 = vmatpush2.bf16.msra.mxu0 0
        %1772 = vmatprep.subr.bf16.mxu0 0
        %1773 = vmatpush2.bf16.msra.mxu0 0
        %1774 = vmatprep.mubr.bf16.mxu0 0
        %1775 = vmatmul.mubr.bf16.gmra.mxu0 %v1634
        %v1776 = vpop.f32.mrf.mxu0
        %v1777 = vadd.f32 0.0, %v1776
        %v1778 = vpop.f32.mrf.mxu0
        %v1779 = vadd.f32 0.0, %v1778
        %v1780 = vpop.f32.mrf.mxu0
        %v1781 = vpop.f32.mrf.mxu0
        %1782 = vdwg.mxu0
        %1783 = vmatprep.subr.bf16.mxu0 0
        %1784 = vmatpush1.bf16.msra.mxu0 0
        %1785 = vmatprep.subr.bf16.mxu0 0
        %1786 = vmatpush1.bf16.msra.mxu0 0
        %1787 = vmatprep.subr.bf16.mxu0 0
        %1788 = vmatpush1.bf16.msra.mxu0 0
        %1789 = vmatprep.subr.bf16.mxu0 0
        %1790 = vmatpush1.bf16.msra.mxu0 0
        %1791 = vmatprep.subr.bf16.mxu0 0
        %1792 = vmatpush1.bf16.msra.mxu0 0
        %1793 = vmatprep.subr.bf16.mxu0 0
        %1794 = vmatpush1.bf16.msra.mxu0 0
        %1795 = vmatprep.subr.bf16.mxu0 0
        %1796 = vmatpush1.bf16.msra.mxu0 0
        %1797 = vmatprep.subr.bf16.mxu0 %v1658
        %1798 = vmatpush1.bf16.msra.mxu0 %v1655
        %1799 = vmatprep.subr.bf16.mxu0 0
        %1800 = vmatpush2.bf16.msra.mxu0 0
        %1801 = vmatprep.subr.bf16.mxu0 0
        %1802 = vmatpush2.bf16.msra.mxu0 0
        %1803 = vmatprep.subr.bf16.mxu0 0
        %1804 = vmatpush2.bf16.msra.mxu0 0
        %1805 = vmatprep.subr.bf16.mxu0 0
        %1806 = vmatpush2.bf16.msra.mxu0 0
        %1807 = vmatprep.subr.bf16.mxu0 0
        %1808 = vmatpush2.bf16.msra.mxu0 0
        %1809 = vmatprep.subr.bf16.mxu0 0
        %1810 = vmatpush2.bf16.msra.mxu0 0
        %1811 = vmatprep.subr.bf16.mxu0 0
        %1812 = vmatpush2.bf16.msra.mxu0 0
        %1813 = vmatprep.subr.bf16.mxu0 0
        %1814 = vmatpush2.bf16.msra.mxu0 0
        %1815 = vmatprep.mubr.bf16.mxu0 0
        %1816 = vmatmul.mubr.bf16.gmra.mxu0 %v1634
        %v1817 = vpop.f32.mrf.mxu0
        %v1818 = vadd.f32 0.0, %v1817
        %v1819 = vpop.f32.mrf.mxu0
        %v1820 = vadd.f32 0.0, %v1819
        %v1821 = vpop.f32.mrf.mxu0
        %v1822 = vpop.f32.mrf.mxu0
        %1823 = vdwg.mxu0
        %v1824 = vadd.f32 %v1596, %v1695
        %v1825 = vadd.f32 %v1597, %v1697
        %v1826 = vadd.f32 %v1598, %v1736
        %v1827 = vadd.f32 %v1599, %v1738
        %v1828 = vadd.f32 %v1600, %v1777
        %v1829 = vadd.f32 %v1601, %v1779
        %v1830 = vadd.f32 %v1602, %v1818
        %v1831 = vadd.f32 %v1603, %v1820
        %s1832 = scalar_lea.vmem %s2, 28
        %v1833 = vld [vmem:[%s1832] sm:$0xf]
        %1834 = vrot.lane.b32.xlu0 %v271, 118
        %v1835 = vpop.permute.xlu0 %1834
        %1836 = vrot.lane.b32.xlu0 %v272, 118
        %v1837 = vpop.permute.xlu0 %1836
        %1838 = vrot.lane.b32.xlu0 %v273, 118
        %v1839 = vpop.permute.xlu0 %1838
        %1840 = vrot.lane.b32.xlu0 %v274, 118
        %v1841 = vpop.permute.xlu0 %1840
        %1842 = vrot.lane.b32.xlu0 %v275, 118
        %v1843 = vpop.permute.xlu0 %1842
        %1844 = vrot.lane.b32.xlu0 %v276, 118
        %v1845 = vpop.permute.xlu0 %1844
        %1846 = vrot.lane.b32.xlu0 %v277, 118
        %v1847 = vpop.permute.xlu0 %1846
        %1848 = vrot.lane.b32.xlu0 %v278, 118
        %v1849 = vpop.permute.xlu0 %1848
        %1850 = vrot.lane.b32.xlu0 %v1377, 118
        %v1851 = vpop.permute.xlu0 %1850
        %vm1852 = vcmask 965632
        %v1853 = vsel %vm1852, %v1835, %v1837
        %v1854 = vsel %vm1852, %v1837, %v1839
        %v1855 = vsel %vm1852, %v1839, %v1841
        %v1856 = vsel %vm1852, %v1841, %v1843
        %v1857 = vsel %vm1852, %v1843, %v1845
        %v1858 = vsel %vm1852, %v1845, %v1847
        %v1859 = vsel %vm1852, %v1847, %v1849
        %v1860 = vsel %vm1852, %v1849, %v1851
        %v1862 = vsel %vm306, %v1833, 0
        %v1865 = vsel %vm310, %v1853, 0
        %v1868 = vsel %vm310, %v1854, 0
        %v1871 = vsel %vm310, %v1855, 0
        %v1874 = vsel %vm310, %v1856, 0
        %v1877 = vsel %vm310, %v1857, 0
        %v1880 = vsel %vm310, %v1858, 0
        %v1883 = vsel %vm310, %v1859, 0
        %v1886 = vsel %vm310, %v1860, 0
        %1888 = vmatprep.subr.bf16.mxu0 0
        %1889 = vmatpush1.bf16.msra.mxu0 0
        %1890 = vmatprep.subr.bf16.mxu0 0
        %1891 = vmatpush1.bf16.msra.mxu0 0
        %1892 = vmatprep.subr.bf16.mxu0 0
        %1893 = vmatpush1.bf16.msra.mxu0 0
        %1894 = vmatprep.subr.bf16.mxu0 0
        %1895 = vmatpush1.bf16.msra.mxu0 0
        %1896 = vmatprep.subr.bf16.mxu0 0
        %1897 = vmatpush1.bf16.msra.mxu0 0
        %1898 = vmatprep.subr.bf16.mxu0 0
        %1899 = vmatpush1.bf16.msra.mxu0 0
        %1900 = vmatprep.subr.bf16.mxu0 0
        %1901 = vmatpush1.bf16.msra.mxu0 0
        %1902 = vmatprep.subr.bf16.mxu0 %v1868
        %1903 = vmatpush1.bf16.msra.mxu0 %v1865
        %1904 = vmatprep.subr.bf16.mxu0 0
        %1905 = vmatpush2.bf16.msra.mxu0 0
        %1906 = vmatprep.subr.bf16.mxu0 0
        %1907 = vmatpush2.bf16.msra.mxu0 0
        %1908 = vmatprep.subr.bf16.mxu0 0
        %1909 = vmatpush2.bf16.msra.mxu0 0
        %1910 = vmatprep.subr.bf16.mxu0 0
        %1911 = vmatpush2.bf16.msra.mxu0 0
        %1912 = vmatprep.subr.bf16.mxu0 0
        %1913 = vmatpush2.bf16.msra.mxu0 0
        %1914 = vmatprep.subr.bf16.mxu0 0
        %1915 = vmatpush2.bf16.msra.mxu0 0
        %1916 = vmatprep.subr.bf16.mxu0 0
        %1917 = vmatpush2.bf16.msra.mxu0 0
        %1918 = vmatprep.subr.bf16.mxu0 0
        %1919 = vmatpush2.bf16.msra.mxu0 0
        %1920 = vmatprep.mubr.bf16.mxu0 0
        %1921 = vmatmul.mubr.bf16.gmra.mxu0 %v1862
        %v1922 = vpop.f32.mrf.mxu0
        %v1923 = vadd.f32 0.0, %v1922
        %v1924 = vpop.f32.mrf.mxu0
        %v1925 = vadd.f32 0.0, %v1924
        %v1926 = vpop.f32.mrf.mxu0
        %v1927 = vpop.f32.mrf.mxu0
        %1928 = vdwg.mxu0
        %1929 = vmatprep.subr.bf16.mxu0 0
        %1930 = vmatpush1.bf16.msra.mxu0 0
        %1931 = vmatprep.subr.bf16.mxu0 0
        %1932 = vmatpush1.bf16.msra.mxu0 0
        %1933 = vmatprep.subr.bf16.mxu0 0
        %1934 = vmatpush1.bf16.msra.mxu0 0
        %1935 = vmatprep.subr.bf16.mxu0 0
        %1936 = vmatpush1.bf16.msra.mxu0 0
        %1937 = vmatprep.subr.bf16.mxu0 0
        %1938 = vmatpush1.bf16.msra.mxu0 0
        %1939 = vmatprep.subr.bf16.mxu0 0
        %1940 = vmatpush1.bf16.msra.mxu0 0
        %1941 = vmatprep.subr.bf16.mxu0 0
        %1942 = vmatpush1.bf16.msra.mxu0 0
        %1943 = vmatprep.subr.bf16.mxu0 %v1874
        %1944 = vmatpush1.bf16.msra.mxu0 %v1871
        %1945 = vmatprep.subr.bf16.mxu0 0
        %1946 = vmatpush2.bf16.msra.mxu0 0
        %1947 = vmatprep.subr.bf16.mxu0 0
        %1948 = vmatpush2.bf16.msra.mxu0 0
        %1949 = vmatprep.subr.bf16.mxu0 0
        %1950 = vmatpush2.bf16.msra.mxu0 0
        %1951 = vmatprep.subr.bf16.mxu0 0
        %1952 = vmatpush2.bf16.msra.mxu0 0
        %1953 = vmatprep.subr.bf16.mxu0 0
        %1954 = vmatpush2.bf16.msra.mxu0 0
        %1955 = vmatprep.subr.bf16.mxu0 0
        %1956 = vmatpush2.bf16.msra.mxu0 0
        %1957 = vmatprep.subr.bf16.mxu0 0
        %1958 = vmatpush2.bf16.msra.mxu0 0
        %1959 = vmatprep.subr.bf16.mxu0 0
        %1960 = vmatpush2.bf16.msra.mxu0 0
        %1961 = vmatprep.mubr.bf16.mxu0 0
        %1962 = vmatmul.mubr.bf16.gmra.mxu0 %v1862
        %v1963 = vpop.f32.mrf.mxu0
        %v1964 = vadd.f32 0.0, %v1963
        %v1965 = vpop.f32.mrf.mxu0
        %v1966 = vadd.f32 0.0, %v1965
        %v1967 = vpop.f32.mrf.mxu0
        %v1968 = vpop.f32.mrf.mxu0
        %1969 = vdwg.mxu0
        %1970 = vmatprep.subr.bf16.mxu0 0
        %1971 = vmatpush1.bf16.msra.mxu0 0
        %1972 = vmatprep.subr.bf16.mxu0 0
        %1973 = vmatpush1.bf16.msra.mxu0 0
        %1974 = vmatprep.subr.bf16.mxu0 0
        %1975 = vmatpush1.bf16.msra.mxu0 0
        %1976 = vmatprep.subr.bf16.mxu0 0
        %1977 = vmatpush1.bf16.msra.mxu0 0
        %1978 = vmatprep.subr.bf16.mxu0 0
        %1979 = vmatpush1.bf16.msra.mxu0 0
        %1980 = vmatprep.subr.bf16.mxu0 0
        %1981 = vmatpush1.bf16.msra.mxu0 0
        %1982 = vmatprep.subr.bf16.mxu0 0
        %1983 = vmatpush1.bf16.msra.mxu0 0
        %1984 = vmatprep.subr.bf16.mxu0 %v1880
        %1985 = vmatpush1.bf16.msra.mxu0 %v1877
        %1986 = vmatprep.subr.bf16.mxu0 0
        %1987 = vmatpush2.bf16.msra.mxu0 0
        %1988 = vmatprep.subr.bf16.mxu0 0
        %1989 = vmatpush2.bf16.msra.mxu0 0
        %1990 = vmatprep.subr.bf16.mxu0 0
        %1991 = vmatpush2.bf16.msra.mxu0 0
        %1992 = vmatprep.subr.bf16.mxu0 0
        %1993 = vmatpush2.bf16.msra.mxu0 0
        %1994 = vmatprep.subr.bf16.mxu0 0
        %1995 = vmatpush2.bf16.msra.mxu0 0
        %1996 = vmatprep.subr.bf16.mxu0 0
        %1997 = vmatpush2.bf16.msra.mxu0 0
        %1998 = vmatprep.subr.bf16.mxu0 0
        %1999 = vmatpush2.bf16.msra.mxu0 0
        %2000 = vmatprep.subr.bf16.mxu0 0
        %2001 = vmatpush2.bf16.msra.mxu0 0
        %2002 = vmatprep.mubr.bf16.mxu0 0
        %2003 = vmatmul.mubr.bf16.gmra.mxu0 %v1862
        %v2004 = vpop.f32.mrf.mxu0
        %v2005 = vadd.f32 0.0, %v2004
        %v2006 = vpop.f32.mrf.mxu0
        %v2007 = vadd.f32 0.0, %v2006
        %v2008 = vpop.f32.mrf.mxu0
        %v2009 = vpop.f32.mrf.mxu0
        %2010 = vdwg.mxu0
        %2011 = vmatprep.subr.bf16.mxu0 0
        %2012 = vmatpush1.bf16.msra.mxu0 0
        %2013 = vmatprep.subr.bf16.mxu0 0
        %2014 = vmatpush1.bf16.msra.mxu0 0
        %2015 = vmatprep.subr.bf16.mxu0 0
        %2016 = vmatpush1.bf16.msra.mxu0 0
        %2017 = vmatprep.subr.bf16.mxu0 0
        %2018 = vmatpush1.bf16.msra.mxu0 0
        %2019 = vmatprep.subr.bf16.mxu0 0
        %2020 = vmatpush1.bf16.msra.mxu0 0
        %2021 = vmatprep.subr.bf16.mxu0 0
        %2022 = vmatpush1.bf16.msra.mxu0 0
        %2023 = vmatprep.subr.bf16.mxu0 0
        %2024 = vmatpush1.bf16.msra.mxu0 0
        %2025 = vmatprep.subr.bf16.mxu0 %v1886
        %2026 = vmatpush1.bf16.msra.mxu0 %v1883
        %2027 = vmatprep.subr.bf16.mxu0 0
        %2028 = vmatpush2.bf16.msra.mxu0 0
        %2029 = vmatprep.subr.bf16.mxu0 0
        %2030 = vmatpush2.bf16.msra.mxu0 0
        %2031 = vmatprep.subr.bf16.mxu0 0
        %2032 = vmatpush2.bf16.msra.mxu0 0
        %2033 = vmatprep.subr.bf16.mxu0 0
        %2034 = vmatpush2.bf16.msra.mxu0 0
        %2035 = vmatprep.subr.bf16.mxu0 0
        %2036 = vmatpush2.bf16.msra.mxu0 0
        %2037 = vmatprep.subr.bf16.mxu0 0
        %2038 = vmatpush2.bf16.msra.mxu0 0
        %2039 = vmatprep.subr.bf16.mxu0 0
        %2040 = vmatpush2.bf16.msra.mxu0 0
        %2041 = vmatprep.subr.bf16.mxu0 0
        %2042 = vmatpush2.bf16.msra.mxu0 0
        %2043 = vmatprep.mubr.bf16.mxu0 0
        %2044 = vmatmul.mubr.bf16.gmra.mxu0 %v1862
        %v2045 = vpop.f32.mrf.mxu0
        %v2046 = vadd.f32 0.0, %v2045
        %v2047 = vpop.f32.mrf.mxu0
        %v2048 = vadd.f32 0.0, %v2047
        %v2049 = vpop.f32.mrf.mxu0
        %v2050 = vpop.f32.mrf.mxu0
        %2051 = vdwg.mxu0
        %v2052 = vadd.f32 %v1824, %v1923
        %v2053 = vadd.f32 %v1825, %v1925
        %v2054 = vadd.f32 %v1826, %v1964
        %v2055 = vadd.f32 %v1827, %v1966
        %v2056 = vadd.f32 %v1828, %v2005
        %v2057 = vadd.f32 %v1829, %v2007
        %v2058 = vadd.f32 %v1830, %v2046
        %v2059 = vadd.f32 %v1831, %v2048
        %s2060 = scalar_lea.vmem %s2, 32
        %v2061 = vld [vmem:[%s2060] sm:$0xf]
        %2062 = vrot.lane.b32.xlu0 %v271, 117
        %v2063 = vpop.permute.xlu0 %2062
        %2064 = vrot.lane.b32.xlu0 %v272, 117
        %v2065 = vpop.permute.xlu0 %2064
        %2066 = vrot.lane.b32.xlu0 %v273, 117
        %v2067 = vpop.permute.xlu0 %2066
        %2068 = vrot.lane.b32.xlu0 %v274, 117
        %v2069 = vpop.permute.xlu0 %2068
        %2070 = vrot.lane.b32.xlu0 %v275, 117
        %v2071 = vpop.permute.xlu0 %2070
        %2072 = vrot.lane.b32.xlu0 %v276, 117
        %v2073 = vpop.permute.xlu0 %2072
        %2074 = vrot.lane.b32.xlu0 %v277, 117
        %v2075 = vpop.permute.xlu0 %2074
        %2076 = vrot.lane.b32.xlu0 %v278, 117
        %v2077 = vpop.permute.xlu0 %2076
        %2078 = vrot.lane.b32.xlu0 %v1377, 117
        %v2079 = vpop.permute.xlu0 %2078
        %vm2080 = vcmask 957440
        %v2081 = vsel %vm2080, %v2063, %v2065
        %v2082 = vsel %vm2080, %v2065, %v2067
        %v2083 = vsel %vm2080, %v2067, %v2069
        %v2084 = vsel %vm2080, %v2069, %v2071
        %v2085 = vsel %vm2080, %v2071, %v2073
        %v2086 = vsel %vm2080, %v2073, %v2075
        %v2087 = vsel %vm2080, %v2075, %v2077
        %v2088 = vsel %vm2080, %v2077, %v2079
        %v2090 = vsel %vm306, %v2061, 0
        %v2093 = vsel %vm310, %v2081, 0
        %v2096 = vsel %vm310, %v2082, 0
        %v2099 = vsel %vm310, %v2083, 0
        %v2102 = vsel %vm310, %v2084, 0
        %v2105 = vsel %vm310, %v2085, 0
        %v2108 = vsel %vm310, %v2086, 0
        %v2111 = vsel %vm310, %v2087, 0
        %v2114 = vsel %vm310, %v2088, 0
        %2116 = vmatprep.subr.bf16.mxu0 0
        %2117 = vmatpush1.bf16.msra.mxu0 0
        %2118 = vmatprep.subr.bf16.mxu0 0
        %2119 = vmatpush1.bf16.msra.mxu0 0
        %2120 = vmatprep.subr.bf16.mxu0 0
        %2121 = vmatpush1.bf16.msra.mxu0 0
        %2122 = vmatprep.subr.bf16.mxu0 0
        %2123 = vmatpush1.bf16.msra.mxu0 0
        %2124 = vmatprep.subr.bf16.mxu0 0
        %2125 = vmatpush1.bf16.msra.mxu0 0
        %2126 = vmatprep.subr.bf16.mxu0 0
        %2127 = vmatpush1.bf16.msra.mxu0 0
        %2128 = vmatprep.subr.bf16.mxu0 0
        %2129 = vmatpush1.bf16.msra.mxu0 0
        %2130 = vmatprep.subr.bf16.mxu0 %v2096
        %2131 = vmatpush1.bf16.msra.mxu0 %v2093
        %2132 = vmatprep.subr.bf16.mxu0 0
        %2133 = vmatpush2.bf16.msra.mxu0 0
        %2134 = vmatprep.subr.bf16.mxu0 0
        %2135 = vmatpush2.bf16.msra.mxu0 0
        %2136 = vmatprep.subr.bf16.mxu0 0
        %2137 = vmatpush2.bf16.msra.mxu0 0
        %2138 = vmatprep.subr.bf16.mxu0 0
        %2139 = vmatpush2.bf16.msra.mxu0 0
        %2140 = vmatprep.subr.bf16.mxu0 0
        %2141 = vmatpush2.bf16.msra.mxu0 0
        %2142 = vmatprep.subr.bf16.mxu0 0
        %2143 = vmatpush2.bf16.msra.mxu0 0
        %2144 = vmatprep.subr.bf16.mxu0 0
        %2145 = vmatpush2.bf16.msra.mxu0 0
        %2146 = vmatprep.subr.bf16.mxu0 0
        %2147 = vmatpush2.bf16.msra.mxu0 0
        %2148 = vmatprep.mubr.bf16.mxu0 0
        %2149 = vmatmul.mubr.bf16.gmra.mxu0 %v2090
        %v2150 = vpop.f32.mrf.mxu0
        %v2151 = vadd.f32 0.0, %v2150
        %v2152 = vpop.f32.mrf.mxu0
        %v2153 = vadd.f32 0.0, %v2152
        %v2154 = vpop.f32.mrf.mxu0
        %v2155 = vpop.f32.mrf.mxu0
        %2156 = vdwg.mxu0
        %2157 = vmatprep.subr.bf16.mxu0 0
        %2158 = vmatpush1.bf16.msra.mxu0 0
        %2159 = vmatprep.subr.bf16.mxu0 0
        %2160 = vmatpush1.bf16.msra.mxu0 0
        %2161 = vmatprep.subr.bf16.mxu0 0
        %2162 = vmatpush1.bf16.msra.mxu0 0
        %2163 = vmatprep.subr.bf16.mxu0 0
        %2164 = vmatpush1.bf16.msra.mxu0 0
        %2165 = vmatprep.subr.bf16.mxu0 0
        %2166 = vmatpush1.bf16.msra.mxu0 0
        %2167 = vmatprep.subr.bf16.mxu0 0
        %2168 = vmatpush1.bf16.msra.mxu0 0
        %2169 = vmatprep.subr.bf16.mxu0 0
        %2170 = vmatpush1.bf16.msra.mxu0 0
        %2171 = vmatprep.subr.bf16.mxu0 %v2102
        %2172 = vmatpush1.bf16.msra.mxu0 %v2099
        %2173 = vmatprep.subr.bf16.mxu0 0
        %2174 = vmatpush2.bf16.msra.mxu0 0
        %2175 = vmatprep.subr.bf16.mxu0 0
        %2176 = vmatpush2.bf16.msra.mxu0 0
        %2177 = vmatprep.subr.bf16.mxu0 0
        %2178 = vmatpush2.bf16.msra.mxu0 0
        %2179 = vmatprep.subr.bf16.mxu0 0
        %2180 = vmatpush2.bf16.msra.mxu0 0
        %2181 = vmatprep.subr.bf16.mxu0 0
        %2182 = vmatpush2.bf16.msra.mxu0 0
        %2183 = vmatprep.subr.bf16.mxu0 0
        %2184 = vmatpush2.bf16.msra.mxu0 0
        %2185 = vmatprep.subr.bf16.mxu0 0
        %2186 = vmatpush2.bf16.msra.mxu0 0
        %2187 = vmatprep.subr.bf16.mxu0 0
        %2188 = vmatpush2.bf16.msra.mxu0 0
        %2189 = vmatprep.mubr.bf16.mxu0 0
        %2190 = vmatmul.mubr.bf16.gmra.mxu0 %v2090
        %v2191 = vpop.f32.mrf.mxu0
        %v2192 = vadd.f32 0.0, %v2191
        %v2193 = vpop.f32.mrf.mxu0
        %v2194 = vadd.f32 0.0, %v2193
        %v2195 = vpop.f32.mrf.mxu0
        %v2196 = vpop.f32.mrf.mxu0
        %2197 = vdwg.mxu0
        %2198 = vmatprep.subr.bf16.mxu0 0
        %2199 = vmatpush1.bf16.msra.mxu0 0
        %2200 = vmatprep.subr.bf16.mxu0 0
        %2201 = vmatpush1.bf16.msra.mxu0 0
        %2202 = vmatprep.subr.bf16.mxu0 0
        %2203 = vmatpush1.bf16.msra.mxu0 0
        %2204 = vmatprep.subr.bf16.mxu0 0
        %2205 = vmatpush1.bf16.msra.mxu0 0
        %2206 = vmatprep.subr.bf16.mxu0 0
        %2207 = vmatpush1.bf16.msra.mxu0 0
        %2208 = vmatprep.subr.bf16.mxu0 0
        %2209 = vmatpush1.bf16.msra.mxu0 0
        %2210 = vmatprep.subr.bf16.mxu0 0
        %2211 = vmatpush1.bf16.msra.mxu0 0
        %2212 = vmatprep.subr.bf16.mxu0 %v2108
        %2213 = vmatpush1.bf16.msra.mxu0 %v2105
        %2214 = vmatprep.subr.bf16.mxu0 0
        %2215 = vmatpush2.bf16.msra.mxu0 0
        %2216 = vmatprep.subr.bf16.mxu0 0
        %2217 = vmatpush2.bf16.msra.mxu0 0
        %2218 = vmatprep.subr.bf16.mxu0 0
        %2219 = vmatpush2.bf16.msra.mxu0 0
        %2220 = vmatprep.subr.bf16.mxu0 0
        %2221 = vmatpush2.bf16.msra.mxu0 0
        %2222 = vmatprep.subr.bf16.mxu0 0
        %2223 = vmatpush2.bf16.msra.mxu0 0
        %2224 = vmatprep.subr.bf16.mxu0 0
        %2225 = vmatpush2.bf16.msra.mxu0 0
        %2226 = vmatprep.subr.bf16.mxu0 0
        %2227 = vmatpush2.bf16.msra.mxu0 0
        %2228 = vmatprep.subr.bf16.mxu0 0
        %2229 = vmatpush2.bf16.msra.mxu0 0
        %2230 = vmatprep.mubr.bf16.mxu0 0
        %2231 = vmatmul.mubr.bf16.gmra.mxu0 %v2090
        %v2232 = vpop.f32.mrf.mxu0
        %v2233 = vadd.f32 0.0, %v2232
        %v2234 = vpop.f32.mrf.mxu0
        %v2235 = vadd.f32 0.0, %v2234
        %v2236 = vpop.f32.mrf.mxu0
        %v2237 = vpop.f32.mrf.mxu0
        %2238 = vdwg.mxu0
        %2239 = vmatprep.subr.bf16.mxu0 0
        %2240 = vmatpush1.bf16.msra.mxu0 0
        %2241 = vmatprep.subr.bf16.mxu0 0
        %2242 = vmatpush1.bf16.msra.mxu0 0
        %2243 = vmatprep.subr.bf16.mxu0 0
        %2244 = vmatpush1.bf16.msra.mxu0 0
        %2245 = vmatprep.subr.bf16.mxu0 0
        %2246 = vmatpush1.bf16.msra.mxu0 0
        %2247 = vmatprep.subr.bf16.mxu0 0
        %2248 = vmatpush1.bf16.msra.mxu0 0
        %2249 = vmatprep.subr.bf16.mxu0 0
        %2250 = vmatpush1.bf16.msra.mxu0 0
        %2251 = vmatprep.subr.bf16.mxu0 0
        %2252 = vmatpush1.bf16.msra.mxu0 0
        %2253 = vmatprep.subr.bf16.mxu0 %v2114
        %2254 = vmatpush1.bf16.msra.mxu0 %v2111
        %2255 = vmatprep.subr.bf16.mxu0 0
        %2256 = vmatpush2.bf16.msra.mxu0 0
        %2257 = vmatprep.subr.bf16.mxu0 0
        %2258 = vmatpush2.bf16.msra.mxu0 0
        %2259 = vmatprep.subr.bf16.mxu0 0
        %2260 = vmatpush2.bf16.msra.mxu0 0
        %2261 = vmatprep.subr.bf16.mxu0 0
        %2262 = vmatpush2.bf16.msra.mxu0 0
        %2263 = vmatprep.subr.bf16.mxu0 0
        %2264 = vmatpush2.bf16.msra.mxu0 0
        %2265 = vmatprep.subr.bf16.mxu0 0
        %2266 = vmatpush2.bf16.msra.mxu0 0
        %2267 = vmatprep.subr.bf16.mxu0 0
        %2268 = vmatpush2.bf16.msra.mxu0 0
        %2269 = vmatprep.subr.bf16.mxu0 0
        %2270 = vmatpush2.bf16.msra.mxu0 0
        %2271 = vmatprep.mubr.bf16.mxu0 0
        %2272 = vmatmul.mubr.bf16.gmra.mxu0 %v2090
        %v2273 = vpop.f32.mrf.mxu0
        %v2274 = vadd.f32 0.0, %v2273
        %v2275 = vpop.f32.mrf.mxu0
        %v2276 = vadd.f32 0.0, %v2275
        %v2277 = vpop.f32.mrf.mxu0
        %v2278 = vpop.f32.mrf.mxu0
        %2279 = vdwg.mxu0
        %v2280 = vadd.f32 %v2052, %v2151
        %v2281 = vadd.f32 %v2053, %v2153
        %v2282 = vadd.f32 %v2054, %v2192
        %v2283 = vadd.f32 %v2055, %v2194
        %v2284 = vadd.f32 %v2056, %v2233
        %v2285 = vadd.f32 %v2057, %v2235
        %v2286 = vadd.f32 %v2058, %v2274
        %v2287 = vadd.f32 %v2059, %v2276
        %v2288 = vld [vmem:[%s3] sm:$0xf]
        %v2289 = vld [vmem:[%s220] sm:$0xff]
        %v2290 = vld [vmem:[%s220 + $0x8] sm:$0xff]
        %v2293 = vcombine.high %v2289, %v2289
        %v2295 = vunpack.c.l.s4 1983009808
        %v2296 = vunpack.c.0.s8 %v2295
        %v2297 = vlaneseq
        %v2298 = vshrl.u32 %v2297, 7
        %v2299 = vsub.s32 %v2296, %v2298
        %v2300 = vrot.slane %v2289, %v2299
        %v2302 = vunpack.c.l.s4 1983009808
        %v2303 = vunpack.c.0.s8 %v2302
        %v2304 = vlaneseq
        %v2305 = vshrl.u32 %v2304, 7
        %v2306 = vsub.s32 %v2303, %v2305
        %v2307 = vrot.slane %v2293, %v2306
        %v2308 = vcombine.high %v2300, %v2300
        %v2309 = vcombine.high %v2307, %v2307
        %v2310 = vcombine.high %v2290, %v2290
        %v2312 = vunpack.c.l.s4 1983009808
        %v2313 = vunpack.c.0.s8 %v2312
        %v2314 = vlaneseq
        %v2315 = vshrl.u32 %v2314, 7
        %v2316 = vsub.s32 %v2313, %v2315
        %v2317 = vrot.slane %v2290, %v2316
        %v2319 = vunpack.c.l.s4 1983009808
        %v2320 = vunpack.c.0.s8 %v2319
        %v2321 = vlaneseq
        %v2322 = vshrl.u32 %v2321, 7
        %v2323 = vsub.s32 %v2320, %v2322
        %v2324 = vrot.slane %v2310, %v2323
        %v2325 = vcombine.high %v2317, %v2317
        %v2326 = vcombine.high %v2324, %v2324
        %vm2327 = vcmask 31744
        %v2329 = vsel %vm2327, %v2288, 0
        %vm2331 = vcmask 1041408
        %v2333 = vsel %vm2331, %v2300, 0
        %v2336 = vsel %vm2331, %v2308, 0
        %v2339 = vsel %vm2331, %v2307, 0
        %v2342 = vsel %vm2331, %v2309, 0
        %v2345 = vsel %vm2331, %v2317, 0
        %v2348 = vsel %vm2331, %v2325, 0
        %v2351 = vsel %vm2331, %v2324, 0
        %v2354 = vsel %vm2331, %v2326, 0
        %2356 = vmatprep.subr.bf16.mxu0 0
        %2357 = vmatpush1.bf16.msra.mxu0 0
        %2358 = vmatprep.subr.bf16.mxu0 0
        %2359 = vmatpush1.bf16.msra.mxu0 0
        %2360 = vmatprep.subr.bf16.mxu0 0
        %2361 = vmatpush1.bf16.msra.mxu0 0
        %2362 = vmatprep.subr.bf16.mxu0 0
        %2363 = vmatpush1.bf16.msra.mxu0 0
        %2364 = vmatprep.subr.bf16.mxu0 0
        %2365 = vmatpush1.bf16.msra.mxu0 0
        %2366 = vmatprep.subr.bf16.mxu0 0
        %2367 = vmatpush1.bf16.msra.mxu0 0
        %2368 = vmatprep.subr.bf16.mxu0 0
        %2369 = vmatpush1.bf16.msra.mxu0 0
        %2370 = vmatprep.subr.bf16.mxu0 %v2336
        %2371 = vmatpush1.bf16.msra.mxu0 %v2333
        %2372 = vmatprep.subr.bf16.mxu0 0
        %2373 = vmatpush2.bf16.msra.mxu0 0
        %2374 = vmatprep.subr.bf16.mxu0 0
        %2375 = vmatpush2.bf16.msra.mxu0 0
        %2376 = vmatprep.subr.bf16.mxu0 0
        %2377 = vmatpush2.bf16.msra.mxu0 0
        %2378 = vmatprep.subr.bf16.mxu0 0
        %2379 = vmatpush2.bf16.msra.mxu0 0
        %2380 = vmatprep.subr.bf16.mxu0 0
        %2381 = vmatpush2.bf16.msra.mxu0 0
        %2382 = vmatprep.subr.bf16.mxu0 0
        %2383 = vmatpush2.bf16.msra.mxu0 0
        %2384 = vmatprep.subr.bf16.mxu0 0
        %2385 = vmatpush2.bf16.msra.mxu0 0
        %2386 = vmatprep.subr.bf16.mxu0 0
        %2387 = vmatpush2.bf16.msra.mxu0 0
        %2388 = vmatprep.mubr.bf16.mxu0 0
        %2389 = vmatmul.mubr.bf16.gmra.mxu0 %v2329
        %v2390 = vpop.f32.mrf.mxu0
        %v2391 = vadd.f32 0.0, %v2390
        %v2392 = vpop.f32.mrf.mxu0
        %v2393 = vadd.f32 0.0, %v2392
        %v2394 = vpop.f32.mrf.mxu0
        %v2395 = vpop.f32.mrf.mxu0
        %2396 = vdwg.mxu0
        %2397 = vmatprep.subr.bf16.mxu0 0
        %2398 = vmatpush1.bf16.msra.mxu0 0
        %2399 = vmatprep.subr.bf16.mxu0 0
        %2400 = vmatpush1.bf16.msra.mxu0 0
        %2401 = vmatprep.subr.bf16.mxu0 0
        %2402 = vmatpush1.bf16.msra.mxu0 0
        %2403 = vmatprep.subr.bf16.mxu0 0
        %2404 = vmatpush1.bf16.msra.mxu0 0
        %2405 = vmatprep.subr.bf16.mxu0 0
        %2406 = vmatpush1.bf16.msra.mxu0 0
        %2407 = vmatprep.subr.bf16.mxu0 0
        %2408 = vmatpush1.bf16.msra.mxu0 0
        %2409 = vmatprep.subr.bf16.mxu0 0
        %2410 = vmatpush1.bf16.msra.mxu0 0
        %2411 = vmatprep.subr.bf16.mxu0 %v2342
        %2412 = vmatpush1.bf16.msra.mxu0 %v2339
        %2413 = vmatprep.subr.bf16.mxu0 0
        %2414 = vmatpush2.bf16.msra.mxu0 0
        %2415 = vmatprep.subr.bf16.mxu0 0
        %2416 = vmatpush2.bf16.msra.mxu0 0
        %2417 = vmatprep.subr.bf16.mxu0 0
        %2418 = vmatpush2.bf16.msra.mxu0 0
        %2419 = vmatprep.subr.bf16.mxu0 0
        %2420 = vmatpush2.bf16.msra.mxu0 0
        %2421 = vmatprep.subr.bf16.mxu0 0
        %2422 = vmatpush2.bf16.msra.mxu0 0
        %2423 = vmatprep.subr.bf16.mxu0 0
        %2424 = vmatpush2.bf16.msra.mxu0 0
        %2425 = vmatprep.subr.bf16.mxu0 0
        %2426 = vmatpush2.bf16.msra.mxu0 0
        %2427 = vmatprep.subr.bf16.mxu0 0
        %2428 = vmatpush2.bf16.msra.mxu0 0
        %2429 = vmatprep.mubr.bf16.mxu0 0
        %2430 = vmatmul.mubr.bf16.gmra.mxu0 %v2329
        %v2431 = vpop.f32.mrf.mxu0
        %v2432 = vadd.f32 0.0, %v2431
        %v2433 = vpop.f32.mrf.mxu0
        %v2434 = vadd.f32 0.0, %v2433
        %v2435 = vpop.f32.mrf.mxu0
        %v2436 = vpop.f32.mrf.mxu0
        %2437 = vdwg.mxu0
        %2438 = vmatprep.subr.bf16.mxu0 0
        %2439 = vmatpush1.bf16.msra.mxu0 0
        %2440 = vmatprep.subr.bf16.mxu0 0
        %2441 = vmatpush1.bf16.msra.mxu0 0
        %2442 = vmatprep.subr.bf16.mxu0 0
        %2443 = vmatpush1.bf16.msra.mxu0 0
        %2444 = vmatprep.subr.bf16.mxu0 0
        %2445 = vmatpush1.bf16.msra.mxu0 0
        %2446 = vmatprep.subr.bf16.mxu0 0
        %2447 = vmatpush1.bf16.msra.mxu0 0
        %2448 = vmatprep.subr.bf16.mxu0 0
        %2449 = vmatpush1.bf16.msra.mxu0 0
        %2450 = vmatprep.subr.bf16.mxu0 0
        %2451 = vmatpush1.bf16.msra.mxu0 0
        %2452 = vmatprep.subr.bf16.mxu0 %v2348
        %2453 = vmatpush1.bf16.msra.mxu0 %v2345
        %2454 = vmatprep.subr.bf16.mxu0 0
        %2455 = vmatpush2.bf16.msra.mxu0 0
        %2456 = vmatprep.subr.bf16.mxu0 0
        %2457 = vmatpush2.bf16.msra.mxu0 0
        %2458 = vmatprep.subr.bf16.mxu0 0
        %2459 = vmatpush2.bf16.msra.mxu0 0
        %2460 = vmatprep.subr.bf16.mxu0 0
        %2461 = vmatpush2.bf16.msra.mxu0 0
        %2462 = vmatprep.subr.bf16.mxu0 0
        %2463 = vmatpush2.bf16.msra.mxu0 0
        %2464 = vmatprep.subr.bf16.mxu0 0
        %2465 = vmatpush2.bf16.msra.mxu0 0
        %2466 = vmatprep.subr.bf16.mxu0 0
        %2467 = vmatpush2.bf16.msra.mxu0 0
        %2468 = vmatprep.subr.bf16.mxu0 0
        %2469 = vmatpush2.bf16.msra.mxu0 0
        %2470 = vmatprep.mubr.bf16.mxu0 0
        %2471 = vmatmul.mubr.bf16.gmra.mxu0 %v2329
        %v2472 = vpop.f32.mrf.mxu0
        %v2473 = vadd.f32 0.0, %v2472
        %v2474 = vpop.f32.mrf.mxu0
        %v2475 = vadd.f32 0.0, %v2474
        %v2476 = vpop.f32.mrf.mxu0
        %v2477 = vpop.f32.mrf.mxu0
        %2478 = vdwg.mxu0
        %2479 = vmatprep.subr.bf16.mxu0 0
        %2480 = vmatpush1.bf16.msra.mxu0 0
        %2481 = vmatprep.subr.bf16.mxu0 0
        %2482 = vmatpush1.bf16.msra.mxu0 0
        %2483 = vmatprep.subr.bf16.mxu0 0
        %2484 = vmatpush1.bf16.msra.mxu0 0
        %2485 = vmatprep.subr.bf16.mxu0 0
        %2486 = vmatpush1.bf16.msra.mxu0 0
        %2487 = vmatprep.subr.bf16.mxu0 0
        %2488 = vmatpush1.bf16.msra.mxu0 0
        %2489 = vmatprep.subr.bf16.mxu0 0
        %2490 = vmatpush1.bf16.msra.mxu0 0
        %2491 = vmatprep.subr.bf16.mxu0 0
        %2492 = vmatpush1.bf16.msra.mxu0 0
        %2493 = vmatprep.subr.bf16.mxu0 %v2354
        %2494 = vmatpush1.bf16.msra.mxu0 %v2351
        %2495 = vmatprep.subr.bf16.mxu0 0
        %2496 = vmatpush2.bf16.msra.mxu0 0
        %2497 = vmatprep.subr.bf16.mxu0 0
        %2498 = vmatpush2.bf16.msra.mxu0 0
        %2499 = vmatprep.subr.bf16.mxu0 0
        %2500 = vmatpush2.bf16.msra.mxu0 0
        %2501 = vmatprep.subr.bf16.mxu0 0
        %2502 = vmatpush2.bf16.msra.mxu0 0
        %2503 = vmatprep.subr.bf16.mxu0 0
        %2504 = vmatpush2.bf16.msra.mxu0 0
        %2505 = vmatprep.subr.bf16.mxu0 0
        %2506 = vmatpush2.bf16.msra.mxu0 0
        %2507 = vmatprep.subr.bf16.mxu0 0
        %2508 = vmatpush2.bf16.msra.mxu0 0
        %2509 = vmatprep.subr.bf16.mxu0 0
        %2510 = vmatpush2.bf16.msra.mxu0 0
        %2511 = vmatprep.mubr.bf16.mxu0 0
        %2512 = vmatmul.mubr.bf16.gmra.mxu0 %v2329
        %v2513 = vpop.f32.mrf.mxu0
        %v2514 = vadd.f32 0.0, %v2513
        %v2515 = vpop.f32.mrf.mxu0
        %v2516 = vadd.f32 0.0, %v2515
        %v2517 = vpop.f32.mrf.mxu0
        %v2518 = vpop.f32.mrf.mxu0
        %2519 = vdwg.mxu0
        %v2520 = vadd.f32 %v2280, %v2391
        %v2521 = vadd.f32 %v2281, %v2393
        %v2522 = vadd.f32 %v2282, %v2432
        %v2523 = vadd.f32 %v2283, %v2434
        %v2524 = vadd.f32 %v2284, %v2473
        %v2525 = vadd.f32 %v2285, %v2475
        %v2526 = vadd.f32 %v2286, %v2514
        %v2527 = vadd.f32 %v2287, %v2516
        %v2528 = vld [vmem:[%s4] sm:$0xff]
        %2530 = vset.pattern.permute.xlu0 0
        %2531 = vperm.xlu0 %2530, %v2528
        %v2532 = vpop.permute.xlu0 %2531
        %v2534 = vadd.f32 %v2520, %v2532
        %v2535 = vadd.f32 %v2521, %v2532
        %v2536 = vadd.f32 %v2522, %v2532
        %v2537 = vadd.f32 %v2523, %v2532
        %v2538 = vadd.f32 %v2524, %v2532
        %v2539 = vadd.f32 %v2525, %v2532
        %v2540 = vadd.f32 %v2526, %v2532
        %v2541 = vadd.f32 %v2527, %v2532
        %v2542 = vmax.f32 %v2534, 0.0
        %v2543 = vmax.f32 %v2535, 0.0
        %v2544 = vmax.f32 %v2536, 0.0
        %v2545 = vmax.f32 %v2537, 0.0
        %v2546 = vmax.f32 %v2538, 0.0
        %v2547 = vmax.f32 %v2539, 0.0
        %v2548 = vmax.f32 %v2540, 0.0
        %v2549 = vmax.f32 %v2541, 0.0
        %v2550 = vpack.c.bf16 %v2542, %v2542
        %v2551 = vpack.c.bf16 %v2543, %v2543
        %v2552 = vpack.c.bf16 %v2544, %v2544
        %v2553 = vpack.c.bf16 %v2545, %v2545
        %v2554 = vpack.c.bf16 %v2546, %v2546
        %v2555 = vpack.c.bf16 %v2547, %v2547
        %v2556 = vpack.c.bf16 %v2548, %v2548
        %v2557 = vpack.c.bf16 %v2549, %v2549
        %v2566 = vunpack.c.l.b16 %v2550
        %v2567 = vunpack.c.l.b16 %v2551
        %v2568 = vunpack.c.l.b16 %v2552
        %v2569 = vunpack.c.l.b16 %v2553
        %v2570 = vunpack.c.l.b16 %v2554
        %v2571 = vunpack.c.l.b16 %v2555
        %v2572 = vunpack.c.l.b16 %v2556
        %v2573 = vunpack.c.l.b16 %v2557
        %v2574 = vpack.c.b16 %v2567, %v2566
        %v2575 = vpack.c.b16 %v2569, %v2568
        %v2576 = vpack.c.b16 %v2571, %v2570
        %v2577 = vpack.c.b16 %v2573, %v2572
        %2582 = vst [vmem:[%s226] sm:$0xff] %v2574
        %2583 = vst [vmem:[%s226 + $0x8] sm:$0xff] %v2575
        %2584 = vst [vmem:[%s226 + $0x10] sm:$0xff] %v2576
        %2585 = vst [vmem:[%s226 + $0x18] sm:$0xff] %v2577
      $region48: #{residual_forward.3} parent=39 // pred_fallthru
        _
      %s2586 = smul.u32 8, %s16
      %p2587 = scmp.lt.s32.totalorder %s2586, 23
      %s2588 = scalar_select %p2587, %s2586, 23
      %s2589 = smul.addr %s2588, 4
      %s2590 = scalar_lea.vmem %s5, %s2589
      // Predicated region
      $region49: #{residual_forward.3} parent=39 // pred_check
        %p2591 = pneg %p144
      $region50: #{residual_forward.3} parent=39 // pred_check_branch
        %2593 = sbr.rel (%p2591) target = $region52
      $region51: #{residual_forward.3} parent=39 // pred_region
        %s2594 = smul.u32 8, %s16
      $region52: #{residual_forward.3} parent=39 // pred_fallthru
        _
    $region40: #{residual_forward.3} parent=5 // pred_fallthru
      _
    %p2595 = scmp.le.s32.totalorder 2, %s11
    // Predicated region
    $region53: #{residual_forward.3} parent=5 // pred_check
      %p2596 = pneg %p2595
    $region54: #{residual_forward.3} parent=5 // pred_check_branch
      %2598 = sbr.rel (%p2596) target = $region56
    $region55: #{residual_forward.3} parent=5 // pred_region
      %s2599 = ssub.s32 %s11, 2
      // Predicated region
      $region57: #{residual_forward.3} parent=55 // pred_check
        %p2600 = pneg %p150
      $region58: #{residual_forward.3} parent=55 // pred_check_branch
        %2602 = sbr.rel (%p2600) target = $region60
      $region59: #{residual_forward.3} parent=55 // pred_region
        %s2603 = smul.u32 8, %s17
        %p2604 = scmp.lt.s32.totalorder %s2603, 23
        %s2605 = scalar_select %p2604, %s2603, 23
        %s2606 = smul.addr %s2605, 4
        %s2607 = scalar_lea.vmem %s5, %s2606
      $region60: #{residual_forward.3} parent=55 // pred_fallthru
        _
    $region56: #{residual_forward.3} parent=5 // pred_fallthru
      _
  $region6: #{residual_forward.3} parent=0 // loop_footer
    %s15 = sadd.s32 1, %s11
  $region7: #{residual_forward.3} parent=0 // loop_footer_branch
    %10 = sbr.rel target = $region3
  $region8: #{residual_forward.3} parent=0 // loop_exit
    _

</llo_original>
